<compile_context>
chip_gen: v7x
topology: tpu7x:2x2x1
jax: 0.10.0
libtpu: 0.0.40
codegen_flags: <defaults>
</compile_context>

<pallas_src>
import jax
import jax.numpy as jnp
from jax.experimental import pallas as pl
from jax.experimental.pallas import tpu as pltpu

# ---------------- config (small shapes consistent with the module) ----------------
BATCH = 2
MAXVAR = 32
INPUT_DIM_BASE = 1
RANDOM = 1
INPUT_DIM = INPUT_DIM_BASE + RANDOM      # 2 (random column is always zero)
HIDDEN = 32
OUTPUT_DIM = 4
OUT_PAD = 128                            # lane-dense padded width of the final output
NUM_LAYERS = 4                           # GNN depth (module default is 10; toy size)
NUM_GNN = NUM_LAYERS - 1
GN_EPS = 1e-5


# ---------------- in-kernel helpers ----------------
def _erf(x):
    # Abramowitz & Stegun 7.1.26, |err| <= 1.5e-7: matches torch's exact-erf GELU
    # within float32 tolerance while only needing exp on the EUP.
    a1, a2, a3, a4, a5 = 0.254829592, -0.284496736, 1.421413741, -1.453152027, 1.061405429
    p = 0.3275911
    ax = jnp.abs(x)
    t = 1.0 / (1.0 + p * ax)
    poly = ((((a5 * t + a4) * t + a3) * t + a2) * t + a1) * t
    y = 1.0 - poly * jnp.exp(-ax * ax)
    return jnp.where(x >= 0.0, y, -y)


def _gelu_exact(x):
    # F.gelu default (erf-based)
    return 0.5 * x * (1.0 + _erf(x * 0.7071067811865476))


def _graph_norm(x, gn):
    # x: (M, H) = all nodes of ONE graph.  gn: (3, H) = [alpha, gamma, beta].
    alpha, gamma, beta = gn[0:1, :], gn[1:2, :], gn[2:3, :]
    mean = jnp.mean(x, axis=0, keepdims=True)
    centered = x - alpha * mean
    var = jnp.mean(centered * centered, axis=0, keepdims=True)
    return gamma * centered * jax.lax.rsqrt(var + GN_EPS) + beta


# ---------------- fused forward kernel (one graph per grid step) ----------------
def fused_forward_kernel(eps_ref, x_ref, adj_ref, ew_ref, eb_ref,
                         w1s_ref, b1s_ref, gn1s_ref,
                         w2s_ref, b2s_ref, gn2s_ref,
                         lfaw_ref, lfab_ref, fcw_ref, fcb_ref, o_ref):
    a = adj_ref[0]                                         # (M, M)

    # --- embedder: MLP(1 layer) == Linear(input_dim, hidden).  The 'random'
    # column is always 0, so only the first weight row contributes:
    # (M, 1) * (1, H) broadcast-multiply on the VPU (no MXU push for K=1).
    h = x_ref[0] * ew_ref[...] + eb_ref[...]               # (M, H)

    # --- GNN layers (static unroll; NUM_GNN is tiny) ---
    for l in range(NUM_GNN):
        eps = eps_ref[l]                                   # SMEM scalar
        # sum neighbor pooling + (1 + eps) self term
        pooled = jnp.dot(a, h, preferred_element_type=jnp.float32) + (1.0 + eps) * h
        # MLP (2 layers): Linear -> GraphNorm -> ReLU -> Linear
        t = jnp.dot(pooled, w1s_ref[l], preferred_element_type=jnp.float32) + b1s_ref[l]
        t = _graph_norm(t, gn1s_ref[l])
        t = jnp.maximum(t, 0.0)
        t = jnp.dot(t, w2s_ref[l], preferred_element_type=jnp.float32) + b2s_ref[l]
        # outer GraphNorm + GELU
        t = _graph_norm(t, gn2s_ref[l])
        h = _gelu_exact(t)

    # --- LFA: Linear(maxvar, maxvar) along node axis == W @ h + bias (pre-broadcast)
    h = jnp.dot(lfaw_ref[...], h, preferred_element_type=jnp.float32) + lfab_ref[...]

    # --- fc1 into a 128-lane-wide padded slab -> unmasked stores
    o_ref[0] = jnp.dot(h, fcw_ref[...], preferred_element_type=jnp.float32) + fcb_ref[...]


# ---------------- pallas_call wrapper ----------------
def graphcnnsat_forward(params, adj, var_feat, batch_size=BATCH):
    B, M, H = batch_size, MAXVAR, HIDDEN
    x = var_feat.reshape(B, M, INPUT_DIM_BASE)             # (B, M, 1)

    full2 = lambda i: (0, 0)
    full3 = lambda i: (0, 0, 0)

    out_pad = pl.pallas_call(
        fused_forward_kernel,
        out_shape=jax.ShapeDtypeStruct((B, M, OUT_PAD), jnp.float32),
        grid=(B,),
        in_specs=[
            pl.BlockSpec(memory_space=pltpu.MemorySpace.SMEM),          # eps (NUM_LAYERS,)
            pl.BlockSpec((1, M, INPUT_DIM_BASE), lambda i: (i, 0, 0)),  # var features
            pl.BlockSpec((1, M, M), lambda i: (i, 0, 0)),               # adjacency
            pl.BlockSpec((1, H), full2),                                # embed w (row 0)
            pl.BlockSpec((1, H), full2),                                # embed b
            pl.BlockSpec((NUM_GNN, H, H), full3),                       # w1 stacked
            pl.BlockSpec((NUM_GNN, 1, H), full3),                       # b1 stacked
            pl.BlockSpec((NUM_GNN, 3, H), full3),                       # gn1 stacked
            pl.BlockSpec((NUM_GNN, H, H), full3),                       # w2 stacked
            pl.BlockSpec((NUM_GNN, 1, H), full3),                       # b2 stacked
            pl.BlockSpec((NUM_GNN, 3, H), full3),                       # gn2 stacked
            pl.BlockSpec((M, M), full2),                                # lfa W
            pl.BlockSpec((M, H), full2),                                # lfa bias (bcast)
            pl.BlockSpec((H, OUT_PAD), full2),                          # fc1 W (padded)
            pl.BlockSpec((1, OUT_PAD), full2),                          # fc1 b (padded)
        ],
        out_specs=pl.BlockSpec((1, M, OUT_PAD), lambda i: (i, 0, 0)),
        compiler_params=pltpu.CompilerParams(dimension_semantics=("parallel",)),
    )(params["eps"], x, adj,
      params["embed_w0"], params["embed_b"],
      params["w1s"], params["b1s"], params["gn1s"],
      params["w2s"], params["b2s"], params["gn2s"],
      params["lfa_w"], params["lfa_b_bcast"],
      params["fc1_w_pad"], params["fc1_b_pad"])

    # var_classification: reshape(fc1(h_var), (batch, maxvar, output_dim))
    return out_pad[:, :, :OUTPUT_DIM]
    # TODO(synk): graph_embedding readout branch (graph_pooler sparse.mm,
    # linears_prediction, dropout) is dead code under the default config and is omitted.


# ---------------- parameters (deterministic, torch-like uniform init) ----------------
def _lin_init(key, fan_in, shape):
    bound = 1.0 / float(fan_in) ** 0.5
    return jax.random.uniform(key, shape, jnp.float32, -bound, bound)


def init_params(key):
    keys = iter(jax.random.split(key, 8 + 4 * NUM_GNN))
    embed_w = _lin_init(next(keys), INPUT_DIM, (INPUT_DIM, HIDDEN))
    embed_b = _lin_init(next(keys), INPUT_DIM, (1, HIDDEN))
    lfa_w = _lin_init(next(keys), MAXVAR, (MAXVAR, MAXVAR))
    lfa_b = _lin_init(next(keys), MAXVAR, (MAXVAR,))
    fc1_w = _lin_init(next(keys), HIDDEN, (HIDDEN, OUTPUT_DIM))
    fc1_b = _lin_init(next(keys), HIDDEN, (OUTPUT_DIM,))

    gn_init = jnp.stack([jnp.ones((HIDDEN,), jnp.float32),    # alpha
                         jnp.ones((HIDDEN,), jnp.float32),    # gamma
                         jnp.zeros((HIDDEN,), jnp.float32)])  # beta

    w1s, b1s, w2s, b2s = [], [], [], []
    for _ in range(NUM_GNN):
        w1s.append(_lin_init(next(keys), HIDDEN, (HIDDEN, HIDDEN)))
        b1s.append(_lin_init(next(keys), HIDDEN, (1, HIDDEN)))
        w2s.append(_lin_init(next(keys), HIDDEN, (HIDDEN, HIDDEN)))
        b2s.append(_lin_init(next(keys), HIDDEN, (1, HIDDEN)))

    return {
        "eps": jnp.zeros((NUM_LAYERS,), jnp.float32),          # nn.Parameter zeros
        # random input column is always 0 -> only the first embed weight row matters
        "embed_w0": embed_w[0:INPUT_DIM_BASE, :],              # (1, H)
        "embed_b": embed_b,                                    # (1, H)
        "w1s": jnp.stack(w1s), "b1s": jnp.stack(b1s),
        "gn1s": jnp.tile(gn_init[None], (NUM_GNN, 1, 1)),
        "w2s": jnp.stack(w2s), "b2s": jnp.stack(b2s),
        "gn2s": jnp.tile(gn_init[None], (NUM_GNN, 1, 1)),
        "lfa_w": lfa_w,                                        # (M, M)
        # lane-dense bias layout: pre-broadcast (M,) -> (M, H) once at init
        "lfa_b_bcast": jnp.tile(lfa_b[:, None], (1, HIDDEN)),
        # lane-dense fc1 output slab: pad Dout 4 -> 128 with zeros
        "fc1_w_pad": jnp.zeros((HIDDEN, OUT_PAD), jnp.float32).at[:, :OUTPUT_DIM].set(fc1_w),
        "fc1_b_pad": jnp.zeros((1, OUT_PAD), jnp.float32).at[:, :OUTPUT_DIM].set(fc1_b),
    }


if __name__ == "__main__":
    key = jax.random.PRNGKey(0)
    k_params, k_adj, k_feat = jax.random.split(key, 3)

    params = init_params(k_params)

    # block-diagonal varvar graph -> dense per-graph adjacency (B, MAXVAR, MAXVAR)
    adj = (jax.random.uniform(k_adj, (BATCH, MAXVAR, MAXVAR)) < 0.2).astype(jnp.float32)
    adj = jnp.maximum(adj, jnp.swapaxes(adj, 1, 2))

    var_feat = jax.random.normal(k_feat, (BATCH * MAXVAR, INPUT_DIM_BASE), jnp.float32)

    out = graphcnnsat_forward(params, adj, var_feat)
    out = jax.block_until_ready(out)
    assert out.shape == (BATCH, MAXVAR, OUTPUT_DIM)
    assert bool(jnp.all(jnp.isfinite(out)))
    print("KERNEL_OK")
</pallas_src>

<mosaic_0001>
module attributes {stable_mosaic.version = 11 : i64} {
  func.func @fused_forward_kernel(%arg0: i32, %arg1: memref<4xf32, #tpu.memory_space<smem>>, %arg2: memref<1x32x1xf32, #tpu.memory_space<vmem>>, %arg3: memref<1x32x32xf32, #tpu.memory_space<vmem>>, %arg4: memref<1x32xf32, #tpu.memory_space<vmem>>, %arg5: memref<1x32xf32, #tpu.memory_space<vmem>>, %arg6: memref<3x32x32xf32, #tpu.memory_space<vmem>>, %arg7: memref<3x1x32xf32, #tpu.memory_space<vmem>>, %arg8: memref<3x3x32xf32, #tpu.memory_space<vmem>>, %arg9: memref<3x32x32xf32, #tpu.memory_space<vmem>>, %arg10: memref<3x1x32xf32, #tpu.memory_space<vmem>>, %arg11: memref<3x3x32xf32, #tpu.memory_space<vmem>>, %arg12: memref<32x32xf32, #tpu.memory_space<vmem>>, %arg13: memref<32x32xf32, #tpu.memory_space<vmem>>, %arg14: memref<32x128xf32, #tpu.memory_space<vmem>>, %arg15: memref<1x128xf32, #tpu.memory_space<vmem>>, %arg16: memref<1x32x128xf32, #tpu.memory_space<vmem>>) attributes {dimension_semantics = [#tpu.dimension_semantics<parallel>], iteration_bounds = array<i64: 2>, scalar_prefetch = 0 : i64, scratch_operands = 0 : i64, tpu.core_type = #tpu.core_type<tc>, window_params = [{transform_indices = @transform_0, window_bounds = array<i64: 4>}, {transform_indices = @transform_1, window_bounds = array<i64: 1, 32, 1>}, {transform_indices = @transform_2, window_bounds = array<i64: 1, 32, 32>}, {pipeline_mode = #tpu.pipeline_mode<synchronous>, transform_indices = @transform_3, window_bounds = array<i64: 1, 32>}, {pipeline_mode = #tpu.pipeline_mode<synchronous>, transform_indices = @transform_4, window_bounds = array<i64: 1, 32>}, {pipeline_mode = #tpu.pipeline_mode<synchronous>, transform_indices = @transform_5, window_bounds = array<i64: 3, 32, 32>}, {pipeline_mode = #tpu.pipeline_mode<synchronous>, transform_indices = @transform_6, window_bounds = array<i64: 3, 1, 32>}, {pipeline_mode = #tpu.pipeline_mode<synchronous>, transform_indices = @transform_7, window_bounds = array<i64: 3, 3, 32>}, {pipeline_mode = #tpu.pipeline_mode<synchronous>, transform_indices = @transform_8, window_bounds = array<i64: 3, 32, 32>}, {pipeline_mode = #tpu.pipeline_mode<synchronous>, transform_indices = @transform_9, window_bounds = array<i64: 3, 1, 32>}, {pipeline_mode = #tpu.pipeline_mode<synchronous>, transform_indices = @transform_10, window_bounds = array<i64: 3, 3, 32>}, {pipeline_mode = #tpu.pipeline_mode<synchronous>, transform_indices = @transform_11, window_bounds = array<i64: 32, 32>}, {pipeline_mode = #tpu.pipeline_mode<synchronous>, transform_indices = @transform_12, window_bounds = array<i64: 32, 32>}, {pipeline_mode = #tpu.pipeline_mode<synchronous>, transform_indices = @transform_13, window_bounds = array<i64: 32, 128>}, {pipeline_mode = #tpu.pipeline_mode<synchronous>, transform_indices = @transform_14, window_bounds = array<i64: 1, 128>}, {transform_indices = @transform_15, window_bounds = array<i64: 1, 32, 128>}]} {
    %c0 = arith.constant 0 : index
    %c0_0 = arith.constant 0 : index
    %c0_1 = arith.constant 0 : index
    %0 = vector.load %arg3[%c0, %c0_0, %c0_1] : memref<1x32x32xf32, #tpu.memory_space<vmem>>, vector<1x32x32xf32>
    %1 = vector.shape_cast %0 : vector<1x32x32xf32> to vector<32x32xf32>
    %c0_2 = arith.constant 0 : index
    %c0_3 = arith.constant 0 : index
    %c0_4 = arith.constant 0 : index
    %2 = vector.load %arg2[%c0_2, %c0_3, %c0_4] : memref<1x32x1xf32, #tpu.memory_space<vmem>>, vector<1x32x1xf32>
    %3 = vector.shape_cast %2 : vector<1x32x1xf32> to vector<32x1xf32>
    %c0_5 = arith.constant 0 : index
    %c0_6 = arith.constant 0 : index
    %4 = vector.load %arg4[%c0_5, %c0_6] : memref<1x32xf32, #tpu.memory_space<vmem>>, vector<1x32xf32>
    %5 = vector.broadcast %3 : vector<32x1xf32> to vector<32x32xf32>
    %6 = vector.broadcast %4 : vector<1x32xf32> to vector<32x32xf32>
    %7 = arith.mulf %5, %6 : vector<32x32xf32>
    %c0_7 = arith.constant 0 : index
    %c0_8 = arith.constant 0 : index
    %8 = vector.load %arg5[%c0_7, %c0_8] : memref<1x32xf32, #tpu.memory_space<vmem>>, vector<1x32xf32>
    %9 = vector.broadcast %8 : vector<1x32xf32> to vector<32x32xf32>
    %10 = arith.addf %7, %9 : vector<32x32xf32>
    %c0_9 = arith.constant 0 : index
    %11 = memref.load %arg1[%c0_9] : memref<4xf32, #tpu.memory_space<smem>>
    %cst = arith.constant dense<0.000000e+00> : vector<32x32xf32>
    %12 = tpu.matmul %1, %10, %cst {dimension_numbers = #tpu.dot_dimension_numbers<[1], [0], [0], [1], [0, 0, 1, 1], [], []>} : vector<32x32xf32>, vector<32x32xf32>, vector<32x32xf32> -> vector<32x32xf32>
    %cst_10 = arith.constant 1.000000e+00 : f32
    %13 = arith.addf %cst_10, %11 : f32
    %14 = vector.broadcast %13 : f32 to vector<32x32xf32>
    %15 = arith.mulf %14, %10 : vector<32x32xf32>
    %16 = arith.addf %12, %15 : vector<32x32xf32>
    %c0_11 = arith.constant 0 : index
    %c0_12 = arith.constant 0 : index
    %c0_13 = arith.constant 0 : index
    %17 = vector.load %arg6[%c0_11, %c0_12, %c0_13] : memref<3x32x32xf32, #tpu.memory_space<vmem>>, vector<1x32x32xf32>
    %18 = vector.shape_cast %17 : vector<1x32x32xf32> to vector<32x32xf32>
    %cst_14 = arith.constant dense<0.000000e+00> : vector<32x32xf32>
    %19 = tpu.matmul %16, %18, %cst_14 {dimension_numbers = #tpu.dot_dimension_numbers<[1], [0], [0], [1], [0, 0, 1, 1], [], []>} : vector<32x32xf32>, vector<32x32xf32>, vector<32x32xf32> -> vector<32x32xf32>
    %c0_15 = arith.constant 0 : index
    %c0_16 = arith.constant 0 : index
    %c0_17 = arith.constant 0 : index
    %20 = vector.load %arg7[%c0_15, %c0_16, %c0_17] : memref<3x1x32xf32, #tpu.memory_space<vmem>>, vector<1x1x32xf32>
    %21 = vector.shape_cast %20 : vector<1x1x32xf32> to vector<1x32xf32>
    %22 = vector.broadcast %21 : vector<1x32xf32> to vector<32x32xf32>
    %23 = arith.addf %19, %22 : vector<32x32xf32>
    %c0_18 = arith.constant 0 : index
    %c0_19 = arith.constant 0 : index
    %c0_20 = arith.constant 0 : index
    %24 = vector.load %arg8[%c0_18, %c0_19, %c0_20] : memref<3x3x32xf32, #tpu.memory_space<vmem>>, vector<1x3x32xf32>
    %25 = vector.shape_cast %24 : vector<1x3x32xf32> to vector<3x32xf32>
    %26 = vector.extract_strided_slice %25 {offsets = [0, 0], sizes = [1, 32], strides = [1, 1]} : vector<3x32xf32> to vector<1x32xf32>
    %27 = vector.extract_strided_slice %25 {offsets = [1, 0], sizes = [1, 32], strides = [1, 1]} : vector<3x32xf32> to vector<1x32xf32>
    %28 = vector.extract_strided_slice %25 {offsets = [2, 0], sizes = [1, 32], strides = [1, 1]} : vector<3x32xf32> to vector<1x32xf32>
    %cst_21 = arith.constant dense<0.000000e+00> : vector<32xf32>
    %29 = vector.multi_reduction <add>, %23, %cst_21 [0] : vector<32x32xf32> to vector<32xf32>
    %30 = vector.shape_cast %29 : vector<32xf32> to vector<1x32xf32>
    %cst_22 = arith.constant 3.200000e+01 : f32
    %31 = vector.broadcast %cst_22 : f32 to vector<1x32xf32>
    %32 = arith.divf %30, %31 : vector<1x32xf32>
    %33 = arith.mulf %26, %32 : vector<1x32xf32>
    %34 = vector.broadcast %33 : vector<1x32xf32> to vector<32x32xf32>
    %35 = arith.subf %23, %34 : vector<32x32xf32>
    %36 = arith.mulf %35, %35 : vector<32x32xf32>
    %cst_23 = arith.constant dense<0.000000e+00> : vector<32xf32>
    %37 = vector.multi_reduction <add>, %36, %cst_23 [0] : vector<32x32xf32> to vector<32xf32>
    %38 = vector.shape_cast %37 : vector<32xf32> to vector<1x32xf32>
    %cst_24 = arith.constant 3.200000e+01 : f32
    %39 = vector.broadcast %cst_24 : f32 to vector<1x32xf32>
    %40 = arith.divf %38, %39 : vector<1x32xf32>
    %41 = vector.broadcast %27 : vector<1x32xf32> to vector<32x32xf32>
    %42 = arith.mulf %41, %35 : vector<32x32xf32>
    %cst_25 = arith.constant 9.99999974E-6 : f32
    %43 = vector.broadcast %cst_25 : f32 to vector<1x32xf32>
    %44 = arith.addf %40, %43 : vector<1x32xf32>
    %45 = math.rsqrt %44 : vector<1x32xf32>
    %46 = vector.broadcast %45 : vector<1x32xf32> to vector<32x32xf32>
    %47 = arith.mulf %42, %46 : vector<32x32xf32>
    %48 = vector.broadcast %28 : vector<1x32xf32> to vector<32x32xf32>
    %49 = arith.addf %47, %48 : vector<32x32xf32>
    %cst_26 = arith.constant 0.000000e+00 : f32
    %50 = vector.broadcast %cst_26 : f32 to vector<32x32xf32>
    %51 = arith.maximumf %49, %50 : vector<32x32xf32>
    %c0_27 = arith.constant 0 : index
    %c0_28 = arith.constant 0 : index
    %c0_29 = arith.constant 0 : index
    %52 = vector.load %arg9[%c0_27, %c0_28, %c0_29] : memref<3x32x32xf32, #tpu.memory_space<vmem>>, vector<1x32x32xf32>
    %53 = vector.shape_cast %52 : vector<1x32x32xf32> to vector<32x32xf32>
    %cst_30 = arith.constant dense<0.000000e+00> : vector<32x32xf32>
    %54 = tpu.matmul %51, %53, %cst_30 {dimension_numbers = #tpu.dot_dimension_numbers<[1], [0], [0], [1], [0, 0, 1, 1], [], []>} : vector<32x32xf32>, vector<32x32xf32>, vector<32x32xf32> -> vector<32x32xf32>
    %c0_31 = arith.constant 0 : index
    %c0_32 = arith.constant 0 : index
    %c0_33 = arith.constant 0 : index
    %55 = vector.load %arg10[%c0_31, %c0_32, %c0_33] : memref<3x1x32xf32, #tpu.memory_space<vmem>>, vector<1x1x32xf32>
    %56 = vector.shape_cast %55 : vector<1x1x32xf32> to vector<1x32xf32>
    %57 = vector.broadcast %56 : vector<1x32xf32> to vector<32x32xf32>
    %58 = arith.addf %54, %57 : vector<32x32xf32>
    %c0_34 = arith.constant 0 : index
    %c0_35 = arith.constant 0 : index
    %c0_36 = arith.constant 0 : index
    %59 = vector.load %arg11[%c0_34, %c0_35, %c0_36] : memref<3x3x32xf32, #tpu.memory_space<vmem>>, vector<1x3x32xf32>
    %60 = vector.shape_cast %59 : vector<1x3x32xf32> to vector<3x32xf32>
    %61 = vector.extract_strided_slice %60 {offsets = [0, 0], sizes = [1, 32], strides = [1, 1]} : vector<3x32xf32> to vector<1x32xf32>
    %62 = vector.extract_strided_slice %60 {offsets = [1, 0], sizes = [1, 32], strides = [1, 1]} : vector<3x32xf32> to vector<1x32xf32>
    %63 = vector.extract_strided_slice %60 {offsets = [2, 0], sizes = [1, 32], strides = [1, 1]} : vector<3x32xf32> to vector<1x32xf32>
    %cst_37 = arith.constant dense<0.000000e+00> : vector<32xf32>
    %64 = vector.multi_reduction <add>, %58, %cst_37 [0] : vector<32x32xf32> to vector<32xf32>
    %65 = vector.shape_cast %64 : vector<32xf32> to vector<1x32xf32>
    %cst_38 = arith.constant 3.200000e+01 : f32
    %66 = vector.broadcast %cst_38 : f32 to vector<1x32xf32>
    %67 = arith.divf %65, %66 : vector<1x32xf32>
    %68 = arith.mulf %61, %67 : vector<1x32xf32>
    %69 = vector.broadcast %68 : vector<1x32xf32> to vector<32x32xf32>
    %70 = arith.subf %58, %69 : vector<32x32xf32>
    %71 = arith.mulf %70, %70 : vector<32x32xf32>
    %cst_39 = arith.constant dense<0.000000e+00> : vector<32xf32>
    %72 = vector.multi_reduction <add>, %71, %cst_39 [0] : vector<32x32xf32> to vector<32xf32>
    %73 = vector.shape_cast %72 : vector<32xf32> to vector<1x32xf32>
    %cst_40 = arith.constant 3.200000e+01 : f32
    %74 = vector.broadcast %cst_40 : f32 to vector<1x32xf32>
    %75 = arith.divf %73, %74 : vector<1x32xf32>
    %76 = vector.broadcast %62 : vector<1x32xf32> to vector<32x32xf32>
    %77 = arith.mulf %76, %70 : vector<32x32xf32>
    %cst_41 = arith.constant 9.99999974E-6 : f32
    %78 = vector.broadcast %cst_41 : f32 to vector<1x32xf32>
    %79 = arith.addf %75, %78 : vector<1x32xf32>
    %80 = math.rsqrt %79 : vector<1x32xf32>
    %81 = vector.broadcast %80 : vector<1x32xf32> to vector<32x32xf32>
    %82 = arith.mulf %77, %81 : vector<32x32xf32>
    %83 = vector.broadcast %63 : vector<1x32xf32> to vector<32x32xf32>
    %84 = arith.addf %82, %83 : vector<32x32xf32>
    %cst_42 = arith.constant 5.000000e-01 : f32
    %85 = vector.broadcast %cst_42 : f32 to vector<32x32xf32>
    %86 = arith.mulf %85, %84 : vector<32x32xf32>
    %cst_43 = arith.constant 0.707106769 : f32
    %87 = vector.broadcast %cst_43 : f32 to vector<32x32xf32>
    %88 = arith.mulf %84, %87 : vector<32x32xf32>
    %89 = math.absf %88 : vector<32x32xf32>
    %cst_44 = arith.constant 0.327591091 : f32
    %90 = vector.broadcast %cst_44 : f32 to vector<32x32xf32>
    %91 = arith.mulf %90, %89 : vector<32x32xf32>
    %cst_45 = arith.constant 1.000000e+00 : f32
    %92 = vector.broadcast %cst_45 : f32 to vector<32x32xf32>
    %93 = arith.addf %92, %91 : vector<32x32xf32>
    %cst_46 = arith.constant 1.000000e+00 : f32
    %94 = vector.broadcast %cst_46 : f32 to vector<32x32xf32>
    %95 = arith.divf %94, %93 : vector<32x32xf32>
    %cst_47 = arith.constant 1.06140542 : f32
    %96 = vector.broadcast %cst_47 : f32 to vector<32x32xf32>
    %97 = arith.mulf %96, %95 : vector<32x32xf32>
    %cst_48 = arith.constant -1.45315206 : f32
    %98 = vector.broadcast %cst_48 : f32 to vector<32x32xf32>
    %99 = arith.addf %97, %98 : vector<32x32xf32>
    %100 = arith.mulf %99, %95 : vector<32x32xf32>
    %cst_49 = arith.constant 1.42141378 : f32
    %101 = vector.broadcast %cst_49 : f32 to vector<32x32xf32>
    %102 = arith.addf %100, %101 : vector<32x32xf32>
    %103 = arith.mulf %102, %95 : vector<32x32xf32>
    %cst_50 = arith.constant -0.284496725 : f32
    %104 = vector.broadcast %cst_50 : f32 to vector<32x32xf32>
    %105 = arith.addf %103, %104 : vector<32x32xf32>
    %106 = arith.mulf %105, %95 : vector<32x32xf32>
    %cst_51 = arith.constant 0.254829586 : f32
    %107 = vector.broadcast %cst_51 : f32 to vector<32x32xf32>
    %108 = arith.addf %106, %107 : vector<32x32xf32>
    %109 = arith.mulf %108, %95 : vector<32x32xf32>
    %cst_52 = arith.constant 0.000000e+00 : f32
    %110 = vector.broadcast %cst_52 : f32 to vector<32x32xf32>
    %111 = arith.subf %110, %89 : vector<32x32xf32>
    %112 = arith.mulf %111, %89 : vector<32x32xf32>
    %113 = math.exp %112 : vector<32x32xf32>
    %114 = arith.mulf %109, %113 : vector<32x32xf32>
    %cst_53 = arith.constant 1.000000e+00 : f32
    %115 = vector.broadcast %cst_53 : f32 to vector<32x32xf32>
    %116 = arith.subf %115, %114 : vector<32x32xf32>
    %cst_54 = arith.constant 0.000000e+00 : f32
    %117 = vector.broadcast %cst_54 : f32 to vector<32x32xf32>
    %118 = arith.cmpf oge, %88, %117 : vector<32x32xf32>
    %cst_55 = arith.constant 0.000000e+00 : f32
    %119 = vector.broadcast %cst_55 : f32 to vector<32x32xf32>
    %120 = arith.subf %119, %116 : vector<32x32xf32>
    %121 = arith.select %118, %116, %120 : vector<32x32xi1>, vector<32x32xf32>
    %cst_56 = arith.constant 1.000000e+00 : f32
    %122 = vector.broadcast %cst_56 : f32 to vector<32x32xf32>
    %123 = arith.addf %122, %121 : vector<32x32xf32>
    %124 = arith.mulf %86, %123 : vector<32x32xf32>
    %c1 = arith.constant 1 : index
    %125 = memref.load %arg1[%c1] : memref<4xf32, #tpu.memory_space<smem>>
    %cst_57 = arith.constant dense<0.000000e+00> : vector<32x32xf32>
    %126 = tpu.matmul %1, %124, %cst_57 {dimension_numbers = #tpu.dot_dimension_numbers<[1], [0], [0], [1], [0, 0, 1, 1], [], []>} : vector<32x32xf32>, vector<32x32xf32>, vector<32x32xf32> -> vector<32x32xf32>
    %cst_58 = arith.constant 1.000000e+00 : f32
    %127 = arith.addf %cst_58, %125 : f32
    %128 = vector.broadcast %127 : f32 to vector<32x32xf32>
    %129 = arith.mulf %128, %124 : vector<32x32xf32>
    %130 = arith.addf %126, %129 : vector<32x32xf32>
    %c1_59 = arith.constant 1 : index
    %c0_60 = arith.constant 0 : index
    %c0_61 = arith.constant 0 : index
    %131 = vector.load %arg6[%c1_59, %c0_60, %c0_61] : memref<3x32x32xf32, #tpu.memory_space<vmem>>, vector<1x32x32xf32>
    %132 = vector.shape_cast %131 : vector<1x32x32xf32> to vector<32x32xf32>
    %cst_62 = arith.constant dense<0.000000e+00> : vector<32x32xf32>
    %133 = tpu.matmul %130, %132, %cst_62 {dimension_numbers = #tpu.dot_dimension_numbers<[1], [0], [0], [1], [0, 0, 1, 1], [], []>} : vector<32x32xf32>, vector<32x32xf32>, vector<32x32xf32> -> vector<32x32xf32>
    %c1_63 = arith.constant 1 : index
    %c0_64 = arith.constant 0 : index
    %c0_65 = arith.constant 0 : index
    %134 = vector.load %arg7[%c1_63, %c0_64, %c0_65] : memref<3x1x32xf32, #tpu.memory_space<vmem>>, vector<1x1x32xf32>
    %135 = vector.shape_cast %134 : vector<1x1x32xf32> to vector<1x32xf32>
    %136 = vector.broadcast %135 : vector<1x32xf32> to vector<32x32xf32>
    %137 = arith.addf %133, %136 : vector<32x32xf32>
    %c1_66 = arith.constant 1 : index
    %c0_67 = arith.constant 0 : index
    %c0_68 = arith.constant 0 : index
    %138 = vector.load %arg8[%c1_66, %c0_67, %c0_68] : memref<3x3x32xf32, #tpu.memory_space<vmem>>, vector<1x3x32xf32>
    %139 = vector.shape_cast %138 : vector<1x3x32xf32> to vector<3x32xf32>
    %140 = vector.extract_strided_slice %139 {offsets = [0, 0], sizes = [1, 32], strides = [1, 1]} : vector<3x32xf32> to vector<1x32xf32>
    %141 = vector.extract_strided_slice %139 {offsets = [1, 0], sizes = [1, 32], strides = [1, 1]} : vector<3x32xf32> to vector<1x32xf32>
    %142 = vector.extract_strided_slice %139 {offsets = [2, 0], sizes = [1, 32], strides = [1, 1]} : vector<3x32xf32> to vector<1x32xf32>
    %cst_69 = arith.constant dense<0.000000e+00> : vector<32xf32>
    %143 = vector.multi_reduction <add>, %137, %cst_69 [0] : vector<32x32xf32> to vector<32xf32>
    %144 = vector.shape_cast %143 : vector<32xf32> to vector<1x32xf32>
    %cst_70 = arith.constant 3.200000e+01 : f32
    %145 = vector.broadcast %cst_70 : f32 to vector<1x32xf32>
    %146 = arith.divf %144, %145 : vector<1x32xf32>
    %147 = arith.mulf %140, %146 : vector<1x32xf32>
    %148 = vector.broadcast %147 : vector<1x32xf32> to vector<32x32xf32>
    %149 = arith.subf %137, %148 : vector<32x32xf32>
    %150 = arith.mulf %149, %149 : vector<32x32xf32>
    %cst_71 = arith.constant dense<0.000000e+00> : vector<32xf32>
    %151 = vector.multi_reduction <add>, %150, %cst_71 [0] : vector<32x32xf32> to vector<32xf32>
    %152 = vector.shape_cast %151 : vector<32xf32> to vector<1x32xf32>
    %cst_72 = arith.constant 3.200000e+01 : f32
    %153 = vector.broadcast %cst_72 : f32 to vector<1x32xf32>
    %154 = arith.divf %152, %153 : vector<1x32xf32>
    %155 = vector.broadcast %141 : vector<1x32xf32> to vector<32x32xf32>
    %156 = arith.mulf %155, %149 : vector<32x32xf32>
    %cst_73 = arith.constant 9.99999974E-6 : f32
    %157 = vector.broadcast %cst_73 : f32 to vector<1x32xf32>
    %158 = arith.addf %154, %157 : vector<1x32xf32>
    %159 = math.rsqrt %158 : vector<1x32xf32>
    %160 = vector.broadcast %159 : vector<1x32xf32> to vector<32x32xf32>
    %161 = arith.mulf %156, %160 : vector<32x32xf32>
    %162 = vector.broadcast %142 : vector<1x32xf32> to vector<32x32xf32>
    %163 = arith.addf %161, %162 : vector<32x32xf32>
    %cst_74 = arith.constant 0.000000e+00 : f32
    %164 = vector.broadcast %cst_74 : f32 to vector<32x32xf32>
    %165 = arith.maximumf %163, %164 : vector<32x32xf32>
    %c1_75 = arith.constant 1 : index
    %c0_76 = arith.constant 0 : index
    %c0_77 = arith.constant 0 : index
    %166 = vector.load %arg9[%c1_75, %c0_76, %c0_77] : memref<3x32x32xf32, #tpu.memory_space<vmem>>, vector<1x32x32xf32>
    %167 = vector.shape_cast %166 : vector<1x32x32xf32> to vector<32x32xf32>
    %cst_78 = arith.constant dense<0.000000e+00> : vector<32x32xf32>
    %168 = tpu.matmul %165, %167, %cst_78 {dimension_numbers = #tpu.dot_dimension_numbers<[1], [0], [0], [1], [0, 0, 1, 1], [], []>} : vector<32x32xf32>, vector<32x32xf32>, vector<32x32xf32> -> vector<32x32xf32>
    %c1_79 = arith.constant 1 : index
    %c0_80 = arith.constant 0 : index
    %c0_81 = arith.constant 0 : index
    %169 = vector.load %arg10[%c1_79, %c0_80, %c0_81] : memref<3x1x32xf32, #tpu.memory_space<vmem>>, vector<1x1x32xf32>
    %170 = vector.shape_cast %169 : vector<1x1x32xf32> to vector<1x32xf32>
    %171 = vector.broadcast %170 : vector<1x32xf32> to vector<32x32xf32>
    %172 = arith.addf %168, %171 : vector<32x32xf32>
    %c1_82 = arith.constant 1 : index
    %c0_83 = arith.constant 0 : index
    %c0_84 = arith.constant 0 : index
    %173 = vector.load %arg11[%c1_82, %c0_83, %c0_84] : memref<3x3x32xf32, #tpu.memory_space<vmem>>, vector<1x3x32xf32>
    %174 = vector.shape_cast %173 : vector<1x3x32xf32> to vector<3x32xf32>
    %175 = vector.extract_strided_slice %174 {offsets = [0, 0], sizes = [1, 32], strides = [1, 1]} : vector<3x32xf32> to vector<1x32xf32>
    %176 = vector.extract_strided_slice %174 {offsets = [1, 0], sizes = [1, 32], strides = [1, 1]} : vector<3x32xf32> to vector<1x32xf32>
    %177 = vector.extract_strided_slice %174 {offsets = [2, 0], sizes = [1, 32], strides = [1, 1]} : vector<3x32xf32> to vector<1x32xf32>
    %cst_85 = arith.constant dense<0.000000e+00> : vector<32xf32>
    %178 = vector.multi_reduction <add>, %172, %cst_85 [0] : vector<32x32xf32> to vector<32xf32>
    %179 = vector.shape_cast %178 : vector<32xf32> to vector<1x32xf32>
    %cst_86 = arith.constant 3.200000e+01 : f32
    %180 = vector.broadcast %cst_86 : f32 to vector<1x32xf32>
    %181 = arith.divf %179, %180 : vector<1x32xf32>
    %182 = arith.mulf %175, %181 : vector<1x32xf32>
    %183 = vector.broadcast %182 : vector<1x32xf32> to vector<32x32xf32>
    %184 = arith.subf %172, %183 : vector<32x32xf32>
    %185 = arith.mulf %184, %184 : vector<32x32xf32>
    %cst_87 = arith.constant dense<0.000000e+00> : vector<32xf32>
    %186 = vector.multi_reduction <add>, %185, %cst_87 [0] : vector<32x32xf32> to vector<32xf32>
    %187 = vector.shape_cast %186 : vector<32xf32> to vector<1x32xf32>
    %cst_88 = arith.constant 3.200000e+01 : f32
    %188 = vector.broadcast %cst_88 : f32 to vector<1x32xf32>
    %189 = arith.divf %187, %188 : vector<1x32xf32>
    %190 = vector.broadcast %176 : vector<1x32xf32> to vector<32x32xf32>
    %191 = arith.mulf %190, %184 : vector<32x32xf32>
    %cst_89 = arith.constant 9.99999974E-6 : f32
    %192 = vector.broadcast %cst_89 : f32 to vector<1x32xf32>
    %193 = arith.addf %189, %192 : vector<1x32xf32>
    %194 = math.rsqrt %193 : vector<1x32xf32>
    %195 = vector.broadcast %194 : vector<1x32xf32> to vector<32x32xf32>
    %196 = arith.mulf %191, %195 : vector<32x32xf32>
    %197 = vector.broadcast %177 : vector<1x32xf32> to vector<32x32xf32>
    %198 = arith.addf %196, %197 : vector<32x32xf32>
    %cst_90 = arith.constant 5.000000e-01 : f32
    %199 = vector.broadcast %cst_90 : f32 to vector<32x32xf32>
    %200 = arith.mulf %199, %198 : vector<32x32xf32>
    %cst_91 = arith.constant 0.707106769 : f32
    %201 = vector.broadcast %cst_91 : f32 to vector<32x32xf32>
    %202 = arith.mulf %198, %201 : vector<32x32xf32>
    %203 = math.absf %202 : vector<32x32xf32>
    %cst_92 = arith.constant 0.327591091 : f32
    %204 = vector.broadcast %cst_92 : f32 to vector<32x32xf32>
    %205 = arith.mulf %204, %203 : vector<32x32xf32>
    %cst_93 = arith.constant 1.000000e+00 : f32
    %206 = vector.broadcast %cst_93 : f32 to vector<32x32xf32>
    %207 = arith.addf %206, %205 : vector<32x32xf32>
    %cst_94 = arith.constant 1.000000e+00 : f32
    %208 = vector.broadcast %cst_94 : f32 to vector<32x32xf32>
    %209 = arith.divf %208, %207 : vector<32x32xf32>
    %cst_95 = arith.constant 1.06140542 : f32
    %210 = vector.broadcast %cst_95 : f32 to vector<32x32xf32>
    %211 = arith.mulf %210, %209 : vector<32x32xf32>
    %cst_96 = arith.constant -1.45315206 : f32
    %212 = vector.broadcast %cst_96 : f32 to vector<32x32xf32>
    %213 = arith.addf %211, %212 : vector<32x32xf32>
    %214 = arith.mulf %213, %209 : vector<32x32xf32>
    %cst_97 = arith.constant 1.42141378 : f32
    %215 = vector.broadcast %cst_97 : f32 to vector<32x32xf32>
    %216 = arith.addf %214, %215 : vector<32x32xf32>
    %217 = arith.mulf %216, %209 : vector<32x32xf32>
    %cst_98 = arith.constant -0.284496725 : f32
    %218 = vector.broadcast %cst_98 : f32 to vector<32x32xf32>
    %219 = arith.addf %217, %218 : vector<32x32xf32>
    %220 = arith.mulf %219, %209 : vector<32x32xf32>
    %cst_99 = arith.constant 0.254829586 : f32
    %221 = vector.broadcast %cst_99 : f32 to vector<32x32xf32>
    %222 = arith.addf %220, %221 : vector<32x32xf32>
    %223 = arith.mulf %222, %209 : vector<32x32xf32>
    %cst_100 = arith.constant 0.000000e+00 : f32
    %224 = vector.broadcast %cst_100 : f32 to vector<32x32xf32>
    %225 = arith.subf %224, %203 : vector<32x32xf32>
    %226 = arith.mulf %225, %203 : vector<32x32xf32>
    %227 = math.exp %226 : vector<32x32xf32>
    %228 = arith.mulf %223, %227 : vector<32x32xf32>
    %cst_101 = arith.constant 1.000000e+00 : f32
    %229 = vector.broadcast %cst_101 : f32 to vector<32x32xf32>
    %230 = arith.subf %229, %228 : vector<32x32xf32>
    %cst_102 = arith.constant 0.000000e+00 : f32
    %231 = vector.broadcast %cst_102 : f32 to vector<32x32xf32>
    %232 = arith.cmpf oge, %202, %231 : vector<32x32xf32>
    %cst_103 = arith.constant 0.000000e+00 : f32
    %233 = vector.broadcast %cst_103 : f32 to vector<32x32xf32>
    %234 = arith.subf %233, %230 : vector<32x32xf32>
    %235 = arith.select %232, %230, %234 : vector<32x32xi1>, vector<32x32xf32>
    %cst_104 = arith.constant 1.000000e+00 : f32
    %236 = vector.broadcast %cst_104 : f32 to vector<32x32xf32>
    %237 = arith.addf %236, %235 : vector<32x32xf32>
    %238 = arith.mulf %200, %237 : vector<32x32xf32>
    %c2 = arith.constant 2 : index
    %239 = memref.load %arg1[%c2] : memref<4xf32, #tpu.memory_space<smem>>
    %cst_105 = arith.constant dense<0.000000e+00> : vector<32x32xf32>
    %240 = tpu.matmul %1, %238, %cst_105 {dimension_numbers = #tpu.dot_dimension_numbers<[1], [0], [0], [1], [0, 0, 1, 1], [], []>} : vector<32x32xf32>, vector<32x32xf32>, vector<32x32xf32> -> vector<32x32xf32>
    %cst_106 = arith.constant 1.000000e+00 : f32
    %241 = arith.addf %cst_106, %239 : f32
    %242 = vector.broadcast %241 : f32 to vector<32x32xf32>
    %243 = arith.mulf %242, %238 : vector<32x32xf32>
    %244 = arith.addf %240, %243 : vector<32x32xf32>
    %c2_107 = arith.constant 2 : index
    %c0_108 = arith.constant 0 : index
    %c0_109 = arith.constant 0 : index
    %245 = vector.load %arg6[%c2_107, %c0_108, %c0_109] : memref<3x32x32xf32, #tpu.memory_space<vmem>>, vector<1x32x32xf32>
    %246 = vector.shape_cast %245 : vector<1x32x32xf32> to vector<32x32xf32>
    %cst_110 = arith.constant dense<0.000000e+00> : vector<32x32xf32>
    %247 = tpu.matmul %244, %246, %cst_110 {dimension_numbers = #tpu.dot_dimension_numbers<[1], [0], [0], [1], [0, 0, 1, 1], [], []>} : vector<32x32xf32>, vector<32x32xf32>, vector<32x32xf32> -> vector<32x32xf32>
    %c2_111 = arith.constant 2 : index
    %c0_112 = arith.constant 0 : index
    %c0_113 = arith.constant 0 : index
    %248 = vector.load %arg7[%c2_111, %c0_112, %c0_113] : memref<3x1x32xf32, #tpu.memory_space<vmem>>, vector<1x1x32xf32>
    %249 = vector.shape_cast %248 : vector<1x1x32xf32> to vector<1x32xf32>
    %250 = vector.broadcast %249 : vector<1x32xf32> to vector<32x32xf32>
    %251 = arith.addf %247, %250 : vector<32x32xf32>
    %c2_114 = arith.constant 2 : index
    %c0_115 = arith.constant 0 : index
    %c0_116 = arith.constant 0 : index
    %252 = vector.load %arg8[%c2_114, %c0_115, %c0_116] : memref<3x3x32xf32, #tpu.memory_space<vmem>>, vector<1x3x32xf32>
    %253 = vector.shape_cast %252 : vector<1x3x32xf32> to vector<3x32xf32>
    %254 = vector.extract_strided_slice %253 {offsets = [0, 0], sizes = [1, 32], strides = [1, 1]} : vector<3x32xf32> to vector<1x32xf32>
    %255 = vector.extract_strided_slice %253 {offsets = [1, 0], sizes = [1, 32], strides = [1, 1]} : vector<3x32xf32> to vector<1x32xf32>
    %256 = vector.extract_strided_slice %253 {offsets = [2, 0], sizes = [1, 32], strides = [1, 1]} : vector<3x32xf32> to vector<1x32xf32>
    %cst_117 = arith.constant dense<0.000000e+00> : vector<32xf32>
    %257 = vector.multi_reduction <add>, %251, %cst_117 [0] : vector<32x32xf32> to vector<32xf32>
    %258 = vector.shape_cast %257 : vector<32xf32> to vector<1x32xf32>
    %cst_118 = arith.constant 3.200000e+01 : f32
    %259 = vector.broadcast %cst_118 : f32 to vector<1x32xf32>
    %260 = arith.divf %258, %259 : vector<1x32xf32>
    %261 = arith.mulf %254, %260 : vector<1x32xf32>
    %262 = vector.broadcast %261 : vector<1x32xf32> to vector<32x32xf32>
    %263 = arith.subf %251, %262 : vector<32x32xf32>
    %264 = arith.mulf %263, %263 : vector<32x32xf32>
    %cst_119 = arith.constant dense<0.000000e+00> : vector<32xf32>
    %265 = vector.multi_reduction <add>, %264, %cst_119 [0] : vector<32x32xf32> to vector<32xf32>
    %266 = vector.shape_cast %265 : vector<32xf32> to vector<1x32xf32>
    %cst_120 = arith.constant 3.200000e+01 : f32
    %267 = vector.broadcast %cst_120 : f32 to vector<1x32xf32>
    %268 = arith.divf %266, %267 : vector<1x32xf32>
    %269 = vector.broadcast %255 : vector<1x32xf32> to vector<32x32xf32>
    %270 = arith.mulf %269, %263 : vector<32x32xf32>
    %cst_121 = arith.constant 9.99999974E-6 : f32
    %271 = vector.broadcast %cst_121 : f32 to vector<1x32xf32>
    %272 = arith.addf %268, %271 : vector<1x32xf32>
    %273 = math.rsqrt %272 : vector<1x32xf32>
    %274 = vector.broadcast %273 : vector<1x32xf32> to vector<32x32xf32>
    %275 = arith.mulf %270, %274 : vector<32x32xf32>
    %276 = vector.broadcast %256 : vector<1x32xf32> to vector<32x32xf32>
    %277 = arith.addf %275, %276 : vector<32x32xf32>
    %cst_122 = arith.constant 0.000000e+00 : f32
    %278 = vector.broadcast %cst_122 : f32 to vector<32x32xf32>
    %279 = arith.maximumf %277, %278 : vector<32x32xf32>
    %c2_123 = arith.constant 2 : index
    %c0_124 = arith.constant 0 : index
    %c0_125 = arith.constant 0 : index
    %280 = vector.load %arg9[%c2_123, %c0_124, %c0_125] : memref<3x32x32xf32, #tpu.memory_space<vmem>>, vector<1x32x32xf32>
    %281 = vector.shape_cast %280 : vector<1x32x32xf32> to vector<32x32xf32>
    %cst_126 = arith.constant dense<0.000000e+00> : vector<32x32xf32>
    %282 = tpu.matmul %279, %281, %cst_126 {dimension_numbers = #tpu.dot_dimension_numbers<[1], [0], [0], [1], [0, 0, 1, 1], [], []>} : vector<32x32xf32>, vector<32x32xf32>, vector<32x32xf32> -> vector<32x32xf32>
    %c2_127 = arith.constant 2 : index
    %c0_128 = arith.constant 0 : index
    %c0_129 = arith.constant 0 : index
    %283 = vector.load %arg10[%c2_127, %c0_128, %c0_129] : memref<3x1x32xf32, #tpu.memory_space<vmem>>, vector<1x1x32xf32>
    %284 = vector.shape_cast %283 : vector<1x1x32xf32> to vector<1x32xf32>
    %285 = vector.broadcast %284 : vector<1x32xf32> to vector<32x32xf32>
    %286 = arith.addf %282, %285 : vector<32x32xf32>
    %c2_130 = arith.constant 2 : index
    %c0_131 = arith.constant 0 : index
    %c0_132 = arith.constant 0 : index
    %287 = vector.load %arg11[%c2_130, %c0_131, %c0_132] : memref<3x3x32xf32, #tpu.memory_space<vmem>>, vector<1x3x32xf32>
    %288 = vector.shape_cast %287 : vector<1x3x32xf32> to vector<3x32xf32>
    %289 = vector.extract_strided_slice %288 {offsets = [0, 0], sizes = [1, 32], strides = [1, 1]} : vector<3x32xf32> to vector<1x32xf32>
    %290 = vector.extract_strided_slice %288 {offsets = [1, 0], sizes = [1, 32], strides = [1, 1]} : vector<3x32xf32> to vector<1x32xf32>
    %291 = vector.extract_strided_slice %288 {offsets = [2, 0], sizes = [1, 32], strides = [1, 1]} : vector<3x32xf32> to vector<1x32xf32>
    %cst_133 = arith.constant dense<0.000000e+00> : vector<32xf32>
    %292 = vector.multi_reduction <add>, %286, %cst_133 [0] : vector<32x32xf32> to vector<32xf32>
    %293 = vector.shape_cast %292 : vector<32xf32> to vector<1x32xf32>
    %cst_134 = arith.constant 3.200000e+01 : f32
    %294 = vector.broadcast %cst_134 : f32 to vector<1x32xf32>
    %295 = arith.divf %293, %294 : vector<1x32xf32>
    %296 = arith.mulf %289, %295 : vector<1x32xf32>
    %297 = vector.broadcast %296 : vector<1x32xf32> to vector<32x32xf32>
    %298 = arith.subf %286, %297 : vector<32x32xf32>
    %299 = arith.mulf %298, %298 : vector<32x32xf32>
    %cst_135 = arith.constant dense<0.000000e+00> : vector<32xf32>
    %300 = vector.multi_reduction <add>, %299, %cst_135 [0] : vector<32x32xf32> to vector<32xf32>
    %301 = vector.shape_cast %300 : vector<32xf32> to vector<1x32xf32>
    %cst_136 = arith.constant 3.200000e+01 : f32
    %302 = vector.broadcast %cst_136 : f32 to vector<1x32xf32>
    %303 = arith.divf %301, %302 : vector<1x32xf32>
    %304 = vector.broadcast %290 : vector<1x32xf32> to vector<32x32xf32>
    %305 = arith.mulf %304, %298 : vector<32x32xf32>
    %cst_137 = arith.constant 9.99999974E-6 : f32
    %306 = vector.broadcast %cst_137 : f32 to vector<1x32xf32>
    %307 = arith.addf %303, %306 : vector<1x32xf32>
    %308 = math.rsqrt %307 : vector<1x32xf32>
    %309 = vector.broadcast %308 : vector<1x32xf32> to vector<32x32xf32>
    %310 = arith.mulf %305, %309 : vector<32x32xf32>
    %311 = vector.broadcast %291 : vector<1x32xf32> to vector<32x32xf32>
    %312 = arith.addf %310, %311 : vector<32x32xf32>
    %cst_138 = arith.constant 5.000000e-01 : f32
    %313 = vector.broadcast %cst_138 : f32 to vector<32x32xf32>
    %314 = arith.mulf %313, %312 : vector<32x32xf32>
    %cst_139 = arith.constant 0.707106769 : f32
    %315 = vector.broadcast %cst_139 : f32 to vector<32x32xf32>
    %316 = arith.mulf %312, %315 : vector<32x32xf32>
    %317 = math.absf %316 : vector<32x32xf32>
    %cst_140 = arith.constant 0.327591091 : f32
    %318 = vector.broadcast %cst_140 : f32 to vector<32x32xf32>
    %319 = arith.mulf %318, %317 : vector<32x32xf32>
    %cst_141 = arith.constant 1.000000e+00 : f32
    %320 = vector.broadcast %cst_141 : f32 to vector<32x32xf32>
    %321 = arith.addf %320, %319 : vector<32x32xf32>
    %cst_142 = arith.constant 1.000000e+00 : f32
    %322 = vector.broadcast %cst_142 : f32 to vector<32x32xf32>
    %323 = arith.divf %322, %321 : vector<32x32xf32>
    %cst_143 = arith.constant 1.06140542 : f32
    %324 = vector.broadcast %cst_143 : f32 to vector<32x32xf32>
    %325 = arith.mulf %324, %323 : vector<32x32xf32>
    %cst_144 = arith.constant -1.45315206 : f32
    %326 = vector.broadcast %cst_144 : f32 to vector<32x32xf32>
    %327 = arith.addf %325, %326 : vector<32x32xf32>
    %328 = arith.mulf %327, %323 : vector<32x32xf32>
    %cst_145 = arith.constant 1.42141378 : f32
    %329 = vector.broadcast %cst_145 : f32 to vector<32x32xf32>
    %330 = arith.addf %328, %329 : vector<32x32xf32>
    %331 = arith.mulf %330, %323 : vector<32x32xf32>
    %cst_146 = arith.constant -0.284496725 : f32
    %332 = vector.broadcast %cst_146 : f32 to vector<32x32xf32>
    %333 = arith.addf %331, %332 : vector<32x32xf32>
    %334 = arith.mulf %333, %323 : vector<32x32xf32>
    %cst_147 = arith.constant 0.254829586 : f32
    %335 = vector.broadcast %cst_147 : f32 to vector<32x32xf32>
    %336 = arith.addf %334, %335 : vector<32x32xf32>
    %337 = arith.mulf %336, %323 : vector<32x32xf32>
    %cst_148 = arith.constant 0.000000e+00 : f32
    %338 = vector.broadcast %cst_148 : f32 to vector<32x32xf32>
    %339 = arith.subf %338, %317 : vector<32x32xf32>
    %340 = arith.mulf %339, %317 : vector<32x32xf32>
    %341 = math.exp %340 : vector<32x32xf32>
    %342 = arith.mulf %337, %341 : vector<32x32xf32>
    %cst_149 = arith.constant 1.000000e+00 : f32
    %343 = vector.broadcast %cst_149 : f32 to vector<32x32xf32>
    %344 = arith.subf %343, %342 : vector<32x32xf32>
    %cst_150 = arith.constant 0.000000e+00 : f32
    %345 = vector.broadcast %cst_150 : f32 to vector<32x32xf32>
    %346 = arith.cmpf oge, %316, %345 : vector<32x32xf32>
    %cst_151 = arith.constant 0.000000e+00 : f32
    %347 = vector.broadcast %cst_151 : f32 to vector<32x32xf32>
    %348 = arith.subf %347, %344 : vector<32x32xf32>
    %349 = arith.select %346, %344, %348 : vector<32x32xi1>, vector<32x32xf32>
    %cst_152 = arith.constant 1.000000e+00 : f32
    %350 = vector.broadcast %cst_152 : f32 to vector<32x32xf32>
    %351 = arith.addf %350, %349 : vector<32x32xf32>
    %352 = arith.mulf %314, %351 : vector<32x32xf32>
    %c0_153 = arith.constant 0 : index
    %c0_154 = arith.constant 0 : index
    %353 = vector.load %arg12[%c0_153, %c0_154] : memref<32x32xf32, #tpu.memory_space<vmem>>, vector<32x32xf32>
    %cst_155 = arith.constant dense<0.000000e+00> : vector<32x32xf32>
    %354 = tpu.matmul %353, %352, %cst_155 {dimension_numbers = #tpu.dot_dimension_numbers<[1], [0], [0], [1], [0, 0, 1, 1], [], []>} : vector<32x32xf32>, vector<32x32xf32>, vector<32x32xf32> -> vector<32x32xf32>
    %c0_156 = arith.constant 0 : index
    %c0_157 = arith.constant 0 : index
    %355 = vector.load %arg13[%c0_156, %c0_157] : memref<32x32xf32, #tpu.memory_space<vmem>>, vector<32x32xf32>
    %356 = arith.addf %354, %355 : vector<32x32xf32>
    %c0_158 = arith.constant 0 : index
    %c0_159 = arith.constant 0 : index
    %357 = vector.load %arg14[%c0_158, %c0_159] : memref<32x128xf32, #tpu.memory_space<vmem>>, vector<32x128xf32>
    %cst_160 = arith.constant dense<0.000000e+00> : vector<32x128xf32>
    %358 = tpu.matmul %356, %357, %cst_160 {dimension_numbers = #tpu.dot_dimension_numbers<[1], [0], [0], [1], [0, 0, 1, 1], [], []>} : vector<32x32xf32>, vector<32x128xf32>, vector<32x128xf32> -> vector<32x128xf32>
    %c0_161 = arith.constant 0 : index
    %c0_162 = arith.constant 0 : index
    %359 = vector.load %arg15[%c0_161, %c0_162] : memref<1x128xf32, #tpu.memory_space<vmem>>, vector<1x128xf32>
    %360 = vector.broadcast %359 : vector<1x128xf32> to vector<32x128xf32>
    %361 = arith.addf %358, %360 : vector<32x128xf32>
    %c0_163 = arith.constant 0 : index
    %c0_164 = arith.constant 0 : index
    %c0_165 = arith.constant 0 : index
    %362 = vector.load %arg16[%c0_163, %c0_164, %c0_165] : memref<1x32x128xf32, #tpu.memory_space<vmem>>, vector<1x32x128xf32>
    %363 = vector.shape_cast %362 : vector<1x32x128xf32> to vector<32x128xf32>
    %364 = vector.shape_cast %361 : vector<32x128xf32> to vector<1x32x128xf32>
    tpu.vector_store %arg16[%c0_163, %c0_164, %c0_165], %364 {strides = array<i32>} : memref<1x32x128xf32, #tpu.memory_space<vmem>>, vector<1x32x128xf32>,
    return
  }
  func.func @transform_0(%arg0: i32) -> i32 {
    %c0_i32 = arith.constant 0 : i32
    %c0_i32_0 = arith.constant 0 : i32
    return %c0_i32 : i32
  }
  func.func @transform_1(%arg0: i32) -> (i32, i32, i32) {
    %c0_i32 = arith.constant 0 : i32
    %c0_i32_0 = arith.constant 0 : i32
    %c0_i32_1 = arith.constant 0 : i32
    return %arg0, %c0_i32, %c0_i32_0 : i32, i32, i32
  }
  func.func @transform_2(%arg0: i32) -> (i32, i32, i32) {
    %c0_i32 = arith.constant 0 : i32
    %c0_i32_0 = arith.constant 0 : i32
    %c0_i32_1 = arith.constant 0 : i32
    return %arg0, %c0_i32, %c0_i32_0 : i32, i32, i32
  }
  func.func @transform_3(%arg0: i32) -> (i32, i32) {
    %c0_i32 = arith.constant 0 : i32
    %c0_i32_0 = arith.constant 0 : i32
    %c0_i32_1 = arith.constant 0 : i32
    return %c0_i32, %c0_i32_0 : i32, i32
  }
  func.func @transform_4(%arg0: i32) -> (i32, i32) {
    %c0_i32 = arith.constant 0 : i32
    %c0_i32_0 = arith.constant 0 : i32
    %c0_i32_1 = arith.constant 0 : i32
    return %c0_i32, %c0_i32_0 : i32, i32
  }
  func.func @transform_5(%arg0: i32) -> (i32, i32, i32) {
    %c0_i32 = arith.constant 0 : i32
    %c0_i32_0 = arith.constant 0 : i32
    %c0_i32_1 = arith.constant 0 : i32
    %c0_i32_2 = arith.constant 0 : i32
    return %c0_i32, %c0_i32_0, %c0_i32_1 : i32, i32, i32
  }
  func.func @transform_6(%arg0: i32) -> (i32, i32, i32) {
    %c0_i32 = arith.constant 0 : i32
    %c0_i32_0 = arith.constant 0 : i32
    %c0_i32_1 = arith.constant 0 : i32
    %c0_i32_2 = arith.constant 0 : i32
    return %c0_i32, %c0_i32_0, %c0_i32_1 : i32, i32, i32
  }
  func.func @transform_7(%arg0: i32) -> (i32, i32, i32) {
    %c0_i32 = arith.constant 0 : i32
    %c0_i32_0 = arith.constant 0 : i32
    %c0_i32_1 = arith.constant 0 : i32
    %c0_i32_2 = arith.constant 0 : i32
    return %c0_i32, %c0_i32_0, %c0_i32_1 : i32, i32, i32
  }
  func.func @transform_8(%arg0: i32) -> (i32, i32, i32) {
    %c0_i32 = arith.constant 0 : i32
    %c0_i32_0 = arith.constant 0 : i32
    %c0_i32_1 = arith.constant 0 : i32
    %c0_i32_2 = arith.constant 0 : i32
    return %c0_i32, %c0_i32_0, %c0_i32_1 : i32, i32, i32
  }
  func.func @transform_9(%arg0: i32) -> (i32, i32, i32) {
    %c0_i32 = arith.constant 0 : i32
    %c0_i32_0 = arith.constant 0 : i32
    %c0_i32_1 = arith.constant 0 : i32
    %c0_i32_2 = arith.constant 0 : i32
    return %c0_i32, %c0_i32_0, %c0_i32_1 : i32, i32, i32
  }
  func.func @transform_10(%arg0: i32) -> (i32, i32, i32) {
    %c0_i32 = arith.constant 0 : i32
    %c0_i32_0 = arith.constant 0 : i32
    %c0_i32_1 = arith.constant 0 : i32
    %c0_i32_2 = arith.constant 0 : i32
    return %c0_i32, %c0_i32_0, %c0_i32_1 : i32, i32, i32
  }
  func.func @transform_11(%arg0: i32) -> (i32, i32) {
    %c0_i32 = arith.constant 0 : i32
    %c0_i32_0 = arith.constant 0 : i32
    %c0_i32_1 = arith.constant 0 : i32
    return %c0_i32, %c0_i32_0 : i32, i32
  }
  func.func @transform_12(%arg0: i32) -> (i32, i32) {
    %c0_i32 = arith.constant 0 : i32
    %c0_i32_0 = arith.constant 0 : i32
    %c0_i32_1 = arith.constant 0 : i32
    return %c0_i32, %c0_i32_0 : i32, i32
  }
  func.func @transform_13(%arg0: i32) -> (i32, i32) {
    %c0_i32 = arith.constant 0 : i32
    %c0_i32_0 = arith.constant 0 : i32
    %c0_i32_1 = arith.constant 0 : i32
    return %c0_i32, %c0_i32_0 : i32, i32
  }
  func.func @transform_14(%arg0: i32) -> (i32, i32) {
    %c0_i32 = arith.constant 0 : i32
    %c0_i32_0 = arith.constant 0 : i32
    %c0_i32_1 = arith.constant 0 : i32
    return %c0_i32, %c0_i32_0 : i32, i32
  }
  func.func @transform_15(%arg0: i32) -> (i32, i32, i32) {
    %c0_i32 = arith.constant 0 : i32
    %c0_i32_0 = arith.constant 0 : i32
    %c0_i32_1 = arith.constant 0 : i32
    return %arg0, %c0_i32, %c0_i32_0 : i32, i32, i32
  }
}

</mosaic_0001>

<llo_original>
// kernel: tpu_custom_call.1
$region0: #{tpu_custom_call.1}
  #allocation0 [shape = 'u32[]', space=smem, size = 0x4, offset = 0x4, fixed_abs, tag = 'smem constant byte address 0x4 - core index']
  #allocation1 [shape = 'u32[144,128]{1,0:T(1,128)}', space=vmem, size = 0x12000, scoped, tag = 'internal scratch']
  %s0 = inlined_call_operand.hbm [shape: f32[4], index: 0, kind: input, shape index: {}]
  %s1 = inlined_call_operand.vmem [shape: f32[2,32,1], index: 1, kind: input, shape index: {}]
  %s2 = inlined_call_operand.hbm [shape: f32[2,32,32], index: 2, kind: input, shape index: {}]
  %s3 = inlined_call_operand.hbm [shape: f32[1,32], index: 3, kind: input, shape index: {}]
  %s4 = inlined_call_operand.hbm [shape: f32[1,32], index: 4, kind: input, shape index: {}]
  %s5 = inlined_call_operand.hbm [shape: f32[3,32,32], index: 5, kind: input, shape index: {}]
  %s6 = inlined_call_operand.hbm [shape: f32[3,1,32], index: 6, kind: input, shape index: {}]
  %s7 = inlined_call_operand.hbm [shape: f32[3,3,32], index: 7, kind: input, shape index: {}]
  %s8 = inlined_call_operand.vmem [shape: f32[3,32,32], index: 8, kind: input, shape index: {}]
  %s9 = inlined_call_operand.vmem [shape: f32[3,1,32], index: 9, kind: input, shape index: {}]
  %s10 = inlined_call_operand.hbm [shape: f32[3,3,32], index: 10, kind: input, shape index: {}]
  %s11 = inlined_call_operand.hbm [shape: f32[32,32], index: 11, kind: input, shape index: {}]
  %s12 = inlined_call_operand.hbm [shape: f32[32,32], index: 12, kind: input, shape index: {}]
  %s13 = inlined_call_operand.hbm [shape: f32[32,128], index: 13, kind: input, shape index: {}]
  %s14 = inlined_call_operand.vmem [shape: f32[1,128], index: 14, kind: input, shape index: {}]
  %s15 = inlined_call_operand.hbm [shape: f32[2,32,128], index: 15, kind: output, shape index: {}]
  %s16 = sld [smem:[#allocation0]]
  $region137: #{tpu_custom_call.1} parent=0
    _
  %s18 = ssub.s32 1, %s16
  %s19 = scalar_select 0, %s18, %s16
  $region1: #{tpu_custom_call.1} parent=0
    #allocation2 [shape = 'u8[512]{0}', space=smem, size = 0x200, scoped, tag = 'input window, operand 0, single buffered']
    #allocation3 [shape = 's32[2]{0}', space=sflag, size = 0x8, scoped, tag = 'scoped memory for tpu_custom_call.1']
    #allocation4 [shape = 's32[2]{0}', space=sflag, size = 0x8, scoped, tag = 'scoped memory for tpu_custom_call.1']
    #allocation5 [shape = 's32[2]{0}', space=sflag, size = 0x8, scoped, tag = 'scoped memory for tpu_custom_call.1']
    #allocation6 [shape = 'u8[32768]{0}', space=vmem, size = 0x8000, scoped, tag = 'input window, operand 2']
    #allocation7 [shape = 'u8[512]{0}', space=vmem, size = 0x400, scoped, tag = 'input window, operand 3, single buffered']
    #allocation8 [shape = 's32[1]{0}', space=sflag, size = 0x4, scoped, tag = 'scoped memory for tpu_custom_call.1']
    #allocation9 [shape = 'u8[512]{0}', space=vmem, size = 0x400, scoped, tag = 'input window, operand 4, single buffered']
    #allocation10 [shape = 'u8[49152]{0}', space=vmem, size = 0xc000, scoped, tag = 'input window, operand 5, single buffered']
    #allocation11 [shape = 's32[1]{0}', space=sflag, size = 0x4, scoped, tag = 'scoped memory for tpu_custom_call.1']
    #allocation12 [shape = 'u8[1536]{0}', space=vmem, size = 0x800, scoped, tag = 'input window, operand 6, single buffered']
    #allocation13 [shape = 'u8[6144]{0}', space=vmem, size = 0x1800, scoped, tag = 'input window, operand 7, single buffered']
    #allocation14 [shape = 's32[1]{0}', space=sflag, size = 0x4, scoped, tag = 'scoped memory for tpu_custom_call.1']
    #allocation15 [shape = 'u8[6144]{0}', space=vmem, size = 0x1800, scoped, tag = 'input window, operand 10, single buffered']
    #allocation16 [shape = 'u8[16384]{0}', space=vmem, size = 0x4000, scoped, tag = 'input window, operand 11, single buffered']
    #allocation17 [shape = 's32[1]{0}', space=sflag, size = 0x4, scoped, tag = 'scoped memory for tpu_custom_call.1']
    #allocation18 [shape = 'u8[16384]{0}', space=vmem, size = 0x4000, scoped, tag = 'input window, operand 12, single buffered']
    #allocation19 [shape = 'u8[16384]{0}', space=vmem, size = 0x4000, scoped, tag = 'input window, operand 13, single buffered']
    #allocation20 [shape = 's32[1]{0}', space=sflag, size = 0x4, scoped, tag = 'scoped memory for tpu_custom_call.1']
    #allocation21 [shape = 'u8[32768]{0}', space=vmem, size = 0x8000, scoped, tag = 'output window, operand 0']
    %20 = vsyncpa [#allocation5], 0
    %21 = vsyncpa [#allocation3], 0
    %s22 = scalar_lea.sflag [#allocation3], 1
    %23 = vsyncpa %s22, 0
    %24 = vsyncpa [#allocation8], 0
    %25 = vsyncpa [#allocation11], 0
    %26 = vsyncpa [#allocation14], 0
    %27 = vsyncpa [#allocation17], 0
    %28 = vsyncpa [#allocation20], 0
    %29 = vsyncpa [#allocation4], 0
    %s30 = scalar_lea.sflag [#allocation4], 1
    %31 = vsyncpa %s30, 0
    loop: start=0, step=1, limit=4
    $region2: #{tpu_custom_call.1} parent=1 // loop_pre_header
      _
    $region3: #{tpu_custom_call.1} parent=1 // loop_header
      %s33 = sphi 0, %s37
      %p34 = scmp.ge.s32.totalorder %s33, 4
      %s41 = sphi 0, %s41
      %s43 = sphi 0, %s41
      %s44 = sphi 0, %s43
      %s58 = sphi 0, %s44
      %s64 = sphi 0, %s66
      %s67 = sphi 0, %s64
      %s68 = sphi 0, %s67
      %s84 = sphi 0, %s68
      %s90 = sphi 0, %s92
      %s93 = sphi 0, %s90
      %s94 = sphi 0, %s93
      %s110 = sphi 0, %s94
      %s114 = sphi 0, %s114
      %s116 = sphi 0, %s114
      %s117 = sphi 0, %s116
      %s131 = sphi 0, %s117
      %s135 = sphi 0, %s135
      %s137 = sphi 0, %s135
      %s138 = sphi 0, %s137
      %s152 = sphi 0, %s138
      %s156 = sphi 0, %s156
      %s158 = sphi 0, %s156
      %s159 = sphi 0, %s158
      %s173 = sphi 0, %s159
      %s177 = sphi 0, %s177
      %s179 = sphi 0, %s177
      %s180 = sphi 0, %s179
      %s194 = sphi 0, %s180
      %s198 = sphi 0, %s198
      %s200 = sphi 0, %s198
      %s201 = sphi 0, %s200
      %s215 = sphi 0, %s201
      %s219 = sphi 0, %s219
      %s221 = sphi 0, %s219
      %s222 = sphi 0, %s221
      %s236 = sphi 0, %s222
      %s240 = sphi 0, %s240
      %s242 = sphi 0, %s240
      %s243 = sphi 0, %s242
      %s257 = sphi 0, %s243
      %s261 = sphi 0, %s261
      %s263 = sphi 0, %s261
      %s264 = sphi 0, %s263
      %s278 = sphi 0, %s264
      %s282 = sphi 0, %s282
      %s284 = sphi 0, %s282
      %s285 = sphi 0, %s284
      %s299 = sphi 0, %s285
      %s303 = sphi 0, %s303
      %s305 = sphi 0, %s303
      %s306 = sphi 0, %s305
      %s320 = sphi 0, %s306
      %s324 = sphi 0, %s324
      %s326 = sphi 0, %s324
      %s327 = sphi 0, %s326
      %s341 = sphi 0, %s327
      %s345 = sphi 0, %s345
      %s347 = sphi 0, %s345
      %s348 = sphi 0, %s347
      %s362 = sphi 0, %s348
      %s368 = sphi 0, %s370
      %s371 = sphi 0, %s368
      %s372 = sphi 0, %s371
      %s388 = sphi 0, %s372
    $region4: #{tpu_custom_call.1} parent=1 // loop_header_branch
      %36 = sbr.rel (%p34) target = $region8
    $region5: #{tpu_custom_call.1} parent=1 // loop_body
      %s38 = ssub.s32 %s33, 1
      %s39 = ssub.s32 %s33, 2
      %s40 = sadd.s32 %s33, 1
      %s42 = sadd.s32 %s41, 1
      %p45 = scmp.eq.s32.totalorder %s33, 1
      %p46 = scmp.ne.s32.totalorder %s41, %s43
      %p47 = scmp.eq.s32.totalorder %s33, 0
      %p48 = por %p46, %p47
      %p49 = scmp.ne.s32.totalorder %s41, %s43
      %p50 = scmp.eq.s32.totalorder %s38, 1
      %p51 = por %p49, %p50
      %p52 = scmp.ne.s32.totalorder %s43, %s44
      %p53 = scmp.eq.s32.totalorder %s38, 0
      %p54 = por %p52, %p53
      %p55 = scmp.ne.s32.totalorder %s43, %s44
      %p56 = scmp.eq.s32.totalorder %s39, 1
      %p57 = por %p55, %p56
      %p59 = scmp.ne.s32.totalorder %s44, %s58
      %p60 = scmp.eq.s32.totalorder %s39, 0
      %p61 = por %p59, %p60
      %s62 = ssub.s32 %s33, %s40
      %p63 = scmp.eq.s32.totalorder %s62, 0
      %s65 = sadd.s32 %s64, 1
      %s66 = scalar_select %p63, %s64, %s65
      %p69 = pneg %p63
      %p70 = scmp.eq.s32.totalorder %s33, 1
      %p71 = por %p69, %p70
      %p72 = scmp.ne.s32.totalorder %s64, %s67
      %p73 = scmp.eq.s32.totalorder %s33, 0
      %p74 = por %p72, %p73
      %p75 = scmp.ne.s32.totalorder %s64, %s67
      %p76 = scmp.eq.s32.totalorder %s38, 1
      %p77 = por %p75, %p76
      %p78 = scmp.ne.s32.totalorder %s67, %s68
      %p79 = scmp.eq.s32.totalorder %s38, 0
      %p80 = por %p78, %p79
      %p81 = scmp.ne.s32.totalorder %s67, %s68
      %p82 = scmp.eq.s32.totalorder %s39, 1
      %p83 = por %p81, %p82
      %p85 = scmp.ne.s32.totalorder %s68, %s84
      %p86 = scmp.eq.s32.totalorder %s39, 0
      %p87 = por %p85, %p86
      %s88 = ssub.s32 %s33, %s40
      %p89 = scmp.eq.s32.totalorder %s88, 0
      %s91 = sadd.s32 %s90, 1
      %s92 = scalar_select %p89, %s90, %s91
      %p95 = pneg %p89
      %p96 = scmp.eq.s32.totalorder %s33, 1
      %p97 = por %p95, %p96
      %p98 = scmp.ne.s32.totalorder %s90, %s93
      %p99 = scmp.eq.s32.totalorder %s33, 0
      %p100 = por %p98, %p99
      %p101 = scmp.ne.s32.totalorder %s90, %s93
      %p102 = scmp.eq.s32.totalorder %s38, 1
      %p103 = por %p101, %p102
      %p104 = scmp.ne.s32.totalorder %s93, %s94
      %p105 = scmp.eq.s32.totalorder %s38, 0
      %p106 = por %p104, %p105
      %p107 = scmp.ne.s32.totalorder %s93, %s94
      %p108 = scmp.eq.s32.totalorder %s39, 1
      %p109 = por %p107, %p108
      %p111 = scmp.ne.s32.totalorder %s94, %s110
      %p112 = scmp.eq.s32.totalorder %s39, 0
      %p113 = por %p111, %p112
      %s115 = sadd.s32 %s114, 1
      %p118 = scmp.eq.s32.totalorder %s33, 1
      %p119 = scmp.ne.s32.totalorder %s114, %s116
      %p120 = scmp.eq.s32.totalorder %s33, 0
      %p121 = por %p119, %p120
      %p122 = scmp.ne.s32.totalorder %s114, %s116
      %p123 = scmp.eq.s32.totalorder %s38, 1
      %p124 = por %p122, %p123
      %p125 = scmp.ne.s32.totalorder %s116, %s117
      %p126 = scmp.eq.s32.totalorder %s38, 0
      %p127 = por %p125, %p126
      %p128 = scmp.ne.s32.totalorder %s116, %s117
      %p129 = scmp.eq.s32.totalorder %s39, 1
      %p130 = por %p128, %p129
      %p132 = scmp.ne.s32.totalorder %s117, %s131
      %p133 = scmp.eq.s32.totalorder %s39, 0
      %p134 = por %p132, %p133
      %s136 = sadd.s32 %s135, 1
      %p139 = scmp.eq.s32.totalorder %s33, 1
      %p140 = scmp.ne.s32.totalorder %s135, %s137
      %p141 = scmp.eq.s32.totalorder %s33, 0
      %p142 = por %p140, %p141
      %p143 = scmp.ne.s32.totalorder %s135, %s137
      %p144 = scmp.eq.s32.totalorder %s38, 1
      %p145 = por %p143, %p144
      %p146 = scmp.ne.s32.totalorder %s137, %s138
      %p147 = scmp.eq.s32.totalorder %s38, 0
      %p148 = por %p146, %p147
      %p149 = scmp.ne.s32.totalorder %s137, %s138
      %p150 = scmp.eq.s32.totalorder %s39, 1
      %p151 = por %p149, %p150
      %p153 = scmp.ne.s32.totalorder %s138, %s152
      %p154 = scmp.eq.s32.totalorder %s39, 0
      %p155 = por %p153, %p154
      %s157 = sadd.s32 %s156, 1
      %p160 = scmp.eq.s32.totalorder %s33, 1
      %p161 = scmp.ne.s32.totalorder %s156, %s158
      %p162 = scmp.eq.s32.totalorder %s33, 0
      %p163 = por %p161, %p162
      %p164 = scmp.ne.s32.totalorder %s156, %s158
      %p165 = scmp.eq.s32.totalorder %s38, 1
      %p166 = por %p164, %p165
      %p167 = scmp.ne.s32.totalorder %s158, %s159
      %p168 = scmp.eq.s32.totalorder %s38, 0
      %p169 = por %p167, %p168
      %p170 = scmp.ne.s32.totalorder %s158, %s159
      %p171 = scmp.eq.s32.totalorder %s39, 1
      %p172 = por %p170, %p171
      %p174 = scmp.ne.s32.totalorder %s159, %s173
      %p175 = scmp.eq.s32.totalorder %s39, 0
      %p176 = por %p174, %p175
      %s178 = sadd.s32 %s177, 1
      %p181 = scmp.eq.s32.totalorder %s33, 1
      %p182 = scmp.ne.s32.totalorder %s177, %s179
      %p183 = scmp.eq.s32.totalorder %s33, 0
      %p184 = por %p182, %p183
      %p185 = scmp.ne.s32.totalorder %s177, %s179
      %p186 = scmp.eq.s32.totalorder %s38, 1
      %p187 = por %p185, %p186
      %p188 = scmp.ne.s32.totalorder %s179, %s180
      %p189 = scmp.eq.s32.totalorder %s38, 0
      %p190 = por %p188, %p189
      %p191 = scmp.ne.s32.totalorder %s179, %s180
      %p192 = scmp.eq.s32.totalorder %s39, 1
      %p193 = por %p191, %p192
      %p195 = scmp.ne.s32.totalorder %s180, %s194
      %p196 = scmp.eq.s32.totalorder %s39, 0
      %p197 = por %p195, %p196
      %s199 = sadd.s32 %s198, 1
      %p202 = scmp.eq.s32.totalorder %s33, 1
      %p203 = scmp.ne.s32.totalorder %s198, %s200
      %p204 = scmp.eq.s32.totalorder %s33, 0
      %p205 = por %p203, %p204
      %p206 = scmp.ne.s32.totalorder %s198, %s200
      %p207 = scmp.eq.s32.totalorder %s38, 1
      %p208 = por %p206, %p207
      %p209 = scmp.ne.s32.totalorder %s200, %s201
      %p210 = scmp.eq.s32.totalorder %s38, 0
      %p211 = por %p209, %p210
      %p212 = scmp.ne.s32.totalorder %s200, %s201
      %p213 = scmp.eq.s32.totalorder %s39, 1
      %p214 = por %p212, %p213
      %p216 = scmp.ne.s32.totalorder %s201, %s215
      %p217 = scmp.eq.s32.totalorder %s39, 0
      %p218 = por %p216, %p217
      %s220 = sadd.s32 %s219, 1
      %p223 = scmp.eq.s32.totalorder %s33, 1
      %p224 = scmp.ne.s32.totalorder %s219, %s221
      %p225 = scmp.eq.s32.totalorder %s33, 0
      %p226 = por %p224, %p225
      %p227 = scmp.ne.s32.totalorder %s219, %s221
      %p228 = scmp.eq.s32.totalorder %s38, 1
      %p229 = por %p227, %p228
      %p230 = scmp.ne.s32.totalorder %s221, %s222
      %p231 = scmp.eq.s32.totalorder %s38, 0
      %p232 = por %p230, %p231
      %p233 = scmp.ne.s32.totalorder %s221, %s222
      %p234 = scmp.eq.s32.totalorder %s39, 1
      %p235 = por %p233, %p234
      %p237 = scmp.ne.s32.totalorder %s222, %s236
      %p238 = scmp.eq.s32.totalorder %s39, 0
      %p239 = por %p237, %p238
      %s241 = sadd.s32 %s240, 1
      %p244 = scmp.eq.s32.totalorder %s33, 1
      %p245 = scmp.ne.s32.totalorder %s240, %s242
      %p246 = scmp.eq.s32.totalorder %s33, 0
      %p247 = por %p245, %p246
      %p248 = scmp.ne.s32.totalorder %s240, %s242
      %p249 = scmp.eq.s32.totalorder %s38, 1
      %p250 = por %p248, %p249
      %p251 = scmp.ne.s32.totalorder %s242, %s243
      %p252 = scmp.eq.s32.totalorder %s38, 0
      %p253 = por %p251, %p252
      %p254 = scmp.ne.s32.totalorder %s242, %s243
      %p255 = scmp.eq.s32.totalorder %s39, 1
      %p256 = por %p254, %p255
      %p258 = scmp.ne.s32.totalorder %s243, %s257
      %p259 = scmp.eq.s32.totalorder %s39, 0
      %p260 = por %p258, %p259
      %s262 = sadd.s32 %s261, 1
      %p265 = scmp.eq.s32.totalorder %s33, 1
      %p266 = scmp.ne.s32.totalorder %s261, %s263
      %p267 = scmp.eq.s32.totalorder %s33, 0
      %p268 = por %p266, %p267
      %p269 = scmp.ne.s32.totalorder %s261, %s263
      %p270 = scmp.eq.s32.totalorder %s38, 1
      %p271 = por %p269, %p270
      %p272 = scmp.ne.s32.totalorder %s263, %s264
      %p273 = scmp.eq.s32.totalorder %s38, 0
      %p274 = por %p272, %p273
      %p275 = scmp.ne.s32.totalorder %s263, %s264
      %p276 = scmp.eq.s32.totalorder %s39, 1
      %p277 = por %p275, %p276
      %p279 = scmp.ne.s32.totalorder %s264, %s278
      %p280 = scmp.eq.s32.totalorder %s39, 0
      %p281 = por %p279, %p280
      %s283 = sadd.s32 %s282, 1
      %p286 = scmp.eq.s32.totalorder %s33, 1
      %p287 = scmp.ne.s32.totalorder %s282, %s284
      %p288 = scmp.eq.s32.totalorder %s33, 0
      %p289 = por %p287, %p288
      %p290 = scmp.ne.s32.totalorder %s282, %s284
      %p291 = scmp.eq.s32.totalorder %s38, 1
      %p292 = por %p290, %p291
      %p293 = scmp.ne.s32.totalorder %s284, %s285
      %p294 = scmp.eq.s32.totalorder %s38, 0
      %p295 = por %p293, %p294
      %p296 = scmp.ne.s32.totalorder %s284, %s285
      %p297 = scmp.eq.s32.totalorder %s39, 1
      %p298 = por %p296, %p297
      %p300 = scmp.ne.s32.totalorder %s285, %s299
      %p301 = scmp.eq.s32.totalorder %s39, 0
      %p302 = por %p300, %p301
      %s304 = sadd.s32 %s303, 1
      %p307 = scmp.eq.s32.totalorder %s33, 1
      %p308 = scmp.ne.s32.totalorder %s303, %s305
      %p309 = scmp.eq.s32.totalorder %s33, 0
      %p310 = por %p308, %p309
      %p311 = scmp.ne.s32.totalorder %s303, %s305
      %p312 = scmp.eq.s32.totalorder %s38, 1
      %p313 = por %p311, %p312
      %p314 = scmp.ne.s32.totalorder %s305, %s306
      %p315 = scmp.eq.s32.totalorder %s38, 0
      %p316 = por %p314, %p315
      %p317 = scmp.ne.s32.totalorder %s305, %s306
      %p318 = scmp.eq.s32.totalorder %s39, 1
      %p319 = por %p317, %p318
      %p321 = scmp.ne.s32.totalorder %s306, %s320
      %p322 = scmp.eq.s32.totalorder %s39, 0
      %p323 = por %p321, %p322
      %s325 = sadd.s32 %s324, 1
      %p328 = scmp.eq.s32.totalorder %s33, 1
      %p329 = scmp.ne.s32.totalorder %s324, %s326
      %p330 = scmp.eq.s32.totalorder %s33, 0
      %p331 = por %p329, %p330
      %p332 = scmp.ne.s32.totalorder %s324, %s326
      %p333 = scmp.eq.s32.totalorder %s38, 1
      %p334 = por %p332, %p333
      %p335 = scmp.ne.s32.totalorder %s326, %s327
      %p336 = scmp.eq.s32.totalorder %s38, 0
      %p337 = por %p335, %p336
      %p338 = scmp.ne.s32.totalorder %s326, %s327
      %p339 = scmp.eq.s32.totalorder %s39, 1
      %p340 = por %p338, %p339
      %p342 = scmp.ne.s32.totalorder %s327, %s341
      %p343 = scmp.eq.s32.totalorder %s39, 0
      %p344 = por %p342, %p343
      %s346 = sadd.s32 %s345, 1
      %p349 = scmp.eq.s32.totalorder %s33, 1
      %p350 = scmp.ne.s32.totalorder %s345, %s347
      %p351 = scmp.eq.s32.totalorder %s33, 0
      %p352 = por %p350, %p351
      %p353 = scmp.ne.s32.totalorder %s345, %s347
      %p354 = scmp.eq.s32.totalorder %s38, 1
      %p355 = por %p353, %p354
      %p356 = scmp.ne.s32.totalorder %s347, %s348
      %p357 = scmp.eq.s32.totalorder %s38, 0
      %p358 = por %p356, %p357
      %p359 = scmp.ne.s32.totalorder %s347, %s348
      %p360 = scmp.eq.s32.totalorder %s39, 1
      %p361 = por %p359, %p360
      %p363 = scmp.ne.s32.totalorder %s348, %s362
      %p364 = scmp.eq.s32.totalorder %s39, 0
      %p365 = por %p363, %p364
      %s366 = ssub.s32 %s33, %s40
      %p367 = scmp.eq.s32.totalorder %s366, 0
      %s369 = sadd.s32 %s368, 1
      %s370 = scalar_select %p367, %s368, %s369
      %p373 = pneg %p367
      %p374 = scmp.eq.s32.totalorder %s33, 1
      %p375 = por %p373, %p374
      %p376 = scmp.ne.s32.totalorder %s368, %s371
      %p377 = scmp.eq.s32.totalorder %s33, 0
      %p378 = por %p376, %p377
      %p379 = scmp.ne.s32.totalorder %s368, %s371
      %p380 = scmp.eq.s32.totalorder %s38, 1
      %p381 = por %p379, %p380
      %p382 = scmp.ne.s32.totalorder %s371, %s372
      %p383 = scmp.eq.s32.totalorder %s38, 0
      %p384 = por %p382, %p383
      %p385 = scmp.ne.s32.totalorder %s371, %s372
      %p386 = scmp.eq.s32.totalorder %s39, 1
      %p387 = por %p385, %p386
      %p389 = scmp.ne.s32.totalorder %s372, %s388
      %p390 = scmp.eq.s32.totalorder %s39, 0
      %p391 = por %p389, %p390
      %p392 = scmp.le.s32.totalorder 1, %s33
      %p393 = scmp.lt.s32.totalorder %s33, 3
      %p394 = pnand %p392, %p393
      %p395 = pneg %p394
      // Predicated region
      $region9: #{tpu_custom_call.1} parent=5 // pred_check
        _
      $region10: #{tpu_custom_call.1} parent=5 // pred_check_branch
        %397 = sbr.rel (%p394) target = $region12
      $region11: #{tpu_custom_call.1} parent=5 // pred_region
        %s398 = ssub.s32 %s33, 1
        // Predicated region
        $region13: #{tpu_custom_call.1} parent=11 // pred_check
          %p399 = pneg %p54
        $region14: #{tpu_custom_call.1} parent=11 // pred_check_branch
          %401 = sbr.rel (%p399) target = $region16
        $region15: #{tpu_custom_call.1} parent=11 // pred_region
          %s403 = ssub.s32 16, 16
          %404 = vsyncadd [#allocation5], %s403
          %407 = dma.hbm_to_smem %s0, 16, [#allocation2], [#allocation5]
        $region16: #{tpu_custom_call.1} parent=11 // pred_fallthru
          _
        // Predicated region
        $region17: #{tpu_custom_call.1} parent=11 // pred_check
          %p408 = pneg %p127
        $region18: #{tpu_custom_call.1} parent=11 // pred_check_branch
          %410 = sbr.rel (%p408) target = $region20
        $region19: #{tpu_custom_call.1} parent=11 // pred_region
          %s412 = ssub.s32 16, 16
          %413 = vsyncadd [#allocation8], %s412
          %s415 = sshll.u32 [#allocation7], 4
          %s416 = int_to_ptr.vmem [resolvable:$true] %s415
          %418 = dma.hbm_to_vmem [thread:$0]  %s3, 16, %s416, [#allocation8]
        $region20: #{tpu_custom_call.1} parent=11 // pred_fallthru
          _
        // Predicated region
        $region21: #{tpu_custom_call.1} parent=11 // pred_check
          %p419 = pneg %p148
        $region22: #{tpu_custom_call.1} parent=11 // pred_check_branch
          %421 = sbr.rel (%p419) target = $region24
        $region23: #{tpu_custom_call.1} parent=11 // pred_region
          %s423 = ssub.s32 16, 16
          %424 = vsyncadd [#allocation8], %s423
          %s426 = sshll.u32 [#allocation9], 4
          %s427 = int_to_ptr.vmem [resolvable:$true] %s426
          %429 = dma.hbm_to_vmem [thread:$0]  %s4, 16, %s427, [#allocation8]
        $region24: #{tpu_custom_call.1} parent=11 // pred_fallthru
          _
        // Predicated region
        $region25: #{tpu_custom_call.1} parent=11 // pred_check
          %p430 = pneg %p169
        $region26: #{tpu_custom_call.1} parent=11 // pred_check_branch
          %432 = sbr.rel (%p430) target = $region28
        $region27: #{tpu_custom_call.1} parent=11 // pred_region
          %s434 = ssub.s32 1536, 1536
          %435 = vsyncadd [#allocation11], %s434
          %s436 = sshll.u32 [#allocation10], 4
          %s437 = int_to_ptr.vmem [resolvable:$true] %s436
          %442 = dma.hbm_to_vmem [thread:$0]  %s5, 1536, %s437, [#allocation11], 128, 128, 8
        $region28: #{tpu_custom_call.1} parent=11 // pred_fallthru
          _
        // Predicated region
        $region29: #{tpu_custom_call.1} parent=11 // pred_check
          %p443 = pneg %p190
        $region30: #{tpu_custom_call.1} parent=11 // pred_check_branch
          %445 = sbr.rel (%p443) target = $region32
        $region31: #{tpu_custom_call.1} parent=11 // pred_region
          %s447 = ssub.s32 48, 48
          %448 = vsyncadd [#allocation11], %s447
          %s449 = sshll.u32 [#allocation12], 4
          %s450 = int_to_ptr.vmem [resolvable:$true] %s449
          %455 = dma.hbm_to_vmem [thread:$0]  %s6, 48, %s450, [#allocation11], 16, 16, 1
        $region32: #{tpu_custom_call.1} parent=11 // pred_fallthru
          _
        // Predicated region
        $region33: #{tpu_custom_call.1} parent=11 // pred_check
          %p456 = pneg %p211
        $region34: #{tpu_custom_call.1} parent=11 // pred_check_branch
          %458 = sbr.rel (%p456) target = $region36
        $region35: #{tpu_custom_call.1} parent=11 // pred_region
          %s460 = ssub.s32 192, 192
          %461 = vsyncadd [#allocation14], %s460
          %s462 = sshll.u32 [#allocation13], 4
          %s463 = int_to_ptr.vmem [resolvable:$true] %s462
          %468 = dma.hbm_to_vmem [thread:$0]  %s7, 192, %s463, [#allocation14], 64, 64, 4
        $region36: #{tpu_custom_call.1} parent=11 // pred_fallthru
          _
        // Predicated region
        $region37: #{tpu_custom_call.1} parent=11 // pred_check
          %p469 = pneg %p232
        $region38: #{tpu_custom_call.1} parent=11 // pred_check_branch
          %471 = sbr.rel (%p469) target = $region40
        $region39: #{tpu_custom_call.1} parent=11 // pred_region
          _
        $region40: #{tpu_custom_call.1} parent=11 // pred_fallthru
          _
        // Predicated region
        $region41: #{tpu_custom_call.1} parent=11 // pred_check
          %p472 = pneg %p253
        $region42: #{tpu_custom_call.1} parent=11 // pred_check_branch
          %474 = sbr.rel (%p472) target = $region44
        $region43: #{tpu_custom_call.1} parent=11 // pred_region
          _
        $region44: #{tpu_custom_call.1} parent=11 // pred_fallthru
          _
        // Predicated region
        $region45: #{tpu_custom_call.1} parent=11 // pred_check
          %p475 = pneg %p274
        $region46: #{tpu_custom_call.1} parent=11 // pred_check_branch
          %477 = sbr.rel (%p475) target = $region48
        $region47: #{tpu_custom_call.1} parent=11 // pred_region
          %s479 = ssub.s32 192, 192
          %480 = vsyncadd [#allocation14], %s479
          %s481 = sshll.u32 [#allocation15], 4
          %s482 = int_to_ptr.vmem [resolvable:$true] %s481
          %487 = dma.hbm_to_vmem [thread:$0]  %s10, 192, %s482, [#allocation14], 64, 64, 4
        $region48: #{tpu_custom_call.1} parent=11 // pred_fallthru
          _
        // Predicated region
        $region49: #{tpu_custom_call.1} parent=11 // pred_check
          %p488 = pneg %p295
        $region50: #{tpu_custom_call.1} parent=11 // pred_check_branch
          %490 = sbr.rel (%p488) target = $region52
        $region51: #{tpu_custom_call.1} parent=11 // pred_region
          %s492 = ssub.s32 512, 512
          %493 = vsyncadd [#allocation17], %s492
          %s494 = sshll.u32 [#allocation16], 4
          %s495 = int_to_ptr.vmem [resolvable:$true] %s494
          %500 = dma.hbm_to_vmem [thread:$0]  %s11, 512, %s495, [#allocation17], 128, 128, 8
        $region52: #{tpu_custom_call.1} parent=11 // pred_fallthru
          _
        // Predicated region
        $region53: #{tpu_custom_call.1} parent=11 // pred_check
          %p501 = pneg %p316
        $region54: #{tpu_custom_call.1} parent=11 // pred_check_branch
          %503 = sbr.rel (%p501) target = $region56
        $region55: #{tpu_custom_call.1} parent=11 // pred_region
          %s505 = ssub.s32 512, 512
          %506 = vsyncadd [#allocation17], %s505
          %s507 = sshll.u32 [#allocation18], 4
          %s508 = int_to_ptr.vmem [resolvable:$true] %s507
          %513 = dma.hbm_to_vmem [thread:$0]  %s12, 512, %s508, [#allocation17], 128, 128, 8
        $region56: #{tpu_custom_call.1} parent=11 // pred_fallthru
          _
        // Predicated region
        $region57: #{tpu_custom_call.1} parent=11 // pred_check
          %p514 = pneg %p337
        $region58: #{tpu_custom_call.1} parent=11 // pred_check_branch
          %516 = sbr.rel (%p514) target = $region60
        $region59: #{tpu_custom_call.1} parent=11 // pred_region
          %s518 = ssub.s32 512, 512
          %519 = vsyncadd [#allocation20], %s518
          %s520 = sshll.u32 [#allocation19], 4
          %s521 = int_to_ptr.vmem [resolvable:$true] %s520
          %526 = dma.hbm_to_vmem [thread:$0]  %s13, 512, %s521, [#allocation20], 128, 128, 8
        $region60: #{tpu_custom_call.1} parent=11 // pred_fallthru
          _
        // Predicated region
        $region61: #{tpu_custom_call.1} parent=11 // pred_check
          %p527 = pneg %p358
        $region62: #{tpu_custom_call.1} parent=11 // pred_check_branch
          %529 = sbr.rel (%p527) target = $region64
        $region63: #{tpu_custom_call.1} parent=11 // pred_region
          _
        $region64: #{tpu_custom_call.1} parent=11 // pred_fallthru
          _
      $region12: #{tpu_custom_call.1} parent=5 // pred_fallthru
        _
      %p530 = scmp.lt.s32.totalorder %s33, 2
      // Predicated region
      $region65: #{tpu_custom_call.1} parent=5 // pred_check
        %p531 = pneg %p530
      $region66: #{tpu_custom_call.1} parent=5 // pred_check_branch
        %533 = sbr.rel (%p531) target = $region68
      $region67: #{tpu_custom_call.1} parent=5 // pred_region
        // Predicated region
        $region69: #{tpu_custom_call.1} parent=67 // pred_check
          %p534 = pneg %p74
        $region70: #{tpu_custom_call.1} parent=67 // pred_check_branch
          %536 = sbr.rel (%p534) target = $region72
        $region71: #{tpu_custom_call.1} parent=67 // pred_region
          %p537 = scmp.lt.s32.totalorder %s33, 1
          %s538 = scalar_select %p537, %s33, 1
          %s539 = smul.addr %s538, 4
          %s540 = smul.addr %s539, 8
          %s541 = scalar_lea.vmem %s1, %s540
        $region72: #{tpu_custom_call.1} parent=67 // pred_fallthru
          _
        // Predicated region
        $region73: #{tpu_custom_call.1} parent=67 // pred_check
          %p542 = pneg %p100
        $region74: #{tpu_custom_call.1} parent=67 // pred_check_branch
          %544 = sbr.rel (%p542) target = $region76
        $region75: #{tpu_custom_call.1} parent=67 // pred_region
          %s545 = sand.u32 %s90, 1
          %s546 = scalar_lea.sflag [#allocation3], %s545
          %s547 = sand.u32 %s90, 1
          %s548 = smul.addr %s547, 32
          %s549 = scalar_lea.vmem [#allocation6], %s548
          %s551 = ssub.s32 512, 512
          %552 = vsyncadd %s546, %s551
          %s553 = smul.addr %s33, 4
          %s554 = smul.addr %s553, 128
          %s555 = scalar_lea.hbm %s2, %s554
          %s556 = sshll.u32 %s549, 4
          %s557 = int_to_ptr.vmem [resolvable:$true] %s556
          %562 = dma.hbm_to_vmem [thread:$0]  %s555, 512, %s557, %s546, 128, 128, 8
        $region76: #{tpu_custom_call.1} parent=67 // pred_fallthru
          _
      $region68: #{tpu_custom_call.1} parent=5 // pred_fallthru
        _
      %p563 = scmp.le.s32.totalorder 1, %s33
      %p564 = scmp.lt.s32.totalorder %s33, 3
      %p565 = pnand %p563, %p564
      %p566 = pneg %p565
      // Predicated region
      $region77: #{tpu_custom_call.1} parent=5 // pred_check
        _
      $region78: #{tpu_custom_call.1} parent=5 // pred_check_branch
        %568 = sbr.rel (%p565) target = $region80
      $region79: #{tpu_custom_call.1} parent=5 // pred_region
        %s569 = ssub.s32 %s33, 1
        // Predicated region
        $region81: #{tpu_custom_call.1} parent=79 // pred_check
          %p570 = pneg %p54
        $region82: #{tpu_custom_call.1} parent=79 // pred_check_branch
          %572 = sbr.rel (%p570) target = $region84
        $region83: #{tpu_custom_call.1} parent=79 // pred_region
          %573 = dma.done [#allocation5], 16
        $region84: #{tpu_custom_call.1} parent=79 // pred_fallthru
          _
        %s574 = sand.u32 %s93, 1
        %s575 = scalar_lea.sflag [#allocation3], %s574
        %s576 = sand.u32 %s93, 1
        %s577 = smul.addr %s576, 32
        %s578 = scalar_lea.vmem [#allocation6], %s577
        // Predicated region
        $region85: #{tpu_custom_call.1} parent=79 // pred_check
          %p579 = pneg %p106
        $region86: #{tpu_custom_call.1} parent=79 // pred_check_branch
          %581 = sbr.rel (%p579) target = $region88
        $region87: #{tpu_custom_call.1} parent=79 // pred_region
          %582 = dma.done %s575, 512
        $region88: #{tpu_custom_call.1} parent=79 // pred_fallthru
          _
        // Predicated region
        $region89: #{tpu_custom_call.1} parent=79 // pred_check
          %p583 = pneg %p127
        $region90: #{tpu_custom_call.1} parent=79 // pred_check_branch
          %585 = sbr.rel (%p583) target = $region92
        $region91: #{tpu_custom_call.1} parent=79 // pred_region
          %586 = dma.done [#allocation8], 16
        $region92: #{tpu_custom_call.1} parent=79 // pred_fallthru
          _
        // Predicated region
        $region93: #{tpu_custom_call.1} parent=79 // pred_check
          %p587 = pneg %p148
        $region94: #{tpu_custom_call.1} parent=79 // pred_check_branch
          %589 = sbr.rel (%p587) target = $region96
        $region95: #{tpu_custom_call.1} parent=79 // pred_region
          %590 = dma.done [#allocation8], 16
        $region96: #{tpu_custom_call.1} parent=79 // pred_fallthru
          _
        // Predicated region
        $region97: #{tpu_custom_call.1} parent=79 // pred_check
          %p591 = pneg %p169
        $region98: #{tpu_custom_call.1} parent=79 // pred_check_branch
          %593 = sbr.rel (%p591) target = $region100
        $region99: #{tpu_custom_call.1} parent=79 // pred_region
          %594 = dma.done [#allocation11], 1536
        $region100: #{tpu_custom_call.1} parent=79 // pred_fallthru
          _
        // Predicated region
        $region101: #{tpu_custom_call.1} parent=79 // pred_check
          %p595 = pneg %p190
        $region102: #{tpu_custom_call.1} parent=79 // pred_check_branch
          %597 = sbr.rel (%p595) target = $region104
        $region103: #{tpu_custom_call.1} parent=79 // pred_region
          %598 = dma.done [#allocation11], 48
        $region104: #{tpu_custom_call.1} parent=79 // pred_fallthru
          _
        // Predicated region
        $region105: #{tpu_custom_call.1} parent=79 // pred_check
          %p599 = pneg %p211
        $region106: #{tpu_custom_call.1} parent=79 // pred_check_branch
          %601 = sbr.rel (%p599) target = $region108
        $region107: #{tpu_custom_call.1} parent=79 // pred_region
          %602 = dma.done [#allocation14], 192
        $region108: #{tpu_custom_call.1} parent=79 // pred_fallthru
          _
        // Predicated region
        $region109: #{tpu_custom_call.1} parent=79 // pred_check
          %p603 = pneg %p274
        $region110: #{tpu_custom_call.1} parent=79 // pred_check_branch
          %605 = sbr.rel (%p603) target = $region112
        $region111: #{tpu_custom_call.1} parent=79 // pred_region
          %606 = dma.done [#allocation14], 192
        $region112: #{tpu_custom_call.1} parent=79 // pred_fallthru
          _
        // Predicated region
        $region113: #{tpu_custom_call.1} parent=79 // pred_check
          %p607 = pneg %p295
        $region114: #{tpu_custom_call.1} parent=79 // pred_check_branch
          %609 = sbr.rel (%p607) target = $region116
        $region115: #{tpu_custom_call.1} parent=79 // pred_region
          %610 = dma.done [#allocation17], 512
        $region116: #{tpu_custom_call.1} parent=79 // pred_fallthru
          _
        // Predicated region
        $region117: #{tpu_custom_call.1} parent=79 // pred_check
          %p611 = pneg %p316
        $region118: #{tpu_custom_call.1} parent=79 // pred_check_branch
          %613 = sbr.rel (%p611) target = $region120
        $region119: #{tpu_custom_call.1} parent=79 // pred_region
          %614 = dma.done [#allocation17], 512
        $region120: #{tpu_custom_call.1} parent=79 // pred_fallthru
          _
        // Predicated region
        $region121: #{tpu_custom_call.1} parent=79 // pred_check
          %p615 = pneg %p337
        $region122: #{tpu_custom_call.1} parent=79 // pred_check_branch
          %617 = sbr.rel (%p615) target = $region124
        $region123: #{tpu_custom_call.1} parent=79 // pred_region
          %618 = dma.done [#allocation20], 512
        $region124: #{tpu_custom_call.1} parent=79 // pred_fallthru
          _
        %619 = sfence
        %p620 = pneg %p54
        %p621 = pneg %p51
        %p622 = scmp.lt.s32.totalorder %s38, 1
        %s623 = scalar_select %p622, %s38, 1
        %s624 = smul.addr %s623, 4
        %s625 = smul.addr %s624, 8
        %s626 = scalar_lea.vmem %s1, %s625
        %p627 = pneg %p80
        %p628 = pneg %p77
        %s629 = sand.u32 %s93, 1
        %s630 = scalar_lea.sflag [#allocation3], %s629
        %s631 = sand.u32 %s93, 1
        %s632 = smul.addr %s631, 32
        %s633 = scalar_lea.vmem [#allocation6], %s632
        %p634 = pneg %p106
        %p635 = pneg %p103
        %p636 = pneg %p127
        %p637 = pneg %p124
        %p638 = pneg %p148
        %p639 = pneg %p145
        %p640 = pneg %p169
        %p641 = pneg %p166
        %p642 = pneg %p190
        %p643 = pneg %p187
        %p644 = pneg %p211
        %p645 = pneg %p208
        %p646 = pneg %p232
        %p647 = pneg %p229
        %p648 = pneg %p253
        %p649 = pneg %p250
        %p650 = pneg %p274
        %p651 = pneg %p271
        %p652 = pneg %p295
        %p653 = pneg %p292
        %p654 = pneg %p316
        %p655 = pneg %p313
        %p656 = pneg %p337
        %p657 = pneg %p334
        %p658 = pneg %p358
        %p659 = pneg %p355
        %p660 = pneg %p384
        %p661 = pneg %p381
        %s662 = sand.u32 %s371, 1
        %s663 = scalar_lea.sflag [#allocation4], %s662
        %s664 = sand.u32 %s371, 1
        %s665 = smul.addr %s664, 32
        %s666 = scalar_lea.vmem [#allocation21], %s665
        %p667 = scmp.lt.s32.totalorder %s38, 1
        %s668 = scalar_select %p667, %s38, 1
        %s669 = smul.addr %s668, 4
        %s670 = smul.addr %s669, 8
        %s671 = scalar_lea.vmem %s1, %s670
        %v672 = vld [vmem:[%s578] sm:$0xff]
        %v673 = vld [vmem:[%s578 + $0x8] sm:$0xff]
        %v674 = vld [vmem:[%s578 + $0x10] sm:$0xff]
        %v675 = vld [vmem:[%s578 + $0x18] sm:$0xff]
        %v676 = vld [vmem:[%s671] sm:$0xff]
        %v677 = vld [vmem:[%s671 + $0x8] sm:$0xff]
        %v678 = vld [vmem:[%s671 + $0x10] sm:$0xff]
        %v679 = vld [vmem:[%s671 + $0x18] sm:$0xff]
        %v680 = vld [vmem:[#allocation7] sm:$0x1]
        %682 = vset.pattern.permute.xlu0 0
        %683 = vperm.xlu0 %682, %v676
        %v684 = vpop.permute.xlu0 %683
        %687 = vset.pattern.permute.xlu0 0
        %688 = vperm.xlu0 %687, %v677
        %v689 = vpop.permute.xlu0 %688
        %692 = vset.pattern.permute.xlu0 0
        %693 = vperm.xlu0 %692, %v678
        %v694 = vpop.permute.xlu0 %693
        %697 = vset.pattern.permute.xlu0 0
        %698 = vperm.xlu0 %697, %v679
        %v699 = vpop.permute.xlu0 %698
        %v702 = vlaneseq
        %v703 = vshrl.u32 %v702, 7
        %v704 = vsub.s32 0, %v703
        %v705 = vrot.slane %v680, %v704
        %v707 = vmul.f32 %v684, %v705
        %v708 = vmul.f32 %v689, %v705
        %v709 = vmul.f32 %v694, %v705
        %v710 = vmul.f32 %v699, %v705
        %v711 = vld [vmem:[#allocation9] sm:$0x1]
        %v713 = vlaneseq
        %v714 = vshrl.u32 %v713, 7
        %v715 = vsub.s32 0, %v714
        %v716 = vrot.slane %v711, %v715
        %v718 = vadd.f32 %v707, %v716
        %v719 = vadd.f32 %v708, %v716
        %v720 = vadd.f32 %v709, %v716
        %v721 = vadd.f32 %v710, %v716
        %s722 = sld [smem:[#allocation2]]
        %s723 = sadd.f32 %s722, 1.0
        %v724 = vstv %s723
        %v725 = vmul.f32 %v724, %v718
        %v726 = vmul.f32 %v724, %v719
        %v727 = vmul.f32 %v724, %v720
        %v728 = vmul.f32 %v724, %v721
        %vm729 = vcmask 261120
        %v731 = vsel %vm729, %v672, 0
        %v734 = vsel %vm729, %v673, 0
        %v737 = vsel %vm729, %v674, 0
        %v740 = vsel %vm729, %v675, 0
        %742 = vmatprep.subr.mxu0 0.0
        %743 = vmatpush1.msra.mxu0 %v718
        %744 = vmatprep.subr.mxu0 0.0
        %745 = vmatpush1.msra.mxu0 %v719
        %746 = vmatprep.subr.mxu0 0.0
        %747 = vmatpush1.msra.mxu0 %v720
        %748 = vmatprep.subr.mxu0 0.0
        %749 = vmatpush1.msra.mxu0 %v721
        %750 = vmatprep.subr.mxu0 0.0
        %751 = vmatpush1.msra.mxu0 0.0
        %752 = vmatprep.subr.mxu0 0.0
        %753 = vmatpush1.msra.mxu0 0.0
        %754 = vmatprep.subr.mxu0 0.0
        %755 = vmatpush1.msra.mxu0 0.0
        %756 = vmatprep.subr.mxu0 0.0
        %757 = vmatpush1.msra.mxu0 0.0
        %758 = vmatprep.subr.mxu0 0.0
        %759 = vmatpush1.msra.mxu0 0.0
        %760 = vmatprep.subr.mxu0 0.0
        %761 = vmatpush1.msra.mxu0 0.0
        %762 = vmatprep.subr.mxu0 0.0
        %763 = vmatpush1.msra.mxu0 0.0
        %764 = vmatprep.subr.mxu0 0.0
        %765 = vmatpush1.msra.mxu0 0.0
        %766 = vmatprep.subr.mxu0 0.0
        %767 = vmatpush1.msra.mxu0 0.0
        %768 = vmatprep.subr.mxu0 0.0
        %769 = vmatpush1.msra.mxu0 0.0
        %770 = vmatprep.subr.mxu0 0.0
        %771 = vmatpush1.msra.mxu0 0.0
        %772 = vmatprep.subr.mxu0 0.0
        %773 = vmatpush1.msra.mxu0 0.0
        %774 = vmatprep.subr.mxu0 0.0
        %775 = vmatpush1.msra.mxu0 0.0
        %776 = vmatprep.subr.mxu0 0.0
        %777 = vmatpush1.msra.mxu0 0.0
        %778 = vmatprep.subr.mxu0 0.0
        %779 = vmatpush1.msra.mxu0 0.0
        %780 = vmatprep.subr.mxu0 0.0
        %781 = vmatpush1.msra.mxu0 0.0
        %782 = vmatprep.subr.mxu0 0.0
        %783 = vmatpush1.msra.mxu0 0.0
        %784 = vmatprep.subr.mxu0 0.0
        %785 = vmatpush1.msra.mxu0 0.0
        %786 = vmatprep.subr.mxu0 0.0
        %787 = vmatpush1.msra.mxu0 0.0
        %788 = vmatprep.subr.mxu0 0.0
        %789 = vmatpush1.msra.mxu0 0.0
        %790 = vmatprep.subr.mxu0 0.0
        %791 = vmatpush1.msra.mxu0 0.0
        %792 = vmatprep.subr.mxu0 0.0
        %793 = vmatpush1.msra.mxu0 0.0
        %794 = vmatprep.subr.mxu0 0.0
        %795 = vmatpush1.msra.mxu0 0.0
        %796 = vmatprep.subr.mxu0 0.0
        %797 = vmatpush1.msra.mxu0 0.0
        %798 = vmatprep.subr.mxu0 0.0
        %799 = vmatpush1.msra.mxu0 0.0
        %800 = vmatprep.subr.mxu0 0.0
        %801 = vmatpush1.msra.mxu0 0.0
        %802 = vmatprep.subr.mxu0 0.0
        %803 = vmatpush1.msra.mxu0 0.0
        %804 = vmatprep.subr.mxu0 0.0
        %805 = vmatpush1.msra.mxu0 0.0
        %806 = vmatprep.mubr.f32.mxu0 0.0
        %807 = vmatmul.mubr.f32.gmra.mrb[0].mxu0 %v731
        %v808 = vpop.f32.mrb[0].mxu0
        %v809 = vadd.f32 %v725, %v808
        %v810 = vpop.f32.mrb[0].mxu0
        %811 = vmatprep.mubr.f32.mxu0 0.0
        %812 = vmatmul.mubr.f32.gmra.mrb[0].mxu0 %v734
        %v813 = vpop.f32.mrb[0].mxu0
        %v814 = vadd.f32 %v726, %v813
        %v815 = vpop.f32.mrb[0].mxu0
        %816 = vmatprep.mubr.f32.mxu0 0.0
        %817 = vmatmul.mubr.f32.gmra.mrb[0].mxu0 %v737
        %v818 = vpop.f32.mrb[0].mxu0
        %v819 = vadd.f32 %v727, %v818
        %v820 = vpop.f32.mrb[0].mxu0
        %821 = vmatprep.mubr.f32.mxu0 0.0
        %822 = vmatmul.mubr.f32.gmra.mrb[0].mxu0 %v740
        %v823 = vpop.f32.mrb[0].mxu0
        %v824 = vadd.f32 %v728, %v823
        %v825 = vpop.f32.mrb[0].mxu0
        %826 = vdwg.mxu0
        %v827 = vld [vmem:[#allocation10] sm:$0xff]
        %v828 = vld [vmem:[#allocation10 + $0x8] sm:$0xff]
        %v829 = vld [vmem:[#allocation10 + $0x10] sm:$0xff]
        %v830 = vld [vmem:[#allocation10 + $0x18] sm:$0xff]
        %v831 = vld [vmem:[#allocation12] sm:$0x1]
        %v833 = vlaneseq
        %v834 = vshrl.u32 %v833, 7
        %v835 = vsub.s32 0, %v834
        %v836 = vrot.slane %v831, %v835
        %v839 = vsel %vm729, %v809, 0
        %v842 = vsel %vm729, %v814, 0
        %v845 = vsel %vm729, %v819, 0
        %v848 = vsel %vm729, %v824, 0
        %850 = vmatprep.subr.mxu0 0.0
        %851 = vmatpush1.msra.mxu0 %v827
        %852 = vmatprep.subr.mxu0 0.0
        %853 = vmatpush1.msra.mxu0 %v828
        %854 = vmatprep.subr.mxu0 0.0
        %855 = vmatpush1.msra.mxu0 %v829
        %856 = vmatprep.subr.mxu0 0.0
        %857 = vmatpush1.msra.mxu0 %v830
        %858 = vmatprep.subr.mxu0 0.0
        %859 = vmatpush1.msra.mxu0 0.0
        %860 = vmatprep.subr.mxu0 0.0
        %861 = vmatpush1.msra.mxu0 0.0
        %862 = vmatprep.subr.mxu0 0.0
        %863 = vmatpush1.msra.mxu0 0.0
        %864 = vmatprep.subr.mxu0 0.0
        %865 = vmatpush1.msra.mxu0 0.0
        %866 = vmatprep.subr.mxu0 0.0
        %867 = vmatpush1.msra.mxu0 0.0
        %868 = vmatprep.subr.mxu0 0.0
        %869 = vmatpush1.msra.mxu0 0.0
        %870 = vmatprep.subr.mxu0 0.0
        %871 = vmatpush1.msra.mxu0 0.0
        %872 = vmatprep.subr.mxu0 0.0
        %873 = vmatpush1.msra.mxu0 0.0
        %874 = vmatprep.subr.mxu0 0.0
        %875 = vmatpush1.msra.mxu0 0.0
        %876 = vmatprep.subr.mxu0 0.0
        %877 = vmatpush1.msra.mxu0 0.0
        %878 = vmatprep.subr.mxu0 0.0
        %879 = vmatpush1.msra.mxu0 0.0
        %880 = vmatprep.subr.mxu0 0.0
        %881 = vmatpush1.msra.mxu0 0.0
        %882 = vmatprep.subr.mxu0 0.0
        %883 = vmatpush1.msra.mxu0 0.0
        %884 = vmatprep.subr.mxu0 0.0
        %885 = vmatpush1.msra.mxu0 0.0
        %886 = vmatprep.subr.mxu0 0.0
        %887 = vmatpush1.msra.mxu0 0.0
        %888 = vmatprep.subr.mxu0 0.0
        %889 = vmatpush1.msra.mxu0 0.0
        %890 = vmatprep.subr.mxu0 0.0
        %891 = vmatpush1.msra.mxu0 0.0
        %892 = vmatprep.subr.mxu0 0.0
        %893 = vmatpush1.msra.mxu0 0.0
        %894 = vmatprep.subr.mxu0 0.0
        %895 = vmatpush1.msra.mxu0 0.0
        %896 = vmatprep.subr.mxu0 0.0
        %897 = vmatpush1.msra.mxu0 0.0
        %898 = vmatprep.subr.mxu0 0.0
        %899 = vmatpush1.msra.mxu0 0.0
        %900 = vmatprep.subr.mxu0 0.0
        %901 = vmatpush1.msra.mxu0 0.0
        %902 = vmatprep.subr.mxu0 0.0
        %903 = vmatpush1.msra.mxu0 0.0
        %904 = vmatprep.subr.mxu0 0.0
        %905 = vmatpush1.msra.mxu0 0.0
        %906 = vmatprep.subr.mxu0 0.0
        %907 = vmatpush1.msra.mxu0 0.0
        %908 = vmatprep.subr.mxu0 0.0
        %909 = vmatpush1.msra.mxu0 0.0
        %910 = vmatprep.subr.mxu0 0.0
        %911 = vmatpush1.msra.mxu0 0.0
        %912 = vmatprep.subr.mxu0 0.0
        %913 = vmatpush1.msra.mxu0 0.0
        %914 = vmatprep.mubr.f32.mxu0 0.0
        %915 = vmatmul.mubr.f32.gmra.mrb[0].mxu0 %v839
        %v916 = vpop.f32.mrb[0].mxu0
        %v917 = vadd.f32 %v836, %v916
        %v918 = vpop.f32.mrb[0].mxu0
        %919 = vmatprep.mubr.f32.mxu0 0.0
        %920 = vmatmul.mubr.f32.gmra.mrb[0].mxu0 %v842
        %v921 = vpop.f32.mrb[0].mxu0
        %v922 = vadd.f32 %v836, %v921
        %v923 = vpop.f32.mrb[0].mxu0
        %924 = vmatprep.mubr.f32.mxu0 0.0
        %925 = vmatmul.mubr.f32.gmra.mrb[0].mxu0 %v845
        %v926 = vpop.f32.mrb[0].mxu0
        %v927 = vadd.f32 %v836, %v926
        %v928 = vpop.f32.mrb[0].mxu0
        %929 = vmatprep.mubr.f32.mxu0 0.0
        %930 = vmatmul.mubr.f32.gmra.mrb[0].mxu0 %v848
        %v931 = vpop.f32.mrb[0].mxu0
        %v932 = vadd.f32 %v836, %v931
        %v933 = vpop.f32.mrb[0].mxu0
        %934 = vdwg.mxu0
        %v935 = vld [vmem:[#allocation13] sm:$0x7]
        %v936 = vsel %vm729, %v917, 0.0
        %v937 = vsel %vm729, %v922, 0.0
        %v938 = vadd.f32 %v936, %v937
        %v939 = vsel %vm729, %v927, 0.0
        %v940 = vadd.f32 %v938, %v939
        %v941 = vsel %vm729, %v932, 0.0
        %v942 = vadd.f32 %v940, %v941
        %v943 = vrot.slane %v942, 4
        %v944 = vadd.f32 %v942, %v943
        %v945 = vrot.slane %v944, 2
        %v946 = vadd.f32 %v944, %v945
        %v947 = vrot.slane %v946, 1
        %v948 = vadd.f32 %v946, %v947
        %v949 = vrcp.pop 32.0
        %v950 = vmul.f32 %v948, %v949
        %v951 = vmul.f32 %v935, %v950
        %v952 = vlaneseq
        %v953 = vshrl.u32 %v952, 7
        %v954 = vsub.s32 0, %v953
        %v955 = vrot.slane %v951, %v954
        %v956 = vsub.f32 %v917, %v955
        %v957 = vsub.f32 %v922, %v955
        %v958 = vsub.f32 %v927, %v955
        %v959 = vsub.f32 %v932, %v955
        %v960 = vmul.f32 %v956, %v956
        %v961 = vmul.f32 %v957, %v957
        %v962 = vmul.f32 %v958, %v958
        %v963 = vmul.f32 %v959, %v959
        %v964 = vsel %vm729, %v960, 0.0
        %v965 = vsel %vm729, %v961, 0.0
        %v966 = vadd.f32 %v964, %v965
        %v967 = vsel %vm729, %v962, 0.0
        %v968 = vadd.f32 %v966, %v967
        %v969 = vsel %vm729, %v963, 0.0
        %v970 = vadd.f32 %v968, %v969
        %v971 = vrot.slane %v970, 4
        %v972 = vadd.f32 %v970, %v971
        %v973 = vrot.slane %v972, 2
        %v974 = vadd.f32 %v972, %v973
        %v975 = vrot.slane %v974, 1
        %v976 = vadd.f32 %v974, %v975
        %v977 = vmul.f32 %v976, %v949
        %v978 = vlaneseq
        %v979 = vshrl.u32 %v978, 7
        %v980 = vsub.s32 1, %v979
        %v981 = vrot.slane %v935, %v980
        %v982 = vmul.f32 %v981, %v956
        %v983 = vmul.f32 %v981, %v957
        %v984 = vmul.f32 %v981, %v958
        %v985 = vmul.f32 %v981, %v959
        %v986 = vadd.f32 %v977, 1e-05
        %v987 = vrsqrt.pop %v986
        %v988 = vmul.f32 %v982, %v987
        %v989 = vmul.f32 %v983, %v987
        %v990 = vmul.f32 %v984, %v987
        %v991 = vmul.f32 %v985, %v987
        %v992 = vlaneseq
        %v993 = vshrl.u32 %v992, 7
        %v994 = vsub.s32 2, %v993
        %v995 = vrot.slane %v935, %v994
        %v996 = vadd.f32 %v988, %v995
        %v997 = vadd.f32 %v989, %v995
        %v998 = vadd.f32 %v990, %v995
        %v999 = vadd.f32 %v991, %v995
        %v1000 = vmax.f32 %v996, 0.0
        %v1001 = vmax.f32 %v997, 0.0
        %v1002 = vmax.f32 %v998, 0.0
        %v1003 = vmax.f32 %v999, 0.0
        %v1004 = vld [vmem:[%s8] sm:$0xff]
        %v1005 = vld [vmem:[%s8 + $0x8] sm:$0xff]
        %v1006 = vld [vmem:[%s8 + $0x10] sm:$0xff]
        %v1007 = vld [vmem:[%s8 + $0x18] sm:$0xff]
        %v1008 = vld [vmem:[%s9] sm:$0x1]
        %v1010 = vlaneseq
        %v1011 = vshrl.u32 %v1010, 7
        %v1012 = vsub.s32 0, %v1011
        %v1013 = vrot.slane %v1008, %v1012
        %v1016 = vsel %vm729, %v1000, 0
        %v1019 = vsel %vm729, %v1001, 0
        %v1022 = vsel %vm729, %v1002, 0
        %v1025 = vsel %vm729, %v1003, 0
        %1027 = vmatprep.subr.mxu0 0.0
        %1028 = vmatpush1.msra.mxu0 %v1004
        %1029 = vmatprep.subr.mxu0 0.0
        %1030 = vmatpush1.msra.mxu0 %v1005
        %1031 = vmatprep.subr.mxu0 0.0
        %1032 = vmatpush1.msra.mxu0 %v1006
        %1033 = vmatprep.subr.mxu0 0.0
        %1034 = vmatpush1.msra.mxu0 %v1007
        %1035 = vmatprep.subr.mxu0 0.0
        %1036 = vmatpush1.msra.mxu0 0.0
        %1037 = vmatprep.subr.mxu0 0.0
        %1038 = vmatpush1.msra.mxu0 0.0
        %1039 = vmatprep.subr.mxu0 0.0
        %1040 = vmatpush1.msra.mxu0 0.0
        %1041 = vmatprep.subr.mxu0 0.0
        %1042 = vmatpush1.msra.mxu0 0.0
        %1043 = vmatprep.subr.mxu0 0.0
        %1044 = vmatpush1.msra.mxu0 0.0
        %1045 = vmatprep.subr.mxu0 0.0
        %1046 = vmatpush1.msra.mxu0 0.0
        %1047 = vmatprep.subr.mxu0 0.0
        %1048 = vmatpush1.msra.mxu0 0.0
        %1049 = vmatprep.subr.mxu0 0.0
        %1050 = vmatpush1.msra.mxu0 0.0
        %1051 = vmatprep.subr.mxu0 0.0
        %1052 = vmatpush1.msra.mxu0 0.0
        %1053 = vmatprep.subr.mxu0 0.0
        %1054 = vmatpush1.msra.mxu0 0.0
        %1055 = vmatprep.subr.mxu0 0.0
        %1056 = vmatpush1.msra.mxu0 0.0
        %1057 = vmatprep.subr.mxu0 0.0
        %1058 = vmatpush1.msra.mxu0 0.0
        %1059 = vmatprep.subr.mxu0 0.0
        %1060 = vmatpush1.msra.mxu0 0.0
        %1061 = vmatprep.subr.mxu0 0.0
        %1062 = vmatpush1.msra.mxu0 0.0
        %1063 = vmatprep.subr.mxu0 0.0
        %1064 = vmatpush1.msra.mxu0 0.0
        %1065 = vmatprep.subr.mxu0 0.0
        %1066 = vmatpush1.msra.mxu0 0.0
        %1067 = vmatprep.subr.mxu0 0.0
        %1068 = vmatpush1.msra.mxu0 0.0
        %1069 = vmatprep.subr.mxu0 0.0
        %1070 = vmatpush1.msra.mxu0 0.0
        %1071 = vmatprep.subr.mxu0 0.0
        %1072 = vmatpush1.msra.mxu0 0.0
        %1073 = vmatprep.subr.mxu0 0.0
        %1074 = vmatpush1.msra.mxu0 0.0
        %1075 = vmatprep.subr.mxu0 0.0
        %1076 = vmatpush1.msra.mxu0 0.0
        %1077 = vmatprep.subr.mxu0 0.0
        %1078 = vmatpush1.msra.mxu0 0.0
        %1079 = vmatprep.subr.mxu0 0.0
        %1080 = vmatpush1.msra.mxu0 0.0
        %1081 = vmatprep.subr.mxu0 0.0
        %1082 = vmatpush1.msra.mxu0 0.0
        %1083 = vmatprep.subr.mxu0 0.0
        %1084 = vmatpush1.msra.mxu0 0.0
        %1085 = vmatprep.subr.mxu0 0.0
        %1086 = vmatpush1.msra.mxu0 0.0
        %1087 = vmatprep.subr.mxu0 0.0
        %1088 = vmatpush1.msra.mxu0 0.0
        %1089 = vmatprep.subr.mxu0 0.0
        %1090 = vmatpush1.msra.mxu0 0.0
        %1091 = vmatprep.mubr.f32.mxu0 0.0
        %1092 = vmatmul.mubr.f32.gmra.mrb[0].mxu0 %v1016
        %v1093 = vpop.f32.mrb[0].mxu0
        %v1094 = vadd.f32 %v1013, %v1093
        %v1095 = vpop.f32.mrb[0].mxu0
        %1096 = vmatprep.mubr.f32.mxu0 0.0
        %1097 = vmatmul.mubr.f32.gmra.mrb[0].mxu0 %v1019
        %v1098 = vpop.f32.mrb[0].mxu0
        %v1099 = vadd.f32 %v1013, %v1098
        %v1100 = vpop.f32.mrb[0].mxu0
        %1101 = vmatprep.mubr.f32.mxu0 0.0
        %1102 = vmatmul.mubr.f32.gmra.mrb[0].mxu0 %v1022
        %v1103 = vpop.f32.mrb[0].mxu0
        %v1104 = vadd.f32 %v1013, %v1103
        %v1105 = vpop.f32.mrb[0].mxu0
        %1106 = vmatprep.mubr.f32.mxu0 0.0
        %1107 = vmatmul.mubr.f32.gmra.mrb[0].mxu0 %v1025
        %v1108 = vpop.f32.mrb[0].mxu0
        %v1109 = vadd.f32 %v1013, %v1108
        %v1110 = vpop.f32.mrb[0].mxu0
        %1111 = vdwg.mxu0
        %v1112 = vld [vmem:[#allocation15] sm:$0x7]
        %v1113 = vsel %vm729, %v1094, 0.0
        %v1114 = vsel %vm729, %v1099, 0.0
        %v1115 = vadd.f32 %v1113, %v1114
        %v1116 = vsel %vm729, %v1104, 0.0
        %v1117 = vadd.f32 %v1115, %v1116
        %v1118 = vsel %vm729, %v1109, 0.0
        %v1119 = vadd.f32 %v1117, %v1118
        %v1120 = vrot.slane %v1119, 4
        %v1121 = vadd.f32 %v1119, %v1120
        %v1122 = vrot.slane %v1121, 2
        %v1123 = vadd.f32 %v1121, %v1122
        %v1124 = vrot.slane %v1123, 1
        %v1125 = vadd.f32 %v1123, %v1124
        %v1126 = vmul.f32 %v1125, %v949
        %v1127 = vmul.f32 %v1112, %v1126
        %v1128 = vlaneseq
        %v1129 = vshrl.u32 %v1128, 7
        %v1130 = vsub.s32 0, %v1129
        %v1131 = vrot.slane %v1127, %v1130
        %v1132 = vsub.f32 %v1094, %v1131
        %v1133 = vsub.f32 %v1099, %v1131
        %v1134 = vsub.f32 %v1104, %v1131
        %v1135 = vsub.f32 %v1109, %v1131
        %v1136 = vmul.f32 %v1132, %v1132
        %v1137 = vmul.f32 %v1133, %v1133
        %v1138 = vmul.f32 %v1134, %v1134
        %v1139 = vmul.f32 %v1135, %v1135
        %v1140 = vsel %vm729, %v1136, 0.0
        %v1141 = vsel %vm729, %v1137, 0.0
        %v1142 = vadd.f32 %v1140, %v1141
        %v1143 = vsel %vm729, %v1138, 0.0
        %v1144 = vadd.f32 %v1142, %v1143
        %v1145 = vsel %vm729, %v1139, 0.0
        %v1146 = vadd.f32 %v1144, %v1145
        %v1147 = vrot.slane %v1146, 4
        %v1148 = vadd.f32 %v1146, %v1147
        %v1149 = vrot.slane %v1148, 2
        %v1150 = vadd.f32 %v1148, %v1149
        %v1151 = vrot.slane %v1150, 1
        %v1152 = vadd.f32 %v1150, %v1151
        %v1153 = vmul.f32 %v1152, %v949
        %v1154 = vlaneseq
        %v1155 = vshrl.u32 %v1154, 7
        %v1156 = vsub.s32 1, %v1155
        %v1157 = vrot.slane %v1112, %v1156
        %v1158 = vmul.f32 %v1157, %v1132
        %v1159 = vmul.f32 %v1157, %v1133
        %v1160 = vmul.f32 %v1157, %v1134
        %v1161 = vmul.f32 %v1157, %v1135
        %v1162 = vadd.f32 %v1153, 1e-05
        %v1163 = vrsqrt.pop %v1162
        %v1164 = vmul.f32 %v1158, %v1163
        %v1165 = vmul.f32 %v1159, %v1163
        %v1166 = vmul.f32 %v1160, %v1163
        %v1167 = vmul.f32 %v1161, %v1163
        %v1168 = vlaneseq
        %v1169 = vshrl.u32 %v1168, 7
        %v1170 = vsub.s32 2, %v1169
        %v1171 = vrot.slane %v1112, %v1170
        %v1172 = vadd.f32 %v1164, %v1171
        %v1173 = vadd.f32 %v1165, %v1171
        %v1174 = vadd.f32 %v1166, %v1171
        %v1175 = vadd.f32 %v1167, %v1171
        %v1176 = vmul.f32 %v1172, 0.5
        %v1177 = vmul.f32 %v1173, 0.5
        %v1178 = vmul.f32 %v1174, 0.5
        %v1179 = vmul.f32 %v1175, 0.5
        %v1180 = vmul.f32 %v1172, 0.70710677
        %v1181 = vmul.f32 %v1173, 0.70710677
        %v1182 = vmul.f32 %v1174, 0.70710677
        %v1183 = vmul.f32 %v1175, 0.70710677
        %v1184 = vand.u32 2147483647, %v1180
        %v1185 = vand.u32 2147483647, %v1181
        %v1186 = vand.u32 2147483647, %v1182
        %v1187 = vand.u32 2147483647, %v1183
        %v1188 = vmul.f32 %v1184, 0.3275911
        %v1189 = vmul.f32 %v1185, 0.3275911
        %v1190 = vmul.f32 %v1186, 0.3275911
        %v1191 = vmul.f32 %v1187, 0.3275911
        %v1192 = vadd.f32 %v1188, 1.0
        %v1193 = vadd.f32 %v1189, 1.0
        %v1194 = vadd.f32 %v1190, 1.0
        %v1195 = vadd.f32 %v1191, 1.0
        %v1196 = vrcp.pop %v1192
        %v1197 = vmul.f32 1.0, %v1196
        %v1198 = vrcp.pop %v1193
        %v1199 = vmul.f32 1.0, %v1198
        %v1200 = vrcp.pop %v1194
        %v1201 = vmul.f32 1.0, %v1200
        %v1202 = vrcp.pop %v1195
        %v1203 = vmul.f32 1.0, %v1202
        %v1204 = vmul.f32 %v1197, 1.0614054
        %v1205 = vmul.f32 %v1199, 1.0614054
        %v1206 = vmul.f32 %v1201, 1.0614054
        %v1207 = vmul.f32 %v1203, 1.0614054
        %v1208 = vadd.f32 %v1204, -1.4531521
        %v1209 = vadd.f32 %v1205, -1.4531521
        %v1210 = vadd.f32 %v1206, -1.4531521
        %v1211 = vadd.f32 %v1207, -1.4531521
        %v1212 = vmul.f32 %v1208, %v1197
        %v1213 = vmul.f32 %v1209, %v1199
        %v1214 = vmul.f32 %v1210, %v1201
        %v1215 = vmul.f32 %v1211, %v1203
        %v1216 = vadd.f32 %v1212, 1.4214138
        %v1217 = vadd.f32 %v1213, 1.4214138
        %v1218 = vadd.f32 %v1214, 1.4214138
        %v1219 = vadd.f32 %v1215, 1.4214138
        %v1220 = vmul.f32 %v1216, %v1197
        %v1221 = vmul.f32 %v1217, %v1199
        %v1222 = vmul.f32 %v1218, %v1201
        %v1223 = vmul.f32 %v1219, %v1203
        %v1224 = vadd.f32 %v1220, -0.28449672
        %v1225 = vadd.f32 %v1221, -0.28449672
        %v1226 = vadd.f32 %v1222, -0.28449672
        %v1227 = vadd.f32 %v1223, -0.28449672
        %v1228 = vmul.f32 %v1224, %v1197
        %v1229 = vmul.f32 %v1225, %v1199
        %v1230 = vmul.f32 %v1226, %v1201
        %v1231 = vmul.f32 %v1227, %v1203
        %v1232 = vadd.f32 %v1228, 0.2548296
        %v1233 = vadd.f32 %v1229, 0.2548296
        %v1234 = vadd.f32 %v1230, 0.2548296
        %v1235 = vadd.f32 %v1231, 0.2548296
        %v1236 = vmul.f32 %v1232, %v1197
        %v1237 = vmul.f32 %v1233, %v1199
        %v1238 = vmul.f32 %v1234, %v1201
        %v1239 = vmul.f32 %v1235, %v1203
        %v1240 = vsub.f32 0.0, %v1184
        %v1241 = vsub.f32 0.0, %v1185
        %v1242 = vsub.f32 0.0, %v1186
        %v1243 = vsub.f32 0.0, %v1187
        %v1244 = vmul.f32 %v1240, %v1184
        %v1245 = vmul.f32 %v1241, %v1185
        %v1246 = vmul.f32 %v1242, %v1186
        %v1247 = vmul.f32 %v1243, %v1187
        %v1248 = vmul.f32 %v1244, 1.442695
        %v1249 = vpow.pop %v1248
        %v1250 = vmul.f32 %v1245, 1.442695
        %v1251 = vpow.pop %v1250
        %v1252 = vmul.f32 %v1246, 1.442695
        %v1253 = vpow.pop %v1252
        %v1254 = vmul.f32 %v1247, 1.442695
        %v1255 = vpow.pop %v1254
        %v1256 = vmul.f32 %v1236, %v1249
        %v1257 = vmul.f32 %v1237, %v1251
        %v1258 = vmul.f32 %v1238, %v1253
        %v1259 = vmul.f32 %v1239, %v1255
        %v1260 = vsub.f32 1.0, %v1256
        %v1261 = vsub.f32 1.0, %v1257
        %v1262 = vsub.f32 1.0, %v1258
        %v1263 = vsub.f32 1.0, %v1259
        %vm1264 = vcmp.ge.f32.partialorder %v1180, 0.0
        %vm1265 = vcmp.ge.f32.partialorder %v1181, 0.0
        %vm1266 = vcmp.ge.f32.partialorder %v1182, 0.0
        %vm1267 = vcmp.ge.f32.partialorder %v1183, 0.0
        %v1268 = vsub.f32 0.0, %v1260
        %v1269 = vsub.f32 0.0, %v1261
        %v1270 = vsub.f32 0.0, %v1262
        %v1271 = vsub.f32 0.0, %v1263
        %v1272 = vsel %vm1264, %v1260, %v1268
        %v1273 = vsel %vm1265, %v1261, %v1269
        %v1274 = vsel %vm1266, %v1262, %v1270
        %v1275 = vsel %vm1267, %v1263, %v1271
        %v1276 = vadd.f32 %v1272, 1.0
        %v1277 = vadd.f32 %v1273, 1.0
        %v1278 = vadd.f32 %v1274, 1.0
        %v1279 = vadd.f32 %v1275, 1.0
        %v1280 = vmul.f32 %v1176, %v1276
        %v1281 = vmul.f32 %v1177, %v1277
        %v1282 = vmul.f32 %v1178, %v1278
        %v1283 = vmul.f32 %v1179, %v1279
        %s1284 = sld [smem:[#allocation2 + $0x1]]
        %s1285 = sadd.f32 %s1284, 1.0
        %v1286 = vstv %s1285
        %v1287 = vmul.f32 %v1286, %v1280
        %v1288 = vmul.f32 %v1286, %v1281
        %v1289 = vmul.f32 %v1286, %v1282
        %v1290 = vmul.f32 %v1286, %v1283
        %1291 = vmatprep.subr.mxu0 0.0
        %1292 = vmatpush1.msra.mxu0 %v1280
        %1293 = vmatprep.subr.mxu0 0.0
        %1294 = vmatpush1.msra.mxu0 %v1281
        %1295 = vmatprep.subr.mxu0 0.0
        %1296 = vmatpush1.msra.mxu0 %v1282
        %1297 = vmatprep.subr.mxu0 0.0
        %1298 = vmatpush1.msra.mxu0 %v1283
        %1299 = vmatprep.subr.mxu0 0.0
        %1300 = vmatpush1.msra.mxu0 0.0
        %1301 = vmatprep.subr.mxu0 0.0
        %1302 = vmatpush1.msra.mxu0 0.0
        %1303 = vmatprep.subr.mxu0 0.0
        %1304 = vmatpush1.msra.mxu0 0.0
        %1305 = vmatprep.subr.mxu0 0.0
        %1306 = vmatpush1.msra.mxu0 0.0
        %1307 = vmatprep.subr.mxu0 0.0
        %1308 = vmatpush1.msra.mxu0 0.0
        %1309 = vmatprep.subr.mxu0 0.0
        %1310 = vmatpush1.msra.mxu0 0.0
        %1311 = vmatprep.subr.mxu0 0.0
        %1312 = vmatpush1.msra.mxu0 0.0
        %1313 = vmatprep.subr.mxu0 0.0
        %1314 = vmatpush1.msra.mxu0 0.0
        %1315 = vmatprep.subr.mxu0 0.0
        %1316 = vmatpush1.msra.mxu0 0.0
        %1317 = vmatprep.subr.mxu0 0.0
        %1318 = vmatpush1.msra.mxu0 0.0
        %1319 = vmatprep.subr.mxu0 0.0
        %1320 = vmatpush1.msra.mxu0 0.0
        %1321 = vmatprep.subr.mxu0 0.0
        %1322 = vmatpush1.msra.mxu0 0.0
        %1323 = vmatprep.subr.mxu0 0.0
        %1324 = vmatpush1.msra.mxu0 0.0
        %1325 = vmatprep.subr.mxu0 0.0
        %1326 = vmatpush1.msra.mxu0 0.0
        %1327 = vmatprep.subr.mxu0 0.0
        %1328 = vmatpush1.msra.mxu0 0.0
        %1329 = vmatprep.subr.mxu0 0.0
        %1330 = vmatpush1.msra.mxu0 0.0
        %1331 = vmatprep.subr.mxu0 0.0
        %1332 = vmatpush1.msra.mxu0 0.0
        %1333 = vmatprep.subr.mxu0 0.0
        %1334 = vmatpush1.msra.mxu0 0.0
        %1335 = vmatprep.subr.mxu0 0.0
        %1336 = vmatpush1.msra.mxu0 0.0
        %1337 = vmatprep.subr.mxu0 0.0
        %1338 = vmatpush1.msra.mxu0 0.0
        %1339 = vmatprep.subr.mxu0 0.0
        %1340 = vmatpush1.msra.mxu0 0.0
        %1341 = vmatprep.subr.mxu0 0.0
        %1342 = vmatpush1.msra.mxu0 0.0
        %1343 = vmatprep.subr.mxu0 0.0
        %1344 = vmatpush1.msra.mxu0 0.0
        %1345 = vmatprep.subr.mxu0 0.0
        %1346 = vmatpush1.msra.mxu0 0.0
        %1347 = vmatprep.subr.mxu0 0.0
        %1348 = vmatpush1.msra.mxu0 0.0
        %1349 = vmatprep.subr.mxu0 0.0
        %1350 = vmatpush1.msra.mxu0 0.0
        %1351 = vmatprep.subr.mxu0 0.0
        %1352 = vmatpush1.msra.mxu0 0.0
        %1353 = vmatprep.subr.mxu0 0.0
        %1354 = vmatpush1.msra.mxu0 0.0
        %1355 = vmatprep.mubr.f32.mxu0 0.0
        %1356 = vmatmul.mubr.f32.gmra.mrb[0].mxu0 %v731
        %v1357 = vpop.f32.mrb[0].mxu0
        %v1358 = vadd.f32 %v1287, %v1357
        %v1359 = vpop.f32.mrb[0].mxu0
        %1360 = vmatprep.mubr.f32.mxu0 0.0
        %1361 = vmatmul.mubr.f32.gmra.mrb[0].mxu0 %v734
        %v1362 = vpop.f32.mrb[0].mxu0
        %v1363 = vadd.f32 %v1288, %v1362
        %v1364 = vpop.f32.mrb[0].mxu0
        %1365 = vmatprep.mubr.f32.mxu0 0.0
        %1366 = vmatmul.mubr.f32.gmra.mrb[0].mxu0 %v737
        %v1367 = vpop.f32.mrb[0].mxu0
        %v1368 = vadd.f32 %v1289, %v1367
        %v1369 = vpop.f32.mrb[0].mxu0
        %1370 = vmatprep.mubr.f32.mxu0 0.0
        %1371 = vmatmul.mubr.f32.gmra.mrb[0].mxu0 %v740
        %v1372 = vpop.f32.mrb[0].mxu0
        %v1373 = vadd.f32 %v1290, %v1372
        %v1374 = vpop.f32.mrb[0].mxu0
        %1375 = vdwg.mxu0
        %s1376 = scalar_lea.vmem [#allocation10], 32
        %v1377 = vld [vmem:[%s1376] sm:$0xff]
        %v1378 = vld [vmem:[%s1376 + $0x8] sm:$0xff]
        %v1379 = vld [vmem:[%s1376 + $0x10] sm:$0xff]
        %v1380 = vld [vmem:[%s1376 + $0x18] sm:$0xff]
        %s1381 = scalar_lea.vmem [#allocation12], 1
        %v1382 = vld [vmem:[%s1381] sm:$0x1]
        %v1384 = vlaneseq
        %v1385 = vshrl.u32 %v1384, 7
        %v1386 = vsub.s32 0, %v1385
        %v1387 = vrot.slane %v1382, %v1386
        %v1390 = vsel %vm729, %v1358, 0
        %v1393 = vsel %vm729, %v1363, 0
        %v1396 = vsel %vm729, %v1368, 0
        %v1399 = vsel %vm729, %v1373, 0
        %1401 = vmatprep.subr.mxu0 0.0
        %1402 = vmatpush1.msra.mxu0 %v1377
        %1403 = vmatprep.subr.mxu0 0.0
        %1404 = vmatpush1.msra.mxu0 %v1378
        %1405 = vmatprep.subr.mxu0 0.0
        %1406 = vmatpush1.msra.mxu0 %v1379
        %1407 = vmatprep.subr.mxu0 0.0
        %1408 = vmatpush1.msra.mxu0 %v1380
        %1409 = vmatprep.subr.mxu0 0.0
        %1410 = vmatpush1.msra.mxu0 0.0
        %1411 = vmatprep.subr.mxu0 0.0
        %1412 = vmatpush1.msra.mxu0 0.0
        %1413 = vmatprep.subr.mxu0 0.0
        %1414 = vmatpush1.msra.mxu0 0.0
        %1415 = vmatprep.subr.mxu0 0.0
        %1416 = vmatpush1.msra.mxu0 0.0
        %1417 = vmatprep.subr.mxu0 0.0
        %1418 = vmatpush1.msra.mxu0 0.0
        %1419 = vmatprep.subr.mxu0 0.0
        %1420 = vmatpush1.msra.mxu0 0.0
        %1421 = vmatprep.subr.mxu0 0.0
        %1422 = vmatpush1.msra.mxu0 0.0
        %1423 = vmatprep.subr.mxu0 0.0
        %1424 = vmatpush1.msra.mxu0 0.0
        %1425 = vmatprep.subr.mxu0 0.0
        %1426 = vmatpush1.msra.mxu0 0.0
        %1427 = vmatprep.subr.mxu0 0.0
        %1428 = vmatpush1.msra.mxu0 0.0
        %1429 = vmatprep.subr.mxu0 0.0
        %1430 = vmatpush1.msra.mxu0 0.0
        %1431 = vmatprep.subr.mxu0 0.0
        %1432 = vmatpush1.msra.mxu0 0.0
        %1433 = vmatprep.subr.mxu0 0.0
        %1434 = vmatpush1.msra.mxu0 0.0
        %1435 = vmatprep.subr.mxu0 0.0
        %1436 = vmatpush1.msra.mxu0 0.0
        %1437 = vmatprep.subr.mxu0 0.0
        %1438 = vmatpush1.msra.mxu0 0.0
        %1439 = vmatprep.subr.mxu0 0.0
        %1440 = vmatpush1.msra.mxu0 0.0
        %1441 = vmatprep.subr.mxu0 0.0
        %1442 = vmatpush1.msra.mxu0 0.0
        %1443 = vmatprep.subr.mxu0 0.0
        %1444 = vmatpush1.msra.mxu0 0.0
        %1445 = vmatprep.subr.mxu0 0.0
        %1446 = vmatpush1.msra.mxu0 0.0
        %1447 = vmatprep.subr.mxu0 0.0
        %1448 = vmatpush1.msra.mxu0 0.0
        %1449 = vmatprep.subr.mxu0 0.0
        %1450 = vmatpush1.msra.mxu0 0.0
        %1451 = vmatprep.subr.mxu0 0.0
        %1452 = vmatpush1.msra.mxu0 0.0
        %1453 = vmatprep.subr.mxu0 0.0
        %1454 = vmatpush1.msra.mxu0 0.0
        %1455 = vmatprep.subr.mxu0 0.0
        %1456 = vmatpush1.msra.mxu0 0.0
        %1457 = vmatprep.subr.mxu0 0.0
        %1458 = vmatpush1.msra.mxu0 0.0
        %1459 = vmatprep.subr.mxu0 0.0
        %1460 = vmatpush1.msra.mxu0 0.0
        %1461 = vmatprep.subr.mxu0 0.0
        %1462 = vmatpush1.msra.mxu0 0.0
        %1463 = vmatprep.subr.mxu0 0.0
        %1464 = vmatpush1.msra.mxu0 0.0
        %1465 = vmatprep.mubr.f32.mxu0 0.0
        %1466 = vmatmul.mubr.f32.gmra.mrb[0].mxu0 %v1390
        %v1467 = vpop.f32.mrb[0].mxu0
        %v1468 = vadd.f32 %v1387, %v1467
        %v1469 = vpop.f32.mrb[0].mxu0
        %1470 = vmatprep.mubr.f32.mxu0 0.0
        %1471 = vmatmul.mubr.f32.gmra.mrb[0].mxu0 %v1393
        %v1472 = vpop.f32.mrb[0].mxu0
        %v1473 = vadd.f32 %v1387, %v1472
        %v1474 = vpop.f32.mrb[0].mxu0
        %1475 = vmatprep.mubr.f32.mxu0 0.0
        %1476 = vmatmul.mubr.f32.gmra.mrb[0].mxu0 %v1396
        %v1477 = vpop.f32.mrb[0].mxu0
        %v1478 = vadd.f32 %v1387, %v1477
        %v1479 = vpop.f32.mrb[0].mxu0
        %1480 = vmatprep.mubr.f32.mxu0 0.0
        %1481 = vmatmul.mubr.f32.gmra.mrb[0].mxu0 %v1399
        %v1482 = vpop.f32.mrb[0].mxu0
        %v1483 = vadd.f32 %v1387, %v1482
        %v1484 = vpop.f32.mrb[0].mxu0
        %1485 = vdwg.mxu0
        %s1486 = scalar_lea.vmem [#allocation13], 4
        %v1487 = vld [vmem:[%s1486] sm:$0x7]
        %v1488 = vsel %vm729, %v1468, 0.0
        %v1489 = vsel %vm729, %v1473, 0.0
        %v1490 = vadd.f32 %v1488, %v1489
        %v1491 = vsel %vm729, %v1478, 0.0
        %v1492 = vadd.f32 %v1490, %v1491
        %v1493 = vsel %vm729, %v1483, 0.0
        %v1494 = vadd.f32 %v1492, %v1493
        %v1495 = vrot.slane %v1494, 4
        %v1496 = vadd.f32 %v1494, %v1495
        %v1497 = vrot.slane %v1496, 2
        %v1498 = vadd.f32 %v1496, %v1497
        %v1499 = vrot.slane %v1498, 1
        %v1500 = vadd.f32 %v1498, %v1499
        %v1501 = vmul.f32 %v1500, %v949
        %v1502 = vmul.f32 %v1487, %v1501
        %v1503 = vlaneseq
        %v1504 = vshrl.u32 %v1503, 7
        %v1505 = vsub.s32 0, %v1504
        %v1506 = vrot.slane %v1502, %v1505
        %v1507 = vsub.f32 %v1468, %v1506
        %v1508 = vsub.f32 %v1473, %v1506
        %v1509 = vsub.f32 %v1478, %v1506
        %v1510 = vsub.f32 %v1483, %v1506
        %v1511 = vmul.f32 %v1507, %v1507
        %v1512 = vmul.f32 %v1508, %v1508
        %v1513 = vmul.f32 %v1509, %v1509
        %v1514 = vmul.f32 %v1510, %v1510
        %v1515 = vsel %vm729, %v1511, 0.0
        %v1516 = vsel %vm729, %v1512, 0.0
        %v1517 = vadd.f32 %v1515, %v1516
        %v1518 = vsel %vm729, %v1513, 0.0
        %v1519 = vadd.f32 %v1517, %v1518
        %v1520 = vsel %vm729, %v1514, 0.0
        %v1521 = vadd.f32 %v1519, %v1520
        %v1522 = vrot.slane %v1521, 4
        %v1523 = vadd.f32 %v1521, %v1522
        %v1524 = vrot.slane %v1523, 2
        %v1525 = vadd.f32 %v1523, %v1524
        %v1526 = vrot.slane %v1525, 1
        %v1527 = vadd.f32 %v1525, %v1526
        %v1528 = vmul.f32 %v1527, %v949
        %v1529 = vlaneseq
        %v1530 = vshrl.u32 %v1529, 7
        %v1531 = vsub.s32 1, %v1530
        %v1532 = vrot.slane %v1487, %v1531
        %v1533 = vmul.f32 %v1532, %v1507
        %v1534 = vmul.f32 %v1532, %v1508
        %v1535 = vmul.f32 %v1532, %v1509
        %v1536 = vmul.f32 %v1532, %v1510
        %v1537 = vadd.f32 %v1528, 1e-05
        %v1538 = vrsqrt.pop %v1537
        %v1539 = vmul.f32 %v1533, %v1538
        %v1540 = vmul.f32 %v1534, %v1538
        %v1541 = vmul.f32 %v1535, %v1538
        %v1542 = vmul.f32 %v1536, %v1538
        %v1543 = vlaneseq
        %v1544 = vshrl.u32 %v1543, 7
        %v1545 = vsub.s32 2, %v1544
        %v1546 = vrot.slane %v1487, %v1545
        %v1547 = vadd.f32 %v1539, %v1546
        %v1548 = vadd.f32 %v1540, %v1546
        %v1549 = vadd.f32 %v1541, %v1546
        %v1550 = vadd.f32 %v1542, %v1546
        %v1551 = vmax.f32 %v1547, 0.0
        %v1552 = vmax.f32 %v1548, 0.0
        %v1553 = vmax.f32 %v1549, 0.0
        %v1554 = vmax.f32 %v1550, 0.0
        %s1555 = scalar_lea.vmem %s8, 32
        %v1556 = vld [vmem:[%s1555] sm:$0xff]
        %v1557 = vld [vmem:[%s1555 + $0x8] sm:$0xff]
        %v1558 = vld [vmem:[%s1555 + $0x10] sm:$0xff]
        %v1559 = vld [vmem:[%s1555 + $0x18] sm:$0xff]
        %s1560 = scalar_lea.vmem %s9, 1
        %v1561 = vld [vmem:[%s1560] sm:$0x1]
        %v1563 = vlaneseq
        %v1564 = vshrl.u32 %v1563, 7
        %v1565 = vsub.s32 0, %v1564
        %v1566 = vrot.slane %v1561, %v1565
        %v1569 = vsel %vm729, %v1551, 0
        %v1572 = vsel %vm729, %v1552, 0
        %v1575 = vsel %vm729, %v1553, 0
        %v1578 = vsel %vm729, %v1554, 0
        %1580 = vmatprep.subr.mxu0 0.0
        %1581 = vmatpush1.msra.mxu0 %v1556
        %1582 = vmatprep.subr.mxu0 0.0
        %1583 = vmatpush1.msra.mxu0 %v1557
        %1584 = vmatprep.subr.mxu0 0.0
        %1585 = vmatpush1.msra.mxu0 %v1558
        %1586 = vmatprep.subr.mxu0 0.0
        %1587 = vmatpush1.msra.mxu0 %v1559
        %1588 = vmatprep.subr.mxu0 0.0
        %1589 = vmatpush1.msra.mxu0 0.0
        %1590 = vmatprep.subr.mxu0 0.0
        %1591 = vmatpush1.msra.mxu0 0.0
        %1592 = vmatprep.subr.mxu0 0.0
        %1593 = vmatpush1.msra.mxu0 0.0
        %1594 = vmatprep.subr.mxu0 0.0
        %1595 = vmatpush1.msra.mxu0 0.0
        %1596 = vmatprep.subr.mxu0 0.0
        %1597 = vmatpush1.msra.mxu0 0.0
        %1598 = vmatprep.subr.mxu0 0.0
        %1599 = vmatpush1.msra.mxu0 0.0
        %1600 = vmatprep.subr.mxu0 0.0
        %1601 = vmatpush1.msra.mxu0 0.0
        %1602 = vmatprep.subr.mxu0 0.0
        %1603 = vmatpush1.msra.mxu0 0.0
        %1604 = vmatprep.subr.mxu0 0.0
        %1605 = vmatpush1.msra.mxu0 0.0
        %1606 = vmatprep.subr.mxu0 0.0
        %1607 = vmatpush1.msra.mxu0 0.0
        %1608 = vmatprep.subr.mxu0 0.0
        %1609 = vmatpush1.msra.mxu0 0.0
        %1610 = vmatprep.subr.mxu0 0.0
        %1611 = vmatpush1.msra.mxu0 0.0
        %1612 = vmatprep.subr.mxu0 0.0
        %1613 = vmatpush1.msra.mxu0 0.0
        %1614 = vmatprep.subr.mxu0 0.0
        %1615 = vmatpush1.msra.mxu0 0.0
        %1616 = vmatprep.subr.mxu0 0.0
        %1617 = vmatpush1.msra.mxu0 0.0
        %1618 = vmatprep.subr.mxu0 0.0
        %1619 = vmatpush1.msra.mxu0 0.0
        %1620 = vmatprep.subr.mxu0 0.0
        %1621 = vmatpush1.msra.mxu0 0.0
        %1622 = vmatprep.subr.mxu0 0.0
        %1623 = vmatpush1.msra.mxu0 0.0
        %1624 = vmatprep.subr.mxu0 0.0
        %1625 = vmatpush1.msra.mxu0 0.0
        %1626 = vmatprep.subr.mxu0 0.0
        %1627 = vmatpush1.msra.mxu0 0.0
        %1628 = vmatprep.subr.mxu0 0.0
        %1629 = vmatpush1.msra.mxu0 0.0
        %1630 = vmatprep.subr.mxu0 0.0
        %1631 = vmatpush1.msra.mxu0 0.0
        %1632 = vmatprep.subr.mxu0 0.0
        %1633 = vmatpush1.msra.mxu0 0.0
        %1634 = vmatprep.subr.mxu0 0.0
        %1635 = vmatpush1.msra.mxu0 0.0
        %1636 = vmatprep.subr.mxu0 0.0
        %1637 = vmatpush1.msra.mxu0 0.0
        %1638 = vmatprep.subr.mxu0 0.0
        %1639 = vmatpush1.msra.mxu0 0.0
        %1640 = vmatprep.subr.mxu0 0.0
        %1641 = vmatpush1.msra.mxu0 0.0
        %1642 = vmatprep.subr.mxu0 0.0
        %1643 = vmatpush1.msra.mxu0 0.0
        %1644 = vmatprep.mubr.f32.mxu0 0.0
        %1645 = vmatmul.mubr.f32.gmra.mrb[0].mxu0 %v1569
        %v1646 = vpop.f32.mrb[0].mxu0
        %v1647 = vadd.f32 %v1566, %v1646
        %v1648 = vpop.f32.mrb[0].mxu0
        %1649 = vmatprep.mubr.f32.mxu0 0.0
        %1650 = vmatmul.mubr.f32.gmra.mrb[0].mxu0 %v1572
        %v1651 = vpop.f32.mrb[0].mxu0
        %v1652 = vadd.f32 %v1566, %v1651
        %v1653 = vpop.f32.mrb[0].mxu0
        %1654 = vmatprep.mubr.f32.mxu0 0.0
        %1655 = vmatmul.mubr.f32.gmra.mrb[0].mxu0 %v1575
        %v1656 = vpop.f32.mrb[0].mxu0
        %v1657 = vadd.f32 %v1566, %v1656
        %v1658 = vpop.f32.mrb[0].mxu0
        %1659 = vmatprep.mubr.f32.mxu0 0.0
        %1660 = vmatmul.mubr.f32.gmra.mrb[0].mxu0 %v1578
        %v1661 = vpop.f32.mrb[0].mxu0
        %v1662 = vadd.f32 %v1566, %v1661
        %v1663 = vpop.f32.mrb[0].mxu0
        %1664 = vdwg.mxu0
        %s1665 = scalar_lea.vmem [#allocation15], 4
        %v1666 = vld [vmem:[%s1665] sm:$0x7]
        %v1667 = vsel %vm729, %v1647, 0.0
        %v1668 = vsel %vm729, %v1652, 0.0
        %v1669 = vadd.f32 %v1667, %v1668
        %v1670 = vsel %vm729, %v1657, 0.0
        %v1671 = vadd.f32 %v1669, %v1670
        %v1672 = vsel %vm729, %v1662, 0.0
        %v1673 = vadd.f32 %v1671, %v1672
        %v1674 = vrot.slane %v1673, 4
        %v1675 = vadd.f32 %v1673, %v1674
        %v1676 = vrot.slane %v1675, 2
        %v1677 = vadd.f32 %v1675, %v1676
        %v1678 = vrot.slane %v1677, 1
        %v1679 = vadd.f32 %v1677, %v1678
        %v1680 = vmul.f32 %v1679, %v949
        %v1681 = vmul.f32 %v1666, %v1680
        %v1682 = vlaneseq
        %v1683 = vshrl.u32 %v1682, 7
        %v1684 = vsub.s32 0, %v1683
        %v1685 = vrot.slane %v1681, %v1684
        %v1686 = vsub.f32 %v1647, %v1685
        %v1687 = vsub.f32 %v1652, %v1685
        %v1688 = vsub.f32 %v1657, %v1685
        %v1689 = vsub.f32 %v1662, %v1685
        %v1690 = vmul.f32 %v1686, %v1686
        %v1691 = vmul.f32 %v1687, %v1687
        %v1692 = vmul.f32 %v1688, %v1688
        %v1693 = vmul.f32 %v1689, %v1689
        %v1694 = vsel %vm729, %v1690, 0.0
        %v1695 = vsel %vm729, %v1691, 0.0
        %v1696 = vadd.f32 %v1694, %v1695
        %v1697 = vsel %vm729, %v1692, 0.0
        %v1698 = vadd.f32 %v1696, %v1697
        %v1699 = vsel %vm729, %v1693, 0.0
        %v1700 = vadd.f32 %v1698, %v1699
        %v1701 = vrot.slane %v1700, 4
        %v1702 = vadd.f32 %v1700, %v1701
        %v1703 = vrot.slane %v1702, 2
        %v1704 = vadd.f32 %v1702, %v1703
        %v1705 = vrot.slane %v1704, 1
        %v1706 = vadd.f32 %v1704, %v1705
        %v1707 = vmul.f32 %v1706, %v949
        %v1708 = vlaneseq
        %v1709 = vshrl.u32 %v1708, 7
        %v1710 = vsub.s32 1, %v1709
        %v1711 = vrot.slane %v1666, %v1710
        %v1712 = vmul.f32 %v1711, %v1686
        %v1713 = vmul.f32 %v1711, %v1687
        %v1714 = vmul.f32 %v1711, %v1688
        %v1715 = vmul.f32 %v1711, %v1689
        %v1716 = vadd.f32 %v1707, 1e-05
        %v1717 = vrsqrt.pop %v1716
        %v1718 = vmul.f32 %v1712, %v1717
        %v1719 = vmul.f32 %v1713, %v1717
        %v1720 = vmul.f32 %v1714, %v1717
        %v1721 = vmul.f32 %v1715, %v1717
        %v1722 = vlaneseq
        %v1723 = vshrl.u32 %v1722, 7
        %v1724 = vsub.s32 2, %v1723
        %v1725 = vrot.slane %v1666, %v1724
        %v1726 = vadd.f32 %v1718, %v1725
        %v1727 = vadd.f32 %v1719, %v1725
        %v1728 = vadd.f32 %v1720, %v1725
        %v1729 = vadd.f32 %v1721, %v1725
        %v1730 = vmul.f32 %v1726, 0.5
        %v1731 = vmul.f32 %v1727, 0.5
        %v1732 = vmul.f32 %v1728, 0.5
        %v1733 = vmul.f32 %v1729, 0.5
        %v1734 = vmul.f32 %v1726, 0.70710677
        %v1735 = vmul.f32 %v1727, 0.70710677
        %v1736 = vmul.f32 %v1728, 0.70710677
        %v1737 = vmul.f32 %v1729, 0.70710677
        %v1738 = vand.u32 2147483647, %v1734
        %v1739 = vand.u32 2147483647, %v1735
        %v1740 = vand.u32 2147483647, %v1736
        %v1741 = vand.u32 2147483647, %v1737
        %v1742 = vmul.f32 %v1738, 0.3275911
        %v1743 = vmul.f32 %v1739, 0.3275911
        %v1744 = vmul.f32 %v1740, 0.3275911
        %v1745 = vmul.f32 %v1741, 0.3275911
        %v1746 = vadd.f32 %v1742, 1.0
        %v1747 = vadd.f32 %v1743, 1.0
        %v1748 = vadd.f32 %v1744, 1.0
        %v1749 = vadd.f32 %v1745, 1.0
        %v1750 = vrcp.pop %v1746
        %v1751 = vmul.f32 1.0, %v1750
        %v1752 = vrcp.pop %v1747
        %v1753 = vmul.f32 1.0, %v1752
        %v1754 = vrcp.pop %v1748
        %v1755 = vmul.f32 1.0, %v1754
        %v1756 = vrcp.pop %v1749
        %v1757 = vmul.f32 1.0, %v1756
        %v1758 = vmul.f32 %v1751, 1.0614054
        %v1759 = vmul.f32 %v1753, 1.0614054
        %v1760 = vmul.f32 %v1755, 1.0614054
        %v1761 = vmul.f32 %v1757, 1.0614054
        %v1762 = vadd.f32 %v1758, -1.4531521
        %v1763 = vadd.f32 %v1759, -1.4531521
        %v1764 = vadd.f32 %v1760, -1.4531521
        %v1765 = vadd.f32 %v1761, -1.4531521
        %v1766 = vmul.f32 %v1762, %v1751
        %v1767 = vmul.f32 %v1763, %v1753
        %v1768 = vmul.f32 %v1764, %v1755
        %v1769 = vmul.f32 %v1765, %v1757
        %v1770 = vadd.f32 %v1766, 1.4214138
        %v1771 = vadd.f32 %v1767, 1.4214138
        %v1772 = vadd.f32 %v1768, 1.4214138
        %v1773 = vadd.f32 %v1769, 1.4214138
        %v1774 = vmul.f32 %v1770, %v1751
        %v1775 = vmul.f32 %v1771, %v1753
        %v1776 = vmul.f32 %v1772, %v1755
        %v1777 = vmul.f32 %v1773, %v1757
        %v1778 = vadd.f32 %v1774, -0.28449672
        %v1779 = vadd.f32 %v1775, -0.28449672
        %v1780 = vadd.f32 %v1776, -0.28449672
        %v1781 = vadd.f32 %v1777, -0.28449672
        %v1782 = vmul.f32 %v1778, %v1751
        %v1783 = vmul.f32 %v1779, %v1753
        %v1784 = vmul.f32 %v1780, %v1755
        %v1785 = vmul.f32 %v1781, %v1757
        %v1786 = vadd.f32 %v1782, 0.2548296
        %v1787 = vadd.f32 %v1783, 0.2548296
        %v1788 = vadd.f32 %v1784, 0.2548296
        %v1789 = vadd.f32 %v1785, 0.2548296
        %v1790 = vmul.f32 %v1786, %v1751
        %v1791 = vmul.f32 %v1787, %v1753
        %v1792 = vmul.f32 %v1788, %v1755
        %v1793 = vmul.f32 %v1789, %v1757
        %v1794 = vsub.f32 0.0, %v1738
        %v1795 = vsub.f32 0.0, %v1739
        %v1796 = vsub.f32 0.0, %v1740
        %v1797 = vsub.f32 0.0, %v1741
        %v1798 = vmul.f32 %v1794, %v1738
        %v1799 = vmul.f32 %v1795, %v1739
        %v1800 = vmul.f32 %v1796, %v1740
        %v1801 = vmul.f32 %v1797, %v1741
        %v1802 = vmul.f32 %v1798, 1.442695
        %v1803 = vpow.pop %v1802
        %v1804 = vmul.f32 %v1799, 1.442695
        %v1805 = vpow.pop %v1804
        %v1806 = vmul.f32 %v1800, 1.442695
        %v1807 = vpow.pop %v1806
        %v1808 = vmul.f32 %v1801, 1.442695
        %v1809 = vpow.pop %v1808
        %v1810 = vmul.f32 %v1790, %v1803
        %v1811 = vmul.f32 %v1791, %v1805
        %v1812 = vmul.f32 %v1792, %v1807
        %v1813 = vmul.f32 %v1793, %v1809
        %v1814 = vsub.f32 1.0, %v1810
        %v1815 = vsub.f32 1.0, %v1811
        %v1816 = vsub.f32 1.0, %v1812
        %v1817 = vsub.f32 1.0, %v1813
        %vm1818 = vcmp.ge.f32.partialorder %v1734, 0.0
        %vm1819 = vcmp.ge.f32.partialorder %v1735, 0.0
        %vm1820 = vcmp.ge.f32.partialorder %v1736, 0.0
        %vm1821 = vcmp.ge.f32.partialorder %v1737, 0.0
        %v1822 = vsub.f32 0.0, %v1814
        %v1823 = vsub.f32 0.0, %v1815
        %v1824 = vsub.f32 0.0, %v1816
        %v1825 = vsub.f32 0.0, %v1817
        %v1826 = vsel %vm1818, %v1814, %v1822
        %v1827 = vsel %vm1819, %v1815, %v1823
        %v1828 = vsel %vm1820, %v1816, %v1824
        %v1829 = vsel %vm1821, %v1817, %v1825
        %v1830 = vadd.f32 %v1826, 1.0
        %v1831 = vadd.f32 %v1827, 1.0
        %v1832 = vadd.f32 %v1828, 1.0
        %v1833 = vadd.f32 %v1829, 1.0
        %v1834 = vmul.f32 %v1730, %v1830
        %v1835 = vmul.f32 %v1731, %v1831
        %v1836 = vmul.f32 %v1732, %v1832
        %v1837 = vmul.f32 %v1733, %v1833
        %s1838 = sld [smem:[#allocation2 + $0x2]]
        %s1839 = sadd.f32 %s1838, 1.0
        %v1840 = vstv %s1839
        %v1841 = vmul.f32 %v1840, %v1834
        %v1842 = vmul.f32 %v1840, %v1835
        %v1843 = vmul.f32 %v1840, %v1836
        %v1844 = vmul.f32 %v1840, %v1837
        %1845 = vmatprep.subr.mxu0 0.0
        %1846 = vmatpush1.msra.mxu0 %v1834
        %1847 = vmatprep.subr.mxu0 0.0
        %1848 = vmatpush1.msra.mxu0 %v1835
        %1849 = vmatprep.subr.mxu0 0.0
        %1850 = vmatpush1.msra.mxu0 %v1836
        %1851 = vmatprep.subr.mxu0 0.0
        %1852 = vmatpush1.msra.mxu0 %v1837
        %1853 = vmatprep.subr.mxu0 0.0
        %1854 = vmatpush1.msra.mxu0 0.0
        %1855 = vmatprep.subr.mxu0 0.0
        %1856 = vmatpush1.msra.mxu0 0.0
        %1857 = vmatprep.subr.mxu0 0.0
        %1858 = vmatpush1.msra.mxu0 0.0
        %1859 = vmatprep.subr.mxu0 0.0
        %1860 = vmatpush1.msra.mxu0 0.0
        %1861 = vmatprep.subr.mxu0 0.0
        %1862 = vmatpush1.msra.mxu0 0.0
        %1863 = vmatprep.subr.mxu0 0.0
        %1864 = vmatpush1.msra.mxu0 0.0
        %1865 = vmatprep.subr.mxu0 0.0
        %1866 = vmatpush1.msra.mxu0 0.0
        %1867 = vmatprep.subr.mxu0 0.0
        %1868 = vmatpush1.msra.mxu0 0.0
        %1869 = vmatprep.subr.mxu0 0.0
        %1870 = vmatpush1.msra.mxu0 0.0
        %1871 = vmatprep.subr.mxu0 0.0
        %1872 = vmatpush1.msra.mxu0 0.0
        %1873 = vmatprep.subr.mxu0 0.0
        %1874 = vmatpush1.msra.mxu0 0.0
        %1875 = vmatprep.subr.mxu0 0.0
        %1876 = vmatpush1.msra.mxu0 0.0
        %1877 = vmatprep.subr.mxu0 0.0
        %1878 = vmatpush1.msra.mxu0 0.0
        %1879 = vmatprep.subr.mxu0 0.0
        %1880 = vmatpush1.msra.mxu0 0.0
        %1881 = vmatprep.subr.mxu0 0.0
        %1882 = vmatpush1.msra.mxu0 0.0
        %1883 = vmatprep.subr.mxu0 0.0
        %1884 = vmatpush1.msra.mxu0 0.0
        %1885 = vmatprep.subr.mxu0 0.0
        %1886 = vmatpush1.msra.mxu0 0.0
        %1887 = vmatprep.subr.mxu0 0.0
        %1888 = vmatpush1.msra.mxu0 0.0
        %1889 = vmatprep.subr.mxu0 0.0
        %1890 = vmatpush1.msra.mxu0 0.0
        %1891 = vmatprep.subr.mxu0 0.0
        %1892 = vmatpush1.msra.mxu0 0.0
        %1893 = vmatprep.subr.mxu0 0.0
        %1894 = vmatpush1.msra.mxu0 0.0
        %1895 = vmatprep.subr.mxu0 0.0
        %1896 = vmatpush1.msra.mxu0 0.0
        %1897 = vmatprep.subr.mxu0 0.0
        %1898 = vmatpush1.msra.mxu0 0.0
        %1899 = vmatprep.subr.mxu0 0.0
        %1900 = vmatpush1.msra.mxu0 0.0
        %1901 = vmatprep.subr.mxu0 0.0
        %1902 = vmatpush1.msra.mxu0 0.0
        %1903 = vmatprep.subr.mxu0 0.0
        %1904 = vmatpush1.msra.mxu0 0.0
        %1905 = vmatprep.subr.mxu0 0.0
        %1906 = vmatpush1.msra.mxu0 0.0
        %1907 = vmatprep.subr.mxu0 0.0
        %1908 = vmatpush1.msra.mxu0 0.0
        %1909 = vmatprep.mubr.f32.mxu0 0.0
        %1910 = vmatmul.mubr.f32.gmra.mrb[0].mxu0 %v731
        %v1911 = vpop.f32.mrb[0].mxu0
        %v1912 = vadd.f32 %v1841, %v1911
        %v1913 = vpop.f32.mrb[0].mxu0
        %1914 = vmatprep.mubr.f32.mxu0 0.0
        %1915 = vmatmul.mubr.f32.gmra.mrb[0].mxu0 %v734
        %v1916 = vpop.f32.mrb[0].mxu0
        %v1917 = vadd.f32 %v1842, %v1916
        %v1918 = vpop.f32.mrb[0].mxu0
        %1919 = vmatprep.mubr.f32.mxu0 0.0
        %1920 = vmatmul.mubr.f32.gmra.mrb[0].mxu0 %v737
        %v1921 = vpop.f32.mrb[0].mxu0
        %v1922 = vadd.f32 %v1843, %v1921
        %v1923 = vpop.f32.mrb[0].mxu0
        %1924 = vmatprep.mubr.f32.mxu0 0.0
        %1925 = vmatmul.mubr.f32.gmra.mrb[0].mxu0 %v740
        %v1926 = vpop.f32.mrb[0].mxu0
        %v1927 = vadd.f32 %v1844, %v1926
        %v1928 = vpop.f32.mrb[0].mxu0
        %1929 = vdwg.mxu0
        %s1930 = scalar_lea.vmem [#allocation10], 64
        %v1931 = vld [vmem:[%s1930] sm:$0xff]
        %v1932 = vld [vmem:[%s1930 + $0x8] sm:$0xff]
        %v1933 = vld [vmem:[%s1930 + $0x10] sm:$0xff]
        %v1934 = vld [vmem:[%s1930 + $0x18] sm:$0xff]
        %s1935 = scalar_lea.vmem [#allocation12], 2
        %v1936 = vld [vmem:[%s1935] sm:$0x1]
        %v1938 = vlaneseq
        %v1939 = vshrl.u32 %v1938, 7
        %v1940 = vsub.s32 0, %v1939
        %v1941 = vrot.slane %v1936, %v1940
        %v1944 = vsel %vm729, %v1912, 0
        %v1947 = vsel %vm729, %v1917, 0
        %v1950 = vsel %vm729, %v1922, 0
        %v1953 = vsel %vm729, %v1927, 0
        %1955 = vmatprep.subr.mxu0 0.0
        %1956 = vmatpush1.msra.mxu0 %v1931
        %1957 = vmatprep.subr.mxu0 0.0
        %1958 = vmatpush1.msra.mxu0 %v1932
        %1959 = vmatprep.subr.mxu0 0.0
        %1960 = vmatpush1.msra.mxu0 %v1933
        %1961 = vmatprep.subr.mxu0 0.0
        %1962 = vmatpush1.msra.mxu0 %v1934
        %1963 = vmatprep.subr.mxu0 0.0
        %1964 = vmatpush1.msra.mxu0 0.0
        %1965 = vmatprep.subr.mxu0 0.0
        %1966 = vmatpush1.msra.mxu0 0.0
        %1967 = vmatprep.subr.mxu0 0.0
        %1968 = vmatpush1.msra.mxu0 0.0
        %1969 = vmatprep.subr.mxu0 0.0
        %1970 = vmatpush1.msra.mxu0 0.0
        %1971 = vmatprep.subr.mxu0 0.0
        %1972 = vmatpush1.msra.mxu0 0.0
        %1973 = vmatprep.subr.mxu0 0.0
        %1974 = vmatpush1.msra.mxu0 0.0
        %1975 = vmatprep.subr.mxu0 0.0
        %1976 = vmatpush1.msra.mxu0 0.0
        %1977 = vmatprep.subr.mxu0 0.0
        %1978 = vmatpush1.msra.mxu0 0.0
        %1979 = vmatprep.subr.mxu0 0.0
        %1980 = vmatpush1.msra.mxu0 0.0
        %1981 = vmatprep.subr.mxu0 0.0
        %1982 = vmatpush1.msra.mxu0 0.0
        %1983 = vmatprep.subr.mxu0 0.0
        %1984 = vmatpush1.msra.mxu0 0.0
        %1985 = vmatprep.subr.mxu0 0.0
        %1986 = vmatpush1.msra.mxu0 0.0
        %1987 = vmatprep.subr.mxu0 0.0
        %1988 = vmatpush1.msra.mxu0 0.0
        %1989 = vmatprep.subr.mxu0 0.0
        %1990 = vmatpush1.msra.mxu0 0.0
        %1991 = vmatprep.subr.mxu0 0.0
        %1992 = vmatpush1.msra.mxu0 0.0
        %1993 = vmatprep.subr.mxu0 0.0
        %1994 = vmatpush1.msra.mxu0 0.0
        %1995 = vmatprep.subr.mxu0 0.0
        %1996 = vmatpush1.msra.mxu0 0.0
        %1997 = vmatprep.subr.mxu0 0.0
        %1998 = vmatpush1.msra.mxu0 0.0
        %1999 = vmatprep.subr.mxu0 0.0
        %2000 = vmatpush1.msra.mxu0 0.0
        %2001 = vmatprep.subr.mxu0 0.0
        %2002 = vmatpush1.msra.mxu0 0.0
        %2003 = vmatprep.subr.mxu0 0.0
        %2004 = vmatpush1.msra.mxu0 0.0
        %2005 = vmatprep.subr.mxu0 0.0
        %2006 = vmatpush1.msra.mxu0 0.0
        %2007 = vmatprep.subr.mxu0 0.0
        %2008 = vmatpush1.msra.mxu0 0.0
        %2009 = vmatprep.subr.mxu0 0.0
        %2010 = vmatpush1.msra.mxu0 0.0
        %2011 = vmatprep.subr.mxu0 0.0
        %2012 = vmatpush1.msra.mxu0 0.0
        %2013 = vmatprep.subr.mxu0 0.0
        %2014 = vmatpush1.msra.mxu0 0.0
        %2015 = vmatprep.subr.mxu0 0.0
        %2016 = vmatpush1.msra.mxu0 0.0
        %2017 = vmatprep.subr.mxu0 0.0
        %2018 = vmatpush1.msra.mxu0 0.0
        %2019 = vmatprep.mubr.f32.mxu0 0.0
        %2020 = vmatmul.mubr.f32.gmra.mrb[0].mxu0 %v1944
        %v2021 = vpop.f32.mrb[0].mxu0
        %v2022 = vadd.f32 %v1941, %v2021
        %v2023 = vpop.f32.mrb[0].mxu0
        %2024 = vmatprep.mubr.f32.mxu0 0.0
        %2025 = vmatmul.mubr.f32.gmra.mrb[0].mxu0 %v1947
        %v2026 = vpop.f32.mrb[0].mxu0
        %v2027 = vadd.f32 %v1941, %v2026
        %v2028 = vpop.f32.mrb[0].mxu0
        %2029 = vmatprep.mubr.f32.mxu0 0.0
        %2030 = vmatmul.mubr.f32.gmra.mrb[0].mxu0 %v1950
        %v2031 = vpop.f32.mrb[0].mxu0
        %v2032 = vadd.f32 %v1941, %v2031
        %v2033 = vpop.f32.mrb[0].mxu0
        %2034 = vmatprep.mubr.f32.mxu0 0.0
        %2035 = vmatmul.mubr.f32.gmra.mrb[0].mxu0 %v1953
        %v2036 = vpop.f32.mrb[0].mxu0
        %v2037 = vadd.f32 %v1941, %v2036
        %v2038 = vpop.f32.mrb[0].mxu0
        %2039 = vdwg.mxu0
        %s2040 = scalar_lea.vmem [#allocation13], 8
        %v2041 = vld [vmem:[%s2040] sm:$0x7]
        %v2042 = vsel %vm729, %v2022, 0.0
        %v2043 = vsel %vm729, %v2027, 0.0
        %v2044 = vadd.f32 %v2042, %v2043
        %v2045 = vsel %vm729, %v2032, 0.0
        %v2046 = vadd.f32 %v2044, %v2045
        %v2047 = vsel %vm729, %v2037, 0.0
        %v2048 = vadd.f32 %v2046, %v2047
        %v2049 = vrot.slane %v2048, 4
        %v2050 = vadd.f32 %v2048, %v2049
        %v2051 = vrot.slane %v2050, 2
        %v2052 = vadd.f32 %v2050, %v2051
        %v2053 = vrot.slane %v2052, 1
        %v2054 = vadd.f32 %v2052, %v2053
        %v2055 = vmul.f32 %v2054, %v949
        %v2056 = vmul.f32 %v2041, %v2055
        %v2057 = vlaneseq
        %v2058 = vshrl.u32 %v2057, 7
        %v2059 = vsub.s32 0, %v2058
        %v2060 = vrot.slane %v2056, %v2059
        %v2061 = vsub.f32 %v2022, %v2060
        %v2062 = vsub.f32 %v2027, %v2060
        %v2063 = vsub.f32 %v2032, %v2060
        %v2064 = vsub.f32 %v2037, %v2060
        %v2065 = vmul.f32 %v2061, %v2061
        %v2066 = vmul.f32 %v2062, %v2062
        %v2067 = vmul.f32 %v2063, %v2063
        %v2068 = vmul.f32 %v2064, %v2064
        %v2069 = vsel %vm729, %v2065, 0.0
        %v2070 = vsel %vm729, %v2066, 0.0
        %v2071 = vadd.f32 %v2069, %v2070
        %v2072 = vsel %vm729, %v2067, 0.0
        %v2073 = vadd.f32 %v2071, %v2072
        %v2074 = vsel %vm729, %v2068, 0.0
        %v2075 = vadd.f32 %v2073, %v2074
        %v2076 = vrot.slane %v2075, 4
        %v2077 = vadd.f32 %v2075, %v2076
        %v2078 = vrot.slane %v2077, 2
        %v2079 = vadd.f32 %v2077, %v2078
        %v2080 = vrot.slane %v2079, 1
        %v2081 = vadd.f32 %v2079, %v2080
        %v2082 = vmul.f32 %v2081, %v949
        %v2083 = vlaneseq
        %v2084 = vshrl.u32 %v2083, 7
        %v2085 = vsub.s32 1, %v2084
        %v2086 = vrot.slane %v2041, %v2085
        %v2087 = vmul.f32 %v2086, %v2061
        %v2088 = vmul.f32 %v2086, %v2062
        %v2089 = vmul.f32 %v2086, %v2063
        %v2090 = vmul.f32 %v2086, %v2064
        %v2091 = vadd.f32 %v2082, 1e-05
        %v2092 = vrsqrt.pop %v2091
        %v2093 = vmul.f32 %v2087, %v2092
        %v2094 = vmul.f32 %v2088, %v2092
        %v2095 = vmul.f32 %v2089, %v2092
        %v2096 = vmul.f32 %v2090, %v2092
        %v2097 = vlaneseq
        %v2098 = vshrl.u32 %v2097, 7
        %v2099 = vsub.s32 2, %v2098
        %v2100 = vrot.slane %v2041, %v2099
        %v2101 = vadd.f32 %v2093, %v2100
        %v2102 = vadd.f32 %v2094, %v2100
        %v2103 = vadd.f32 %v2095, %v2100
        %v2104 = vadd.f32 %v2096, %v2100
        %v2105 = vmax.f32 %v2101, 0.0
        %v2106 = vmax.f32 %v2102, 0.0
        %v2107 = vmax.f32 %v2103, 0.0
        %v2108 = vmax.f32 %v2104, 0.0
        %s2109 = scalar_lea.vmem %s8, 64
        %v2110 = vld [vmem:[%s2109] sm:$0xff]
        %v2111 = vld [vmem:[%s2109 + $0x8] sm:$0xff]
        %v2112 = vld [vmem:[%s2109 + $0x10] sm:$0xff]
        %v2113 = vld [vmem:[%s2109 + $0x18] sm:$0xff]
        %s2114 = scalar_lea.vmem %s9, 2
        %v2115 = vld [vmem:[%s2114] sm:$0x1]
        %v2117 = vlaneseq
        %v2118 = vshrl.u32 %v2117, 7
        %v2119 = vsub.s32 0, %v2118
        %v2120 = vrot.slane %v2115, %v2119
        %v2123 = vsel %vm729, %v2105, 0
        %v2126 = vsel %vm729, %v2106, 0
        %v2129 = vsel %vm729, %v2107, 0
        %v2132 = vsel %vm729, %v2108, 0
        %2134 = vmatprep.subr.mxu0 0.0
        %2135 = vmatpush1.msra.mxu0 %v2110
        %2136 = vmatprep.subr.mxu0 0.0
        %2137 = vmatpush1.msra.mxu0 %v2111
        %2138 = vmatprep.subr.mxu0 0.0
        %2139 = vmatpush1.msra.mxu0 %v2112
        %2140 = vmatprep.subr.mxu0 0.0
        %2141 = vmatpush1.msra.mxu0 %v2113
        %2142 = vmatprep.subr.mxu0 0.0
        %2143 = vmatpush1.msra.mxu0 0.0
        %2144 = vmatprep.subr.mxu0 0.0
        %2145 = vmatpush1.msra.mxu0 0.0
        %2146 = vmatprep.subr.mxu0 0.0
        %2147 = vmatpush1.msra.mxu0 0.0
        %2148 = vmatprep.subr.mxu0 0.0
        %2149 = vmatpush1.msra.mxu0 0.0
        %2150 = vmatprep.subr.mxu0 0.0
        %2151 = vmatpush1.msra.mxu0 0.0
        %2152 = vmatprep.subr.mxu0 0.0
        %2153 = vmatpush1.msra.mxu0 0.0
        %2154 = vmatprep.subr.mxu0 0.0
        %2155 = vmatpush1.msra.mxu0 0.0
        %2156 = vmatprep.subr.mxu0 0.0
        %2157 = vmatpush1.msra.mxu0 0.0
        %2158 = vmatprep.subr.mxu0 0.0
        %2159 = vmatpush1.msra.mxu0 0.0
        %2160 = vmatprep.subr.mxu0 0.0
        %2161 = vmatpush1.msra.mxu0 0.0
        %2162 = vmatprep.subr.mxu0 0.0
        %2163 = vmatpush1.msra.mxu0 0.0
        %2164 = vmatprep.subr.mxu0 0.0
        %2165 = vmatpush1.msra.mxu0 0.0
        %2166 = vmatprep.subr.mxu0 0.0
        %2167 = vmatpush1.msra.mxu0 0.0
        %2168 = vmatprep.subr.mxu0 0.0
        %2169 = vmatpush1.msra.mxu0 0.0
        %2170 = vmatprep.subr.mxu0 0.0
        %2171 = vmatpush1.msra.mxu0 0.0
        %2172 = vmatprep.subr.mxu0 0.0
        %2173 = vmatpush1.msra.mxu0 0.0
        %2174 = vmatprep.subr.mxu0 0.0
        %2175 = vmatpush1.msra.mxu0 0.0
        %2176 = vmatprep.subr.mxu0 0.0
        %2177 = vmatpush1.msra.mxu0 0.0
        %2178 = vmatprep.subr.mxu0 0.0
        %2179 = vmatpush1.msra.mxu0 0.0
        %2180 = vmatprep.subr.mxu0 0.0
        %2181 = vmatpush1.msra.mxu0 0.0
        %2182 = vmatprep.subr.mxu0 0.0
        %2183 = vmatpush1.msra.mxu0 0.0
        %2184 = vmatprep.subr.mxu0 0.0
        %2185 = vmatpush1.msra.mxu0 0.0
        %2186 = vmatprep.subr.mxu0 0.0
        %2187 = vmatpush1.msra.mxu0 0.0
        %2188 = vmatprep.subr.mxu0 0.0
        %2189 = vmatpush1.msra.mxu0 0.0
        %2190 = vmatprep.subr.mxu0 0.0
        %2191 = vmatpush1.msra.mxu0 0.0
        %2192 = vmatprep.subr.mxu0 0.0
        %2193 = vmatpush1.msra.mxu0 0.0
        %2194 = vmatprep.subr.mxu0 0.0
        %2195 = vmatpush1.msra.mxu0 0.0
        %2196 = vmatprep.subr.mxu0 0.0
        %2197 = vmatpush1.msra.mxu0 0.0
        %2198 = vmatprep.mubr.f32.mxu0 0.0
        %2199 = vmatmul.mubr.f32.gmra.mrb[0].mxu0 %v2123
        %v2200 = vpop.f32.mrb[0].mxu0
        %v2201 = vadd.f32 %v2120, %v2200
        %v2202 = vpop.f32.mrb[0].mxu0
        %2203 = vmatprep.mubr.f32.mxu0 0.0
        %2204 = vmatmul.mubr.f32.gmra.mrb[0].mxu0 %v2126
        %v2205 = vpop.f32.mrb[0].mxu0
        %v2206 = vadd.f32 %v2120, %v2205
        %v2207 = vpop.f32.mrb[0].mxu0
        %2208 = vmatprep.mubr.f32.mxu0 0.0
        %2209 = vmatmul.mubr.f32.gmra.mrb[0].mxu0 %v2129
        %v2210 = vpop.f32.mrb[0].mxu0
        %v2211 = vadd.f32 %v2120, %v2210
        %v2212 = vpop.f32.mrb[0].mxu0
        %2213 = vmatprep.mubr.f32.mxu0 0.0
        %2214 = vmatmul.mubr.f32.gmra.mrb[0].mxu0 %v2132
        %v2215 = vpop.f32.mrb[0].mxu0
        %v2216 = vadd.f32 %v2120, %v2215
        %v2217 = vpop.f32.mrb[0].mxu0
        %2218 = vdwg.mxu0
        %s2219 = scalar_lea.vmem [#allocation15], 8
        %v2220 = vld [vmem:[%s2219] sm:$0x7]
        %v2221 = vsel %vm729, %v2201, 0.0
        %v2222 = vsel %vm729, %v2206, 0.0
        %v2223 = vadd.f32 %v2221, %v2222
        %v2224 = vsel %vm729, %v2211, 0.0
        %v2225 = vadd.f32 %v2223, %v2224
        %v2226 = vsel %vm729, %v2216, 0.0
        %v2227 = vadd.f32 %v2225, %v2226
        %v2228 = vrot.slane %v2227, 4
        %v2229 = vadd.f32 %v2227, %v2228
        %v2230 = vrot.slane %v2229, 2
        %v2231 = vadd.f32 %v2229, %v2230
        %v2232 = vrot.slane %v2231, 1
        %v2233 = vadd.f32 %v2231, %v2232
        %v2234 = vmul.f32 %v2233, %v949
        %v2235 = vmul.f32 %v2220, %v2234
        %v2236 = vlaneseq
        %v2237 = vshrl.u32 %v2236, 7
        %v2238 = vsub.s32 0, %v2237
        %v2239 = vrot.slane %v2235, %v2238
        %v2240 = vsub.f32 %v2201, %v2239
        %v2241 = vsub.f32 %v2206, %v2239
        %v2242 = vsub.f32 %v2211, %v2239
        %v2243 = vsub.f32 %v2216, %v2239
        %v2244 = vmul.f32 %v2240, %v2240
        %v2245 = vmul.f32 %v2241, %v2241
        %v2246 = vmul.f32 %v2242, %v2242
        %v2247 = vmul.f32 %v2243, %v2243
        %v2248 = vsel %vm729, %v2244, 0.0
        %v2249 = vsel %vm729, %v2245, 0.0
        %v2250 = vadd.f32 %v2248, %v2249
        %v2251 = vsel %vm729, %v2246, 0.0
        %v2252 = vadd.f32 %v2250, %v2251
        %v2253 = vsel %vm729, %v2247, 0.0
        %v2254 = vadd.f32 %v2252, %v2253
        %v2255 = vrot.slane %v2254, 4
        %v2256 = vadd.f32 %v2254, %v2255
        %v2257 = vrot.slane %v2256, 2
        %v2258 = vadd.f32 %v2256, %v2257
        %v2259 = vrot.slane %v2258, 1
        %v2260 = vadd.f32 %v2258, %v2259
        %v2261 = vmul.f32 %v2260, %v949
        %v2262 = vlaneseq
        %v2263 = vshrl.u32 %v2262, 7
        %v2264 = vsub.s32 1, %v2263
        %v2265 = vrot.slane %v2220, %v2264
        %v2266 = vmul.f32 %v2265, %v2240
        %v2267 = vmul.f32 %v2265, %v2241
        %v2268 = vmul.f32 %v2265, %v2242
        %v2269 = vmul.f32 %v2265, %v2243
        %v2270 = vadd.f32 %v2261, 1e-05
        %v2271 = vrsqrt.pop %v2270
        %v2272 = vmul.f32 %v2266, %v2271
        %v2273 = vmul.f32 %v2267, %v2271
        %v2274 = vmul.f32 %v2268, %v2271
        %v2275 = vmul.f32 %v2269, %v2271
        %v2276 = vlaneseq
        %v2277 = vshrl.u32 %v2276, 7
        %v2278 = vsub.s32 2, %v2277
        %v2279 = vrot.slane %v2220, %v2278
        %v2280 = vadd.f32 %v2272, %v2279
        %v2281 = vadd.f32 %v2273, %v2279
        %v2282 = vadd.f32 %v2274, %v2279
        %v2283 = vadd.f32 %v2275, %v2279
        %v2284 = vmul.f32 %v2280, 0.5
        %v2285 = vmul.f32 %v2281, 0.5
        %v2286 = vmul.f32 %v2282, 0.5
        %v2287 = vmul.f32 %v2283, 0.5
        %v2288 = vmul.f32 %v2280, 0.70710677
        %v2289 = vmul.f32 %v2281, 0.70710677
        %v2290 = vmul.f32 %v2282, 0.70710677
        %v2291 = vmul.f32 %v2283, 0.70710677
        %v2292 = vand.u32 2147483647, %v2288
        %v2293 = vand.u32 2147483647, %v2289
        %v2294 = vand.u32 2147483647, %v2290
        %v2295 = vand.u32 2147483647, %v2291
        %v2296 = vmul.f32 %v2292, 0.3275911
        %v2297 = vmul.f32 %v2293, 0.3275911
        %v2298 = vmul.f32 %v2294, 0.3275911
        %v2299 = vmul.f32 %v2295, 0.3275911
        %v2300 = vadd.f32 %v2296, 1.0
        %v2301 = vadd.f32 %v2297, 1.0
        %v2302 = vadd.f32 %v2298, 1.0
        %v2303 = vadd.f32 %v2299, 1.0
        %v2304 = vrcp.pop %v2300
        %v2305 = vmul.f32 1.0, %v2304
        %v2306 = vrcp.pop %v2301
        %v2307 = vmul.f32 1.0, %v2306
        %v2308 = vrcp.pop %v2302
        %v2309 = vmul.f32 1.0, %v2308
        %v2310 = vrcp.pop %v2303
        %v2311 = vmul.f32 1.0, %v2310
        %v2312 = vmul.f32 %v2305, 1.0614054
        %v2313 = vmul.f32 %v2307, 1.0614054
        %v2314 = vmul.f32 %v2309, 1.0614054
        %v2315 = vmul.f32 %v2311, 1.0614054
        %v2316 = vadd.f32 %v2312, -1.4531521
        %v2317 = vadd.f32 %v2313, -1.4531521
        %v2318 = vadd.f32 %v2314, -1.4531521
        %v2319 = vadd.f32 %v2315, -1.4531521
        %v2320 = vmul.f32 %v2316, %v2305
        %v2321 = vmul.f32 %v2317, %v2307
        %v2322 = vmul.f32 %v2318, %v2309
        %v2323 = vmul.f32 %v2319, %v2311
        %v2324 = vadd.f32 %v2320, 1.4214138
        %v2325 = vadd.f32 %v2321, 1.4214138
        %v2326 = vadd.f32 %v2322, 1.4214138
        %v2327 = vadd.f32 %v2323, 1.4214138
        %v2328 = vmul.f32 %v2324, %v2305
        %v2329 = vmul.f32 %v2325, %v2307
        %v2330 = vmul.f32 %v2326, %v2309
        %v2331 = vmul.f32 %v2327, %v2311
        %v2332 = vadd.f32 %v2328, -0.28449672
        %v2333 = vadd.f32 %v2329, -0.28449672
        %v2334 = vadd.f32 %v2330, -0.28449672
        %v2335 = vadd.f32 %v2331, -0.28449672
        %v2336 = vmul.f32 %v2332, %v2305
        %v2337 = vmul.f32 %v2333, %v2307
        %v2338 = vmul.f32 %v2334, %v2309
        %v2339 = vmul.f32 %v2335, %v2311
        %v2340 = vadd.f32 %v2336, 0.2548296
        %v2341 = vadd.f32 %v2337, 0.2548296
        %v2342 = vadd.f32 %v2338, 0.2548296
        %v2343 = vadd.f32 %v2339, 0.2548296
        %v2344 = vmul.f32 %v2340, %v2305
        %v2345 = vmul.f32 %v2341, %v2307
        %v2346 = vmul.f32 %v2342, %v2309
        %v2347 = vmul.f32 %v2343, %v2311
        %v2348 = vsub.f32 0.0, %v2292
        %v2349 = vsub.f32 0.0, %v2293
        %v2350 = vsub.f32 0.0, %v2294
        %v2351 = vsub.f32 0.0, %v2295
        %v2352 = vmul.f32 %v2348, %v2292
        %v2353 = vmul.f32 %v2349, %v2293
        %v2354 = vmul.f32 %v2350, %v2294
        %v2355 = vmul.f32 %v2351, %v2295
        %v2356 = vmul.f32 %v2352, 1.442695
        %v2357 = vpow.pop %v2356
        %v2358 = vmul.f32 %v2353, 1.442695
        %v2359 = vpow.pop %v2358
        %v2360 = vmul.f32 %v2354, 1.442695
        %v2361 = vpow.pop %v2360
        %v2362 = vmul.f32 %v2355, 1.442695
        %v2363 = vpow.pop %v2362
        %v2364 = vmul.f32 %v2344, %v2357
        %v2365 = vmul.f32 %v2345, %v2359
        %v2366 = vmul.f32 %v2346, %v2361
        %v2367 = vmul.f32 %v2347, %v2363
        %v2368 = vsub.f32 1.0, %v2364
        %v2369 = vsub.f32 1.0, %v2365
        %v2370 = vsub.f32 1.0, %v2366
        %v2371 = vsub.f32 1.0, %v2367
        %vm2372 = vcmp.ge.f32.partialorder %v2288, 0.0
        %vm2373 = vcmp.ge.f32.partialorder %v2289, 0.0
        %vm2374 = vcmp.ge.f32.partialorder %v2290, 0.0
        %vm2375 = vcmp.ge.f32.partialorder %v2291, 0.0
        %v2376 = vsub.f32 0.0, %v2368
        %v2377 = vsub.f32 0.0, %v2369
        %v2378 = vsub.f32 0.0, %v2370
        %v2379 = vsub.f32 0.0, %v2371
        %v2380 = vsel %vm2372, %v2368, %v2376
        %v2381 = vsel %vm2373, %v2369, %v2377
        %v2382 = vsel %vm2374, %v2370, %v2378
        %v2383 = vsel %vm2375, %v2371, %v2379
        %v2384 = vadd.f32 %v2380, 1.0
        %v2385 = vadd.f32 %v2381, 1.0
        %v2386 = vadd.f32 %v2382, 1.0
        %v2387 = vadd.f32 %v2383, 1.0
        %v2388 = vmul.f32 %v2284, %v2384
        %v2389 = vmul.f32 %v2285, %v2385
        %v2390 = vmul.f32 %v2286, %v2386
        %v2391 = vmul.f32 %v2287, %v2387
        %v2392 = vld [vmem:[#allocation16] sm:$0xff]
        %v2393 = vld [vmem:[#allocation16 + $0x8] sm:$0xff]
        %v2394 = vld [vmem:[#allocation16 + $0x10] sm:$0xff]
        %v2395 = vld [vmem:[#allocation16 + $0x18] sm:$0xff]
        %v2396 = vld [vmem:[#allocation18] sm:$0xff]
        %v2397 = vld [vmem:[#allocation18 + $0x8] sm:$0xff]
        %v2398 = vld [vmem:[#allocation18 + $0x10] sm:$0xff]
        %v2399 = vld [vmem:[#allocation18 + $0x18] sm:$0xff]
        %v2401 = vsel %vm729, %v2392, 0
        %v2404 = vsel %vm729, %v2393, 0
        %v2407 = vsel %vm729, %v2394, 0
        %v2410 = vsel %vm729, %v2395, 0
        %2412 = vmatprep.subr.mxu0 0.0
        %2413 = vmatpush1.msra.mxu0 %v2388
        %2414 = vmatprep.subr.mxu0 0.0
        %2415 = vmatpush1.msra.mxu0 %v2389
        %2416 = vmatprep.subr.mxu0 0.0
        %2417 = vmatpush1.msra.mxu0 %v2390
        %2418 = vmatprep.subr.mxu0 0.0
        %2419 = vmatpush1.msra.mxu0 %v2391
        %2420 = vmatprep.subr.mxu0 0.0
        %2421 = vmatpush1.msra.mxu0 0.0
        %2422 = vmatprep.subr.mxu0 0.0
        %2423 = vmatpush1.msra.mxu0 0.0
        %2424 = vmatprep.subr.mxu0 0.0
        %2425 = vmatpush1.msra.mxu0 0.0
        %2426 = vmatprep.subr.mxu0 0.0
        %2427 = vmatpush1.msra.mxu0 0.0
        %2428 = vmatprep.subr.mxu0 0.0
        %2429 = vmatpush1.msra.mxu0 0.0
        %2430 = vmatprep.subr.mxu0 0.0
        %2431 = vmatpush1.msra.mxu0 0.0
        %2432 = vmatprep.subr.mxu0 0.0
        %2433 = vmatpush1.msra.mxu0 0.0
        %2434 = vmatprep.subr.mxu0 0.0
        %2435 = vmatpush1.msra.mxu0 0.0
        %2436 = vmatprep.subr.mxu0 0.0
        %2437 = vmatpush1.msra.mxu0 0.0
        %2438 = vmatprep.subr.mxu0 0.0
        %2439 = vmatpush1.msra.mxu0 0.0
        %2440 = vmatprep.subr.mxu0 0.0
        %2441 = vmatpush1.msra.mxu0 0.0
        %2442 = vmatprep.subr.mxu0 0.0
        %2443 = vmatpush1.msra.mxu0 0.0
        %2444 = vmatprep.subr.mxu0 0.0
        %2445 = vmatpush1.msra.mxu0 0.0
        %2446 = vmatprep.subr.mxu0 0.0
        %2447 = vmatpush1.msra.mxu0 0.0
        %2448 = vmatprep.subr.mxu0 0.0
        %2449 = vmatpush1.msra.mxu0 0.0
        %2450 = vmatprep.subr.mxu0 0.0
        %2451 = vmatpush1.msra.mxu0 0.0
        %2452 = vmatprep.subr.mxu0 0.0
        %2453 = vmatpush1.msra.mxu0 0.0
        %2454 = vmatprep.subr.mxu0 0.0
        %2455 = vmatpush1.msra.mxu0 0.0
        %2456 = vmatprep.subr.mxu0 0.0
        %2457 = vmatpush1.msra.mxu0 0.0
        %2458 = vmatprep.subr.mxu0 0.0
        %2459 = vmatpush1.msra.mxu0 0.0
        %2460 = vmatprep.subr.mxu0 0.0
        %2461 = vmatpush1.msra.mxu0 0.0
        %2462 = vmatprep.subr.mxu0 0.0
        %2463 = vmatpush1.msra.mxu0 0.0
        %2464 = vmatprep.subr.mxu0 0.0
        %2465 = vmatpush1.msra.mxu0 0.0
        %2466 = vmatprep.subr.mxu0 0.0
        %2467 = vmatpush1.msra.mxu0 0.0
        %2468 = vmatprep.subr.mxu0 0.0
        %2469 = vmatpush1.msra.mxu0 0.0
        %2470 = vmatprep.subr.mxu0 0.0
        %2471 = vmatpush1.msra.mxu0 0.0
        %2472 = vmatprep.subr.mxu0 0.0
        %2473 = vmatpush1.msra.mxu0 0.0
        %2474 = vmatprep.subr.mxu0 0.0
        %2475 = vmatpush1.msra.mxu0 0.0
        %2476 = vmatprep.mubr.f32.mxu0 0.0
        %2477 = vmatmul.mubr.f32.gmra.mrb[0].mxu0 %v2401
        %v2478 = vpop.f32.mrb[0].mxu0
        %v2479 = vadd.f32 %v2396, %v2478
        %v2480 = vpop.f32.mrb[0].mxu0
        %2481 = vmatprep.mubr.f32.mxu0 0.0
        %2482 = vmatmul.mubr.f32.gmra.mrb[0].mxu0 %v2404
        %v2483 = vpop.f32.mrb[0].mxu0
        %v2484 = vadd.f32 %v2397, %v2483
        %v2485 = vpop.f32.mrb[0].mxu0
        %2486 = vmatprep.mubr.f32.mxu0 0.0
        %2487 = vmatmul.mubr.f32.gmra.mrb[0].mxu0 %v2407
        %v2488 = vpop.f32.mrb[0].mxu0
        %v2489 = vadd.f32 %v2398, %v2488
        %v2490 = vpop.f32.mrb[0].mxu0
        %2491 = vmatprep.mubr.f32.mxu0 0.0
        %2492 = vmatmul.mubr.f32.gmra.mrb[0].mxu0 %v2410
        %v2493 = vpop.f32.mrb[0].mxu0
        %v2494 = vadd.f32 %v2399, %v2493
        %v2495 = vpop.f32.mrb[0].mxu0
        %2496 = vdwg.mxu0
        %v2497 = vld [vmem:[#allocation19] sm:$0xff]
        %v2498 = vld [vmem:[#allocation19 + $0x8] sm:$0xff]
        %v2499 = vld [vmem:[#allocation19 + $0x10] sm:$0xff]
        %v2500 = vld [vmem:[#allocation19 + $0x18] sm:$0xff]
        %v2501 = vld [vmem:[%s14] sm:$0x1]
        %v2503 = vlaneseq
        %v2504 = vshrl.u32 %v2503, 7
        %v2505 = vsub.s32 0, %v2504
        %v2506 = vrot.slane %v2501, %v2505
        %v2509 = vsel %vm729, %v2479, 0
        %v2512 = vsel %vm729, %v2484, 0
        %v2515 = vsel %vm729, %v2489, 0
        %v2518 = vsel %vm729, %v2494, 0
        %2520 = vmatprep.subr.mxu0 0.0
        %2521 = vmatpush1.msra.mxu0 %v2497
        %2522 = vmatprep.subr.mxu0 0.0
        %2523 = vmatpush1.msra.mxu0 %v2498
        %2524 = vmatprep.subr.mxu0 0.0
        %2525 = vmatpush1.msra.mxu0 %v2499
        %2526 = vmatprep.subr.mxu0 0.0
        %2527 = vmatpush1.msra.mxu0 %v2500
        %2528 = vmatprep.subr.mxu0 0.0
        %2529 = vmatpush1.msra.mxu0 0.0
        %2530 = vmatprep.subr.mxu0 0.0
        %2531 = vmatpush1.msra.mxu0 0.0
        %2532 = vmatprep.subr.mxu0 0.0
        %2533 = vmatpush1.msra.mxu0 0.0
        %2534 = vmatprep.subr.mxu0 0.0
        %2535 = vmatpush1.msra.mxu0 0.0
        %2536 = vmatprep.subr.mxu0 0.0
        %2537 = vmatpush1.msra.mxu0 0.0
        %2538 = vmatprep.subr.mxu0 0.0
        %2539 = vmatpush1.msra.mxu0 0.0
        %2540 = vmatprep.subr.mxu0 0.0
        %2541 = vmatpush1.msra.mxu0 0.0
        %2542 = vmatprep.subr.mxu0 0.0
        %2543 = vmatpush1.msra.mxu0 0.0
        %2544 = vmatprep.subr.mxu0 0.0
        %2545 = vmatpush1.msra.mxu0 0.0
        %2546 = vmatprep.subr.mxu0 0.0
        %2547 = vmatpush1.msra.mxu0 0.0
        %2548 = vmatprep.subr.mxu0 0.0
        %2549 = vmatpush1.msra.mxu0 0.0
        %2550 = vmatprep.subr.mxu0 0.0
        %2551 = vmatpush1.msra.mxu0 0.0
        %2552 = vmatprep.subr.mxu0 0.0
        %2553 = vmatpush1.msra.mxu0 0.0
        %2554 = vmatprep.subr.mxu0 0.0
        %2555 = vmatpush1.msra.mxu0 0.0
        %2556 = vmatprep.subr.mxu0 0.0
        %2557 = vmatpush1.msra.mxu0 0.0
        %2558 = vmatprep.subr.mxu0 0.0
        %2559 = vmatpush1.msra.mxu0 0.0
        %2560 = vmatprep.subr.mxu0 0.0
        %2561 = vmatpush1.msra.mxu0 0.0
        %2562 = vmatprep.subr.mxu0 0.0
        %2563 = vmatpush1.msra.mxu0 0.0
        %2564 = vmatprep.subr.mxu0 0.0
        %2565 = vmatpush1.msra.mxu0 0.0
        %2566 = vmatprep.subr.mxu0 0.0
        %2567 = vmatpush1.msra.mxu0 0.0
        %2568 = vmatprep.subr.mxu0 0.0
        %2569 = vmatpush1.msra.mxu0 0.0
        %2570 = vmatprep.subr.mxu0 0.0
        %2571 = vmatpush1.msra.mxu0 0.0
        %2572 = vmatprep.subr.mxu0 0.0
        %2573 = vmatpush1.msra.mxu0 0.0
        %2574 = vmatprep.subr.mxu0 0.0
        %2575 = vmatpush1.msra.mxu0 0.0
        %2576 = vmatprep.subr.mxu0 0.0
        %2577 = vmatpush1.msra.mxu0 0.0
        %2578 = vmatprep.subr.mxu0 0.0
        %2579 = vmatpush1.msra.mxu0 0.0
        %2580 = vmatprep.subr.mxu0 0.0
        %2581 = vmatpush1.msra.mxu0 0.0
        %2582 = vmatprep.subr.mxu0 0.0
        %2583 = vmatpush1.msra.mxu0 0.0
        %2584 = vmatprep.mubr.f32.mxu0 0.0
        %2585 = vmatmul.mubr.f32.gmra.mrb[0].mxu0 %v2509
        %v2586 = vpop.f32.mrb[0].mxu0
        %v2587 = vadd.f32 %v2506, %v2586
        %v2588 = vpop.f32.mrb[0].mxu0
        %2589 = vmatprep.mubr.f32.mxu0 0.0
        %2590 = vmatmul.mubr.f32.gmra.mrb[0].mxu0 %v2512
        %v2591 = vpop.f32.mrb[0].mxu0
        %v2592 = vadd.f32 %v2506, %v2591
        %v2593 = vpop.f32.mrb[0].mxu0
        %2594 = vmatprep.mubr.f32.mxu0 0.0
        %2595 = vmatmul.mubr.f32.gmra.mrb[0].mxu0 %v2515
        %v2596 = vpop.f32.mrb[0].mxu0
        %v2597 = vadd.f32 %v2506, %v2596
        %v2598 = vpop.f32.mrb[0].mxu0
        %2599 = vmatprep.mubr.f32.mxu0 0.0
        %2600 = vmatmul.mubr.f32.gmra.mrb[0].mxu0 %v2518
        %v2601 = vpop.f32.mrb[0].mxu0
        %v2602 = vadd.f32 %v2506, %v2601
        %v2603 = vpop.f32.mrb[0].mxu0
        %2604 = vdwg.mxu0
        %2605 = vst [vmem:[%s666] sm:$0xff] %v2587
        %2606 = vst [vmem:[%s666 + $0x8] sm:$0xff] %v2592
        %2607 = vst [vmem:[%s666 + $0x10] sm:$0xff] %v2597
        %2608 = vst [vmem:[%s666 + $0x18] sm:$0xff] %v2602
        %s2609 = sand.u32 %s371, 1
        %s2610 = scalar_lea.sflag [#allocation4], %s2609
        %s2611 = sand.u32 %s371, 1
        %s2612 = smul.addr %s2611, 32
        %s2613 = scalar_lea.vmem [#allocation21], %s2612
        // Predicated region
        $region125: #{tpu_custom_call.1} parent=79 // pred_check
          %p2614 = pneg %p381
        $region126: #{tpu_custom_call.1} parent=79 // pred_check_branch
          %2616 = sbr.rel (%p2614) target = $region128
        $region127: #{tpu_custom_call.1} parent=79 // pred_region
          %s2618 = ssub.s32 512, 512
          %2619 = vsyncadd %s2610, %s2618
          %s2620 = smul.addr %s38, 4
          %s2621 = smul.addr %s2620, 128
          %s2622 = scalar_lea.hbm %s15, %s2621
          %s2623 = sshll.u32 %s2613, 4
          %s2624 = int_to_ptr.vmem [resolvable:$true] %s2623
          %2629 = dma.vmem_to_hbm [thread:$0]  %s2624, 512, %s2622, %s2610, 128, 128, 8
        $region128: #{tpu_custom_call.1} parent=79 // pred_fallthru
          _
      $region80: #{tpu_custom_call.1} parent=5 // pred_fallthru
        _
      %p2630 = scmp.le.s32.totalorder 2, %s33
      // Predicated region
      $region129: #{tpu_custom_call.1} parent=5 // pred_check
        %p2631 = pneg %p2630
      $region130: #{tpu_custom_call.1} parent=5 // pred_check_branch
        %2633 = sbr.rel (%p2631) target = $region132
      $region131: #{tpu_custom_call.1} parent=5 // pred_region
        %s2634 = ssub.s32 %s33, 2
        // Predicated region
        $region133: #{tpu_custom_call.1} parent=131 // pred_check
          %p2635 = pneg %p387
        $region134: #{tpu_custom_call.1} parent=131 // pred_check_branch
          %2637 = sbr.rel (%p2635) target = $region136
        $region135: #{tpu_custom_call.1} parent=131 // pred_region
          %s2638 = sand.u32 %s372, 1
          %s2639 = scalar_lea.sflag [#allocation4], %s2638
          %s2640 = sand.u32 %s372, 1
          %s2641 = smul.addr %s2640, 32
          %s2642 = scalar_lea.vmem [#allocation21], %s2641
          %2643 = dma.done %s2639, 512
        $region136: #{tpu_custom_call.1} parent=131 // pred_fallthru
          _
      $region132: #{tpu_custom_call.1} parent=5 // pred_fallthru
        _
    $region6: #{tpu_custom_call.1} parent=1 // loop_footer
      %s37 = sadd.s32 1, %s33
    $region7: #{tpu_custom_call.1} parent=1 // loop_footer_branch
      %32 = sbr.rel target = $region3
    $region8: #{tpu_custom_call.1} parent=1 // loop_exit
      _
    %2644 = vsyncpa [#allocation3], 1
    %s2645 = scalar_lea.sflag [#allocation3], 1
    %2646 = vsyncpa %s2645, 1
    %2647 = vsyncpa [#allocation8], 1
    %2648 = vsyncpa [#allocation11], 1
    %2649 = vsyncpa [#allocation14], 1
    %2650 = vsyncpa [#allocation17], 1
    %2651 = vsyncpa [#allocation20], 1
    %2652 = vsyncpa [#allocation4], 1
    %s2653 = scalar_lea.sflag [#allocation4], 1
    %2654 = vsyncpa %s2653, 1
    %2655 = vsyncpa [#allocation5], 1
    %s2656 = scalar_lea.sflag [#allocation5], 1
    %2657 = vsyncpa %s2656, 1

</llo_original>
